<compile_context>
chip_gen: v7x
topology: tpu7x:2x2x1
jax: 0.10.0
libtpu: 0.0.40
codegen_flags: <defaults>
</compile_context>

<pallas_src>
import jax
import jax.numpy as jnp
from jax.experimental import pallas as pl
from jax.experimental.pallas import tpu as pltpu

FEAT_DIM = 1280      # EfficientNet-B0 feature width
NUM_CLASSES = 768    # self.fc = nn.Linear(1280, 768)

# target size of one streamed x block (bf16 bytes); Pallas double-buffers it.
_X_BLOCK_BYTES = 2 * 1024 * 1024


def _pick_tiles(T, C, HW):
    """Pick (frames per block, spatial elems per block) for the x stream."""
    frame_bytes = C * HW * 2  # bf16
    if frame_bytes <= _X_BLOCK_BYTES:
        # Whole frames per step; pack as many frames as fit (divisor of T).
        max_frames = max(1, _X_BLOCK_BYTES // frame_bytes)
        tT = 1
        for d in range(1, min(T, max_frames) + 1):
            if T % d == 0:
                tT = d
        return tT, HW
    # Single frame is too big: stream it in lane-aligned spatial tiles.
    if HW % 128 != 0:
        # TODO(synk): ragged spatial tiling would need a masked last tile;
        # fall back to a full-frame block.
        return 1, HW
    max_lanes = max(128, (_X_BLOCK_BYTES // (C * 2)) // 128 * 128)
    best = 128
    for mult in range(1, HW // 128 + 1):
        cand = mult * 128
        if cand > max_lanes:
            break
        if HW % cand == 0:
            best = cand
    return 1, best


def video_feature_extractor(x, params, *, frame_block=None, hw_block=None):
    """x: (B, T, C, H, W) float -> (B, NUM_CLASSES) float32."""
    B, T, C, H, W = x.shape
    HW = H * W

    # Stream frames as bf16 (halves HBM bytes on the dominant GAP stream);
    # all accumulation inside the kernel stays in f32.
    x2 = x.reshape(B, T, C, HW).astype(jnp.bfloat16)

    tT_d, tHW_d = _pick_tiles(T, C, HW)
    tT = frame_block if (frame_block is not None and T % frame_block == 0) else tT_d
    hw_ok = (hw_block is not None and
             (hw_block == HW or (hw_block % 128 == 0 and HW % hw_block == 0)))
    tHW = hw_block if hw_ok else tHW_d

    grid = (B, T // tT, HW // tHW)
    inv_hw = 1.0 / float(HW)
    inv_t = 1.0 / float(T)

    def kernel(x_ref, w_head_ref, b_head_ref, w_fc_ref, b_fc_ref,
               out_ref, gap_acc, clip_acc):
        tb = pl.program_id(1)
        k = pl.program_id(2)
        n_tb = pl.num_programs(1)
        n_k = pl.num_programs(2)

        # new clip -> zero the temporal accumulator
        @pl.when(jnp.logical_and(tb == 0, k == 0))
        def _():
            clip_acc[...] = jnp.zeros_like(clip_acc)

        # new frame block -> zero the spatial (GAP) accumulator
        @pl.when(k == 0)
        def _():
            gap_acc[...] = jnp.zeros_like(gap_acc)

        # partial spatial sums for this hw tile, accumulated in f32
        x_tile = x_ref[...].astype(jnp.float32)           # (tT, C, tHW)
        gap_acc[...] += jnp.sum(x_tile, axis=-1)          # (tT, C)

        # last hw tile: finish GAP, head projection (+SiLU), temporal accumulate
        @pl.when(k == n_k - 1)
        def _():
            gap = gap_acc[...] * inv_hw                   # (tT, C)
            # C broadcast MACs on the VPU instead of a degenerate K=C matmul
            feats = b_head_ref[...] + gap[:, 0:1] * w_head_ref[0:1, :]
            for c in range(1, C):
                feats = feats + gap[:, c:c + 1] * w_head_ref[c:c + 1, :]
            feats = jax.nn.silu(feats)                    # (tT, FEAT_DIM)
            clip_acc[...] += jnp.sum(feats, axis=0, keepdims=True)

        # last frame block of the clip: temporal mean + final fc on the MXU
        @pl.when(jnp.logical_and(tb == n_tb - 1, k == n_k - 1))
        def _():
            pooled = clip_acc[...] * inv_t                # (1, FEAT_DIM)
            out_ref[...] = (jnp.dot(pooled, w_fc_ref[...],
                                    preferred_element_type=jnp.float32)
                            + b_fc_ref[...])

    out = pl.pallas_call(
        kernel,
        out_shape=jax.ShapeDtypeStruct((B, 1, NUM_CLASSES), jnp.float32),
        grid_spec=pltpu.PrefetchScalarGridSpec(
            num_scalar_prefetch=0,
            grid=grid,
            in_specs=[
                # streamed frames: (tT, C, tHW) per step
                pl.BlockSpec((None, tT, C, tHW), lambda b, t, k: (b, t, 0, k)),
                # weights/biases: constant block index -> stay VMEM-resident
                pl.BlockSpec((C, FEAT_DIM), lambda b, t, k: (0, 0)),
                pl.BlockSpec((1, FEAT_DIM), lambda b, t, k: (0, 0)),
                pl.BlockSpec((FEAT_DIM, NUM_CLASSES), lambda b, t, k: (0, 0)),
                pl.BlockSpec((1, NUM_CLASSES), lambda b, t, k: (0, 0)),
            ],
            out_specs=pl.BlockSpec((None, 1, NUM_CLASSES),
                                   lambda b, t, k: (b, 0, 0)),
            scratch_shapes=[
                pltpu.VMEM((tT, C), jnp.float32),          # GAP accumulator
                pltpu.VMEM((1, FEAT_DIM), jnp.float32),    # clip accumulator
            ]),
        compiler_params=pltpu.CompilerParams(
            dimension_semantics=("parallel", "arbitrary", "arbitrary"),
            vmem_limit_bytes=32 * 1024 * 1024),
    )(x2, params["w_head"], params["b_head"], params["w_fc"], params["b_fc"])
    return out.reshape(B, NUM_CLASSES)


def init_params(key, c):
    k1, k2, k3, k4 = jax.random.split(key, 4)
    return {
        # stand-in backbone head: C -> 1280
        "w_head": (jax.random.normal(k1, (c, FEAT_DIM), jnp.float32)
                   * (1.0 / jnp.sqrt(c))),
        "b_head": jax.random.normal(k2, (1, FEAT_DIM), jnp.float32) * 0.01,
        # fc: nn.Linear(1280, 768) — stored as (in, out) so kernel does x @ W
        "w_fc": (jax.random.normal(k3, (FEAT_DIM, NUM_CLASSES), jnp.float32)
                 * (1.0 / jnp.sqrt(FEAT_DIM))),
        "b_fc": jax.random.normal(k4, (1, NUM_CLASSES), jnp.float32) * 0.01,
    }


if __name__ == "__main__":
    key = jax.random.PRNGKey(0)
    k_x, k_p = jax.random.split(key)

    B, T, C, H, W = 2, 8, 3, 16, 16          # batch=2, seq=8, 3x16x16 frames
    x = jax.random.normal(k_x, (B, T, C, H, W), jnp.float32)
    params = init_params(k_p, C)

    # explicit small tiles: exercises the multi-step spatial/temporal reduction
    out_tiled = video_feature_extractor(x, params, frame_block=2, hw_block=128)
    # auto-picked production tiling
    out_auto = video_feature_extractor(x, params)
    out_tiled, out_auto = jax.block_until_ready((out_tiled, out_auto))

    assert out_tiled.shape == (B, NUM_CLASSES) and out_tiled.dtype == jnp.float32
    assert out_auto.shape == (B, NUM_CLASSES)

    # pure-JAX reference of the same math (same bf16-streamed frames)
    xf = x.astype(jnp.bfloat16).astype(jnp.float32).reshape(B * T, C, H * W)
    gap = xf.mean(-1)
    feats = jax.nn.silu(gap @ params["w_head"] + params["b_head"])
    ref = feats.reshape(B, T, FEAT_DIM).mean(1) @ params["w_fc"] + params["b_fc"]

    assert jnp.allclose(out_tiled, ref, atol=1e-4, rtol=1e-3)
    assert jnp.allclose(out_auto, ref, atol=1e-4, rtol=1e-3)

    print("KERNEL_OK")
</pallas_src>

<mosaic_0001>
module attributes {stable_mosaic.version = 11 : i64} {
  func.func @kernel(%arg0: i32, %arg1: i32, %arg2: i32, %arg3: memref<1x2x3x128xbf16, #tpu.memory_space<vmem>>, %arg4: memref<3x1280xf32, #tpu.memory_space<vmem>>, %arg5: memref<1x1280xf32, #tpu.memory_space<vmem>>, %arg6: memref<1280x768xf32, #tpu.memory_space<vmem>>, %arg7: memref<1x768xf32, #tpu.memory_space<vmem>>, %arg8: memref<1x1x768xf32, #tpu.memory_space<vmem>>, %arg9: memref<2x3xf32, #tpu.memory_space<vmem>>, %arg10: memref<1x1280xf32, #tpu.memory_space<vmem>>) attributes {dimension_semantics = [#tpu.dimension_semantics<parallel>, #tpu.dimension_semantics<arbitrary>, #tpu.dimension_semantics<arbitrary>], iteration_bounds = array<i64: 2, 4, 2>, scalar_prefetch = 0 : i64, scratch_operands = 2 : i64, tpu.core_type = #tpu.core_type<tc>, window_params = [{transform_indices = @transform_0, window_bounds = array<i64: 1, 2, 3, 128>}, {pipeline_mode = #tpu.pipeline_mode<synchronous>, transform_indices = @transform_1, window_bounds = array<i64: 3, 1280>}, {pipeline_mode = #tpu.pipeline_mode<synchronous>, transform_indices = @transform_2, window_bounds = array<i64: 1, 1280>}, {pipeline_mode = #tpu.pipeline_mode<synchronous>, transform_indices = @transform_3, window_bounds = array<i64: 1280, 768>}, {pipeline_mode = #tpu.pipeline_mode<synchronous>, transform_indices = @transform_4, window_bounds = array<i64: 1, 768>}, {transform_indices = @transform_5, window_bounds = array<i64: 1, 1, 768>}]} {
    %c0_i32 = arith.constant 0 : i32
    %0 = arith.cmpi eq, %arg1, %c0_i32 : i32
    %c0_i32_0 = arith.constant 0 : i32
    %1 = arith.cmpi eq, %arg2, %c0_i32_0 : i32
    %2 = arith.andi %0, %1 : i1
    %3 = arith.extui %2 : i1 to i32
    %c0_i32_1 = arith.constant 0 : i32
    %4 = arith.cmpi ne, %3, %c0_i32_1 : i32
    scf.if %4 {
      %cst_14 = arith.constant 0.000000e+00 : f32
      %23 = vector.broadcast %cst_14 : f32 to vector<1x1280xf32>
      %c0_15 = arith.constant 0 : index
      %c0_16 = arith.constant 0 : index
      %24 = vector.load %arg10[%c0_15, %c0_16] : memref<1x1280xf32, #tpu.memory_space<vmem>>, vector<1x1280xf32>
      tpu.vector_store %arg10[%c0_15, %c0_16], %23 {strides = array<i32>} : memref<1x1280xf32, #tpu.memory_space<vmem>>, vector<1x1280xf32>,
    } else {
    }
    %c0_i32_2 = arith.constant 0 : i32
    %5 = arith.cmpi eq, %arg2, %c0_i32_2 : i32
    %6 = arith.extui %5 : i1 to i32
    %c0_i32_3 = arith.constant 0 : i32
    %7 = arith.cmpi ne, %6, %c0_i32_3 : i32
    scf.if %7 {
      %cst_14 = arith.constant 0.000000e+00 : f32
      %23 = vector.broadcast %cst_14 : f32 to vector<2x3xf32>
      %c0_15 = arith.constant 0 : index
      %c0_16 = arith.constant 0 : index
      %24 = vector.load %arg9[%c0_15, %c0_16] : memref<2x3xf32, #tpu.memory_space<vmem>>, vector<2x3xf32>
      tpu.vector_store %arg9[%c0_15, %c0_16], %23 {strides = array<i32>} : memref<2x3xf32, #tpu.memory_space<vmem>>, vector<2x3xf32>,
    } else {
    }
    %c0 = arith.constant 0 : index
    %c0_4 = arith.constant 0 : index
    %c0_5 = arith.constant 0 : index
    %c0_6 = arith.constant 0 : index
    %8 = vector.load %arg3[%c0, %c0_4, %c0_5, %c0_6] : memref<1x2x3x128xbf16, #tpu.memory_space<vmem>>, vector<1x2x3x128xbf16>
    %9 = vector.shape_cast %8 : vector<1x2x3x128xbf16> to vector<2x3x128xbf16>
    %10 = arith.extf %9 : vector<2x3x128xbf16> to vector<2x3x128xf32>
    %c0_7 = arith.constant 0 : index
    %c0_8 = arith.constant 0 : index
    %11 = vector.load %arg9[%c0_7, %c0_8] : memref<2x3xf32, #tpu.memory_space<vmem>>, vector<2x3xf32>
    %cst = arith.constant dense<0.000000e+00> : vector<2x3xf32>
    %12 = vector.multi_reduction <add>, %10, %cst [2] : vector<2x3x128xf32> to vector<2x3xf32>
    %13 = arith.addf %11, %12 : vector<2x3xf32>
    %c0_9 = arith.constant 0 : index
    %c0_10 = arith.constant 0 : index
    %14 = vector.load %arg9[%c0_9, %c0_10] : memref<2x3xf32, #tpu.memory_space<vmem>>, vector<2x3xf32>
    tpu.vector_store %arg9[%c0_9, %c0_10], %13 {strides = array<i32>} : memref<2x3xf32, #tpu.memory_space<vmem>>, vector<2x3xf32>,
    %c1_i32 = arith.constant 1 : i32
    %15 = arith.cmpi eq, %arg2, %c1_i32 : i32
    %16 = arith.extui %15 : i1 to i32
    %c0_i32_11 = arith.constant 0 : i32
    %17 = arith.cmpi ne, %16, %c0_i32_11 : i32
    scf.if %17 {
      %c0_14 = arith.constant 0 : index
      %c0_15 = arith.constant 0 : index
      %23 = vector.load %arg9[%c0_14, %c0_15] : memref<2x3xf32, #tpu.memory_space<vmem>>, vector<2x3xf32>
      %cst_16 = arith.constant 3.906250e-03 : f32
      %24 = vector.broadcast %cst_16 : f32 to vector<2x3xf32>
      %25 = arith.mulf %23, %24 : vector<2x3xf32>
      %c0_17 = arith.constant 0 : index
      %c0_18 = arith.constant 0 : index
      %26 = vector.load %arg5[%c0_17, %c0_18] : memref<1x1280xf32, #tpu.memory_space<vmem>>, vector<1x1280xf32>
      %27 = vector.extract_strided_slice %25 {offsets = [0, 0], sizes = [2, 1], strides = [1, 1]} : vector<2x3xf32> to vector<2x1xf32>
      %c0_19 = arith.constant 0 : index
      %c0_20 = arith.constant 0 : index
      %28 = vector.load %arg4[%c0_19, %c0_20] : memref<3x1280xf32, #tpu.memory_space<vmem>>, vector<1x1280xf32>
      %29 = vector.broadcast %27 : vector<2x1xf32> to vector<2x1280xf32>
      %30 = vector.broadcast %28 : vector<1x1280xf32> to vector<2x1280xf32>
      %31 = arith.mulf %29, %30 : vector<2x1280xf32>
      %32 = vector.broadcast %26 : vector<1x1280xf32> to vector<2x1280xf32>
      %33 = arith.addf %32, %31 : vector<2x1280xf32>
      %34 = vector.extract_strided_slice %25 {offsets = [0, 1], sizes = [2, 1], strides = [1, 1]} : vector<2x3xf32> to vector<2x1xf32>
      %c1 = arith.constant 1 : index
      %c0_21 = arith.constant 0 : index
      %35 = vector.load %arg4[%c1, %c0_21] : memref<3x1280xf32, #tpu.memory_space<vmem>>, vector<1x1280xf32>
      %36 = vector.broadcast %34 : vector<2x1xf32> to vector<2x1280xf32>
      %37 = vector.broadcast %35 : vector<1x1280xf32> to vector<2x1280xf32>
      %38 = arith.mulf %36, %37 : vector<2x1280xf32>
      %39 = arith.addf %33, %38 : vector<2x1280xf32>
      %40 = vector.extract_strided_slice %25 {offsets = [0, 2], sizes = [2, 1], strides = [1, 1]} : vector<2x3xf32> to vector<2x1xf32>
      %c2 = arith.constant 2 : index
      %c0_22 = arith.constant 0 : index
      %41 = vector.load %arg4[%c2, %c0_22] : memref<3x1280xf32, #tpu.memory_space<vmem>>, vector<1x1280xf32>
      %42 = vector.broadcast %40 : vector<2x1xf32> to vector<2x1280xf32>
      %43 = vector.broadcast %41 : vector<1x1280xf32> to vector<2x1280xf32>
      %44 = arith.mulf %42, %43 : vector<2x1280xf32>
      %45 = arith.addf %39, %44 : vector<2x1280xf32>
      %46 = arith.negf %45 : vector<2x1280xf32>
      %47 = math.exp %46 : vector<2x1280xf32>
      %cst_23 = arith.constant 1.000000e+00 : f32
      %48 = vector.broadcast %cst_23 : f32 to vector<2x1280xf32>
      %49 = arith.addf %48, %47 : vector<2x1280xf32>
      %50 = arith.divf %48, %49 : vector<2x1280xf32>
      %51 = arith.mulf %45, %50 : vector<2x1280xf32>
      %c0_24 = arith.constant 0 : index
      %c0_25 = arith.constant 0 : index
      %52 = vector.load %arg10[%c0_24, %c0_25] : memref<1x1280xf32, #tpu.memory_space<vmem>>, vector<1x1280xf32>
      %cst_26 = arith.constant dense<0.000000e+00> : vector<1280xf32>
      %53 = vector.multi_reduction <add>, %51, %cst_26 [0] : vector<2x1280xf32> to vector<1280xf32>
      %54 = vector.shape_cast %53 : vector<1280xf32> to vector<1x1280xf32>
      %55 = arith.addf %52, %54 : vector<1x1280xf32>
      %c0_27 = arith.constant 0 : index
      %c0_28 = arith.constant 0 : index
      %56 = vector.load %arg10[%c0_27, %c0_28] : memref<1x1280xf32, #tpu.memory_space<vmem>>, vector<1x1280xf32>
      tpu.vector_store %arg10[%c0_27, %c0_28], %55 {strides = array<i32>} : memref<1x1280xf32, #tpu.memory_space<vmem>>, vector<1x1280xf32>,
    } else {
    }
    %c3_i32 = arith.constant 3 : i32
    %18 = arith.cmpi eq, %arg1, %c3_i32 : i32
    %c1_i32_12 = arith.constant 1 : i32
    %19 = arith.cmpi eq, %arg2, %c1_i32_12 : i32
    %20 = arith.andi %18, %19 : i1
    %21 = arith.extui %20 : i1 to i32
    %c0_i32_13 = arith.constant 0 : i32
    %22 = arith.cmpi ne, %21, %c0_i32_13 : i32
    scf.if %22 {
      %c0_14 = arith.constant 0 : index
      %c0_15 = arith.constant 0 : index
      %23 = vector.load %arg10[%c0_14, %c0_15] : memref<1x1280xf32, #tpu.memory_space<vmem>>, vector<1x1280xf32>
      %cst_16 = arith.constant 1.250000e-01 : f32
      %24 = vector.broadcast %cst_16 : f32 to vector<1x1280xf32>
      %25 = arith.mulf %23, %24 : vector<1x1280xf32>
      %c0_17 = arith.constant 0 : index
      %c0_18 = arith.constant 0 : index
      %26 = vector.load %arg6[%c0_17, %c0_18] : memref<1280x768xf32, #tpu.memory_space<vmem>>, vector<1280x768xf32>
      %cst_19 = arith.constant dense<0.000000e+00> : vector<1x768xf32>
      %27 = tpu.matmul %25, %26, %cst_19 {dimension_numbers = #tpu.dot_dimension_numbers<[1], [0], [0], [1], [0, 0, 1, 1], [], []>} : vector<1x1280xf32>, vector<1280x768xf32>, vector<1x768xf32> -> vector<1x768xf32>
      %c0_20 = arith.constant 0 : index
      %c0_21 = arith.constant 0 : index
      %28 = vector.load %arg7[%c0_20, %c0_21] : memref<1x768xf32, #tpu.memory_space<vmem>>, vector<1x768xf32>
      %29 = arith.addf %27, %28 : vector<1x768xf32>
      %c0_22 = arith.constant 0 : index
      %c0_23 = arith.constant 0 : index
      %c0_24 = arith.constant 0 : index
      %30 = vector.load %arg8[%c0_22, %c0_23, %c0_24] : memref<1x1x768xf32, #tpu.memory_space<vmem>>, vector<1x1x768xf32>
      %31 = vector.shape_cast %30 : vector<1x1x768xf32> to vector<1x768xf32>
      %32 = vector.shape_cast %29 : vector<1x768xf32> to vector<1x1x768xf32>
      tpu.vector_store %arg8[%c0_22, %c0_23, %c0_24], %32 {strides = array<i32>} : memref<1x1x768xf32, #tpu.memory_space<vmem>>, vector<1x1x768xf32>,
    } else {
    }
    return
  }
  func.func @transform_0(%arg0: i32, %arg1: i32, %arg2: i32) -> (i32, i32, i32, i32) {
    %c0_i32 = arith.constant 0 : i32
    %c0_i32_0 = arith.constant 0 : i32
    return %arg0, %arg1, %c0_i32, %arg2 : i32, i32, i32, i32
  }
  func.func @transform_1(%arg0: i32, %arg1: i32, %arg2: i32) -> (i32, i32) {
    %c0_i32 = arith.constant 0 : i32
    %c0_i32_0 = arith.constant 0 : i32
    %c0_i32_1 = arith.constant 0 : i32
    return %c0_i32, %c0_i32_0 : i32, i32
  }
  func.func @transform_2(%arg0: i32, %arg1: i32, %arg2: i32) -> (i32, i32) {
    %c0_i32 = arith.constant 0 : i32
    %c0_i32_0 = arith.constant 0 : i32
    %c0_i32_1 = arith.constant 0 : i32
    return %c0_i32, %c0_i32_0 : i32, i32
  }
  func.func @transform_3(%arg0: i32, %arg1: i32, %arg2: i32) -> (i32, i32) {
    %c0_i32 = arith.constant 0 : i32
    %c0_i32_0 = arith.constant 0 : i32
    %c0_i32_1 = arith.constant 0 : i32
    return %c0_i32, %c0_i32_0 : i32, i32
  }
  func.func @transform_4(%arg0: i32, %arg1: i32, %arg2: i32) -> (i32, i32) {
    %c0_i32 = arith.constant 0 : i32
    %c0_i32_0 = arith.constant 0 : i32
    %c0_i32_1 = arith.constant 0 : i32
    return %c0_i32, %c0_i32_0 : i32, i32
  }
  func.func @transform_5(%arg0: i32, %arg1: i32, %arg2: i32) -> (i32, i32, i32) {
    %c0_i32 = arith.constant 0 : i32
    %c0_i32_0 = arith.constant 0 : i32
    %c0_i32_1 = arith.constant 0 : i32
    return %arg0, %c0_i32, %c0_i32_0 : i32, i32, i32
  }
}

</mosaic_0001>

<llo_original>
// kernel: tpu_custom_call.1
$region0: #{tpu_custom_call.1}
  #allocation0 [shape = 'u32[]', space=smem, size = 0x4, offset = 0x4, fixed_abs, tag = 'smem constant byte address 0x4 - core index']
  #allocation1 [shape = 'u32[144,128]{1,0:T(1,128)}', space=vmem, size = 0x12000, scoped, tag = 'internal scratch']
  #allocation2 [shape = 'f32[2,3]{1,0:T(2,128)}', space=vmem, size = 0x400, scoped, tag = 'scratch operand']
  #allocation3 [shape = 'f32[1,1280]{1,0:T(1,128)}', space=vmem, size = 0x1400, scoped, tag = 'scratch operand']
  %s0 = inlined_call_operand.vmem [shape: bf16[2,8,3,256], index: 0, kind: input, shape index: {}]
  %s1 = inlined_call_operand.hbm [shape: f32[3,1280], index: 1, kind: input, shape index: {}]
  %s2 = inlined_call_operand.hbm [shape: f32[1,1280], index: 2, kind: input, shape index: {}]
  %s3 = inlined_call_operand.hbm [shape: f32[1280,768], index: 3, kind: input, shape index: {}]
  %s4 = inlined_call_operand.hbm [shape: f32[1,768], index: 4, kind: input, shape index: {}]
  %s5 = inlined_call_operand.hbm [shape: f32[2,1,768], index: 5, kind: output, shape index: {}]
  %s6 = sld [smem:[#allocation0]]
  $region119: #{tpu_custom_call.1} parent=0
    _
  %s8 = ssub.s32 1, %s6
  %s9 = scalar_select 0, %s8, %s6
  $region1: #{tpu_custom_call.1} parent=0
    #allocation4 [shape = 'u8[4096]{0}', space=vmem, size = 0x1000, scoped, tag = 'input window, operand 0']
    #allocation5 [shape = 'u8[20480]{0}', space=vmem, size = 0x5000, scoped, tag = 'input window, operand 1, single buffered']
    #allocation6 [shape = 's32[2]{0}', space=sflag, size = 0x8, scoped, tag = 'scoped memory for tpu_custom_call.1']
    #allocation7 [shape = 's32[2]{0}', space=sflag, size = 0x8, scoped, tag = 'scoped memory for tpu_custom_call.1']
    #allocation8 [shape = 'u8[5120]{0}', space=vmem, size = 0x1400, scoped, tag = 'input window, operand 2, single buffered']
    #allocation9 [shape = 's32[1]{0}', space=sflag, size = 0x4, scoped, tag = 'scoped memory for tpu_custom_call.1']
    #allocation10 [shape = 'u8[3932160]{0}', space=vmem, size = 0x3c0000, scoped, tag = 'input window, operand 3, single buffered']
    #allocation11 [shape = 'u8[3072]{0}', space=vmem, size = 0xc00, scoped, tag = 'input window, operand 4, single buffered']
    #allocation12 [shape = 's32[1]{0}', space=sflag, size = 0x4, scoped, tag = 'scoped memory for tpu_custom_call.1']
    #allocation13 [shape = 'u8[6144]{0}', space=vmem, size = 0x1800, scoped, tag = 'output window, operand 0']
    %10 = vsyncpa [#allocation6], 0
    %11 = vsyncpa [#allocation9], 0
    %12 = vsyncpa [#allocation12], 0
    %13 = vsyncpa [#allocation7], 0
    %s14 = scalar_lea.sflag [#allocation7], 1
    %15 = vsyncpa %s14, 0
    loop: start=0, step=1, limit=18
    $region2: #{tpu_custom_call.1} parent=1 // loop_pre_header
      _
    $region3: #{tpu_custom_call.1} parent=1 // loop_header
      %s17 = sphi 0, %s21
      %p18 = scmp.ge.s32.totalorder %s17, 18
      %s24 = sphi 0, %s43
      %s25 = sphi 0, %s39
      %s26 = sphi 0, %s35
      %s27 = sphi 0, %s24
      %s28 = sphi 0, %s25
      %s29 = sphi 0, %s26
      %s30 = sphi 0, %s27
      %s31 = sphi 0, %s28
      %s32 = sphi 0, %s29
      %s50 = sphi 0, %s52
      %s53 = sphi 0, %s50
      %s54 = sphi 0, %s53
      %s70 = sphi 0, %s54
      %s74 = sphi 0, %s74
      %s76 = sphi 0, %s74
      %s77 = sphi 0, %s76
      %s91 = sphi 0, %s77
      %s95 = sphi 0, %s95
      %s97 = sphi 0, %s95
      %s98 = sphi 0, %s97
      %s112 = sphi 0, %s98
      %s116 = sphi 0, %s116
      %s118 = sphi 0, %s116
      %s119 = sphi 0, %s118
      %s133 = sphi 0, %s119
      %s137 = sphi 0, %s137
      %s139 = sphi 0, %s137
      %s140 = sphi 0, %s139
      %s154 = sphi 0, %s140
      %s160 = sphi 0, %s162
      %s163 = sphi 0, %s160
      %s164 = sphi 0, %s163
      %s180 = sphi 0, %s164
    $region4: #{tpu_custom_call.1} parent=1 // loop_header_branch
      %20 = sbr.rel (%p18) target = $region8
    $region5: #{tpu_custom_call.1} parent=1 // loop_body
      %s22 = ssub.s32 %s17, 1
      %s23 = ssub.s32 %s17, 2
      %s33 = sadd.s32 1, %s26
      %p34 = scmp.ge.s32.totalorder %s33, 2
      %s35 = scalar_select %p34, 0, %s33
      %s36 = sadd.s32 1, %s25
      %s37 = scalar_select %p34, %s36, %s25
      %p38 = scmp.ge.s32.totalorder %s37, 4
      %s39 = scalar_select %p38, 0, %s37
      %s40 = sadd.s32 1, %s24
      %s41 = scalar_select %p38, %s40, %s24
      %p42 = scmp.ge.s32.totalorder %s41, 2
      %s43 = scalar_select %p42, 0, %s41
      %s44 = ssub.s32 %s24, %s43
      %s45 = ssub.s32 %s25, %s39
      %s46 = sor.u32 %s44, %s45
      %s47 = ssub.s32 %s26, %s35
      %s48 = sor.u32 %s46, %s47
      %p49 = scmp.eq.s32.totalorder %s48, 0
      %s51 = sadd.s32 %s50, 1
      %s52 = scalar_select %p49, %s50, %s51
      %p55 = pneg %p49
      %p56 = scmp.eq.s32.totalorder %s17, 15
      %p57 = por %p55, %p56
      %p58 = scmp.ne.s32.totalorder %s50, %s53
      %p59 = scmp.eq.s32.totalorder %s17, 0
      %p60 = por %p58, %p59
      %p61 = scmp.ne.s32.totalorder %s50, %s53
      %p62 = scmp.eq.s32.totalorder %s22, 15
      %p63 = por %p61, %p62
      %p64 = scmp.ne.s32.totalorder %s53, %s54
      %p65 = scmp.eq.s32.totalorder %s22, 0
      %p66 = por %p64, %p65
      %p67 = scmp.ne.s32.totalorder %s53, %s54
      %p68 = scmp.eq.s32.totalorder %s23, 15
      %p69 = por %p67, %p68
      %p71 = scmp.ne.s32.totalorder %s54, %s70
      %p72 = scmp.eq.s32.totalorder %s23, 0
      %p73 = por %p71, %p72
      %s75 = sadd.s32 %s74, 1
      %p78 = scmp.eq.s32.totalorder %s17, 15
      %p79 = scmp.ne.s32.totalorder %s74, %s76
      %p80 = scmp.eq.s32.totalorder %s17, 0
      %p81 = por %p79, %p80
      %p82 = scmp.ne.s32.totalorder %s74, %s76
      %p83 = scmp.eq.s32.totalorder %s22, 15
      %p84 = por %p82, %p83
      %p85 = scmp.ne.s32.totalorder %s76, %s77
      %p86 = scmp.eq.s32.totalorder %s22, 0
      %p87 = por %p85, %p86
      %p88 = scmp.ne.s32.totalorder %s76, %s77
      %p89 = scmp.eq.s32.totalorder %s23, 15
      %p90 = por %p88, %p89
      %p92 = scmp.ne.s32.totalorder %s77, %s91
      %p93 = scmp.eq.s32.totalorder %s23, 0
      %p94 = por %p92, %p93
      %s96 = sadd.s32 %s95, 1
      %p99 = scmp.eq.s32.totalorder %s17, 15
      %p100 = scmp.ne.s32.totalorder %s95, %s97
      %p101 = scmp.eq.s32.totalorder %s17, 0
      %p102 = por %p100, %p101
      %p103 = scmp.ne.s32.totalorder %s95, %s97
      %p104 = scmp.eq.s32.totalorder %s22, 15
      %p105 = por %p103, %p104
      %p106 = scmp.ne.s32.totalorder %s97, %s98
      %p107 = scmp.eq.s32.totalorder %s22, 0
      %p108 = por %p106, %p107
      %p109 = scmp.ne.s32.totalorder %s97, %s98
      %p110 = scmp.eq.s32.totalorder %s23, 15
      %p111 = por %p109, %p110
      %p113 = scmp.ne.s32.totalorder %s98, %s112
      %p114 = scmp.eq.s32.totalorder %s23, 0
      %p115 = por %p113, %p114
      %s117 = sadd.s32 %s116, 1
      %p120 = scmp.eq.s32.totalorder %s17, 15
      %p121 = scmp.ne.s32.totalorder %s116, %s118
      %p122 = scmp.eq.s32.totalorder %s17, 0
      %p123 = por %p121, %p122
      %p124 = scmp.ne.s32.totalorder %s116, %s118
      %p125 = scmp.eq.s32.totalorder %s22, 15
      %p126 = por %p124, %p125
      %p127 = scmp.ne.s32.totalorder %s118, %s119
      %p128 = scmp.eq.s32.totalorder %s22, 0
      %p129 = por %p127, %p128
      %p130 = scmp.ne.s32.totalorder %s118, %s119
      %p131 = scmp.eq.s32.totalorder %s23, 15
      %p132 = por %p130, %p131
      %p134 = scmp.ne.s32.totalorder %s119, %s133
      %p135 = scmp.eq.s32.totalorder %s23, 0
      %p136 = por %p134, %p135
      %s138 = sadd.s32 %s137, 1
      %p141 = scmp.eq.s32.totalorder %s17, 15
      %p142 = scmp.ne.s32.totalorder %s137, %s139
      %p143 = scmp.eq.s32.totalorder %s17, 0
      %p144 = por %p142, %p143
      %p145 = scmp.ne.s32.totalorder %s137, %s139
      %p146 = scmp.eq.s32.totalorder %s22, 15
      %p147 = por %p145, %p146
      %p148 = scmp.ne.s32.totalorder %s139, %s140
      %p149 = scmp.eq.s32.totalorder %s22, 0
      %p150 = por %p148, %p149
      %p151 = scmp.ne.s32.totalorder %s139, %s140
      %p152 = scmp.eq.s32.totalorder %s23, 15
      %p153 = por %p151, %p152
      %p155 = scmp.ne.s32.totalorder %s140, %s154
      %p156 = scmp.eq.s32.totalorder %s23, 0
      %p157 = por %p155, %p156
      %s158 = ssub.s32 %s24, %s43
      %p159 = scmp.eq.s32.totalorder %s158, 0
      %s161 = sadd.s32 %s160, 1
      %s162 = scalar_select %p159, %s160, %s161
      %p165 = pneg %p159
      %p166 = scmp.eq.s32.totalorder %s17, 15
      %p167 = por %p165, %p166
      %p168 = scmp.ne.s32.totalorder %s160, %s163
      %p169 = scmp.eq.s32.totalorder %s17, 0
      %p170 = por %p168, %p169
      %p171 = scmp.ne.s32.totalorder %s160, %s163
      %p172 = scmp.eq.s32.totalorder %s22, 15
      %p173 = por %p171, %p172
      %p174 = scmp.ne.s32.totalorder %s163, %s164
      %p175 = scmp.eq.s32.totalorder %s22, 0
      %p176 = por %p174, %p175
      %p177 = scmp.ne.s32.totalorder %s163, %s164
      %p178 = scmp.eq.s32.totalorder %s23, 15
      %p179 = por %p177, %p178
      %p181 = scmp.ne.s32.totalorder %s164, %s180
      %p182 = scmp.eq.s32.totalorder %s23, 0
      %p183 = por %p181, %p182
      %p184 = scmp.le.s32.totalorder 1, %s17
      %p185 = scmp.lt.s32.totalorder %s17, 17
      %p186 = pnand %p184, %p185
      %p187 = pneg %p186
      // Predicated region
      $region9: #{tpu_custom_call.1} parent=5 // pred_check
        _
      $region10: #{tpu_custom_call.1} parent=5 // pred_check_branch
        %189 = sbr.rel (%p186) target = $region12
      $region11: #{tpu_custom_call.1} parent=5 // pred_region
        %s190 = ssub.s32 %s17, 1
        // Predicated region
        $region13: #{tpu_custom_call.1} parent=11 // pred_check
          %p191 = pneg %p87
        $region14: #{tpu_custom_call.1} parent=11 // pred_check_branch
          %193 = sbr.rel (%p191) target = $region16
        $region15: #{tpu_custom_call.1} parent=11 // pred_region
          %s195 = ssub.s32 640, 640
          %196 = vsyncadd [#allocation6], %s195
          %s198 = sshll.u32 [#allocation5], 4
          %s199 = int_to_ptr.vmem [resolvable:$true] %s198
          %201 = dma.hbm_to_vmem [thread:$0]  %s1, 640, %s199, [#allocation6]
        $region16: #{tpu_custom_call.1} parent=11 // pred_fallthru
          _
        // Predicated region
        $region17: #{tpu_custom_call.1} parent=11 // pred_check
          %p202 = pneg %p108
        $region18: #{tpu_custom_call.1} parent=11 // pred_check_branch
          %204 = sbr.rel (%p202) target = $region20
        $region19: #{tpu_custom_call.1} parent=11 // pred_region
          %s206 = ssub.s32 160, 160
          %207 = vsyncadd [#allocation9], %s206
          %s209 = sshll.u32 [#allocation8], 4
          %s210 = int_to_ptr.vmem [resolvable:$true] %s209
          %212 = dma.hbm_to_vmem [thread:$0]  %s2, 160, %s210, [#allocation9]
        $region20: #{tpu_custom_call.1} parent=11 // pred_fallthru
          _
        // Predicated region
        $region21: #{tpu_custom_call.1} parent=11 // pred_check
          %p213 = pneg %p129
        $region22: #{tpu_custom_call.1} parent=11 // pred_check_branch
          %215 = sbr.rel (%p213) target = $region24
        $region23: #{tpu_custom_call.1} parent=11 // pred_region
          %s217 = ssub.s32 122880, 122880
          %218 = vsyncadd [#allocation9], %s217
          %s219 = sshll.u32 [#allocation10], 4
          %s220 = int_to_ptr.vmem [resolvable:$true] %s219
          %225 = dma.hbm_to_vmem [thread:$0]  %s3, 122880, %s220, [#allocation9], 768, 768, 48
        $region24: #{tpu_custom_call.1} parent=11 // pred_fallthru
          _
        // Predicated region
        $region25: #{tpu_custom_call.1} parent=11 // pred_check
          %p226 = pneg %p150
        $region26: #{tpu_custom_call.1} parent=11 // pred_check_branch
          %228 = sbr.rel (%p226) target = $region28
        $region27: #{tpu_custom_call.1} parent=11 // pred_region
          %s230 = ssub.s32 96, 96
          %231 = vsyncadd [#allocation12], %s230
          %s233 = sshll.u32 [#allocation11], 4
          %s234 = int_to_ptr.vmem [resolvable:$true] %s233
          %236 = dma.hbm_to_vmem [thread:$0]  %s4, 96, %s234, [#allocation12]
        $region28: #{tpu_custom_call.1} parent=11 // pred_fallthru
          _
      $region12: #{tpu_custom_call.1} parent=5 // pred_fallthru
        _
      %p237 = scmp.lt.s32.totalorder %s17, 16
      // Predicated region
      $region29: #{tpu_custom_call.1} parent=5 // pred_check
        %p238 = pneg %p237
      $region30: #{tpu_custom_call.1} parent=5 // pred_check_branch
        %240 = sbr.rel (%p238) target = $region32
      $region31: #{tpu_custom_call.1} parent=5 // pred_region
        // Predicated region
        $region33: #{tpu_custom_call.1} parent=31 // pred_check
          %p241 = pneg %p60
        $region34: #{tpu_custom_call.1} parent=31 // pred_check_branch
          %243 = sbr.rel (%p241) target = $region36
        $region35: #{tpu_custom_call.1} parent=31 // pred_region
          %s244 = sand.u32 %s50, 1
          %s245 = sand.u32 %s50, 1
          %s246 = smul.addr %s245, 4
          %s247 = scalar_lea.vmem [#allocation4], %s246
          %s248 = smul.u32 2, %s25
          %s249 = smul.addr %s248, 2
          %s250 = sadd.s32 %s26, %s249
          %s251 = smul.addr %s24, 16
          %s252 = sadd.s32 %s250, %s251
          %s253 = smul.addr %s252, 2
          %s254 = scalar_lea.vmem %s0, %s253
          // Predicated region
          $region37: #{tpu_custom_call.1} parent=35 // pred_check
            _
          $region38: #{tpu_custom_call.1} parent=35 // pred_check_branch
            %256 = sbr.rel (0) target = $region40
          $region39: #{tpu_custom_call.1} parent=35 // pred_region
            // Predicated region
            $region41: #{tpu_custom_call.1} parent=39 // pred_check
              _
            $region42: #{tpu_custom_call.1} parent=39 // pred_check_branch
              %258 = sbr.rel target = $region44
            $region43: #{tpu_custom_call.1} parent=39 // pred_region
              // Predicated region
              $region56: #{tpu_custom_call.1} parent=43 // pred_check
                _
              $region57: #{tpu_custom_call.1} parent=43 // pred_check_branch
                %275 = sbr.rel (0) target = $region59
              $region58: #{tpu_custom_call.1} parent=43 // pred_region
                loop: start=0, step=1, limit=1
                $region60: #{tpu_custom_call.1} parent=58 // loop_pre_header
                  _
                $region61: #{tpu_custom_call.1} parent=58 // loop_header
                  %s278 = sphi 0, %s282
                  %p279 = scmp.ge.s32.totalorder %s278, 1
                  %s283 = sphi %s254, %s254
                  %s284 = sphi %s247, %s247
                $region62: #{tpu_custom_call.1} parent=58 // loop_header_branch
                  %281 = sbr.rel (%p279) target = $region66
                $region63: #{tpu_custom_call.1} parent=58 // loop_body
                  %v285 = vld [vmem:[%s283] sm:$0x3]
                  %286 = vst [vmem:[%s284] sm:$0x3] %v285
                  %v287 = vld [vmem:[%s283 + $0x4] sm:$0x3]
                  %288 = vst [vmem:[%s284 + $0x2] sm:$0x3] %v287
                $region64: #{tpu_custom_call.1} parent=58 // loop_footer
                  %s282 = sadd.s32 1, %s278
                $region65: #{tpu_custom_call.1} parent=58 // loop_footer_branch
                  %277 = sbr.rel target = $region61
                $region66: #{tpu_custom_call.1} parent=58 // loop_exit
                  _
              $region59: #{tpu_custom_call.1} parent=43 // pred_fallthru
                _
            $region44: #{tpu_custom_call.1} parent=39 // pred_fallthru
              _
            // Predicated region
            $region45: #{tpu_custom_call.1} parent=39 // pred_check
              _
            $region46: #{tpu_custom_call.1} parent=39 // pred_check_branch
              %260 = sbr.rel (0) target = $region48
            $region47: #{tpu_custom_call.1} parent=39 // pred_region
              loop: start=0, step=1, limit=1
              $region49: #{tpu_custom_call.1} parent=47 // loop_pre_header
                _
              $region50: #{tpu_custom_call.1} parent=47 // loop_header
                %s263 = sphi 0, %s267
                %p264 = scmp.ge.s32.totalorder %s263, 1
                %s268 = sphi %s254, %s254
                %s269 = sphi %s247, %s247
              $region51: #{tpu_custom_call.1} parent=47 // loop_header_branch
                %266 = sbr.rel (%p264) target = $region55
              $region52: #{tpu_custom_call.1} parent=47 // loop_body
                %v270 = vld [vmem:[%s268] sm:$0x3]
                %271 = vst [vmem:[%s269] sm:$0x3] %v270
                %v272 = vld [vmem:[%s268 + $0x4] sm:$0x3]
                %273 = vst [vmem:[%s269 + $0x2] sm:$0x3] %v272
              $region53: #{tpu_custom_call.1} parent=47 // loop_footer
                %s267 = sadd.s32 1, %s263
              $region54: #{tpu_custom_call.1} parent=47 // loop_footer_branch
                %262 = sbr.rel target = $region50
              $region55: #{tpu_custom_call.1} parent=47 // loop_exit
                _
            $region48: #{tpu_custom_call.1} parent=39 // pred_fallthru
              _
          $region40: #{tpu_custom_call.1} parent=35 // pred_fallthru
            _
          %289 = vnop
        $region36: #{tpu_custom_call.1} parent=31 // pred_fallthru
          _
      $region32: #{tpu_custom_call.1} parent=5 // pred_fallthru
        _
      %p290 = scmp.le.s32.totalorder 1, %s17
      %p291 = scmp.lt.s32.totalorder %s17, 17
      %p292 = pnand %p290, %p291
      %p293 = pneg %p292
      // Predicated region
      $region67: #{tpu_custom_call.1} parent=5 // pred_check
        _
      $region68: #{tpu_custom_call.1} parent=5 // pred_check_branch
        %295 = sbr.rel (%p292) target = $region70
      $region69: #{tpu_custom_call.1} parent=5 // pred_region
        %s296 = ssub.s32 %s17, 1
        %s297 = sand.u32 %s53, 1
        %s298 = sand.u32 %s53, 1
        %s299 = smul.addr %s298, 4
        %s300 = scalar_lea.vmem [#allocation4], %s299
        // Predicated region
        $region71: #{tpu_custom_call.1} parent=69 // pred_check
          %p301 = pneg %p66
        $region72: #{tpu_custom_call.1} parent=69 // pred_check_branch
          %303 = sbr.rel (%p301) target = $region74
        $region73: #{tpu_custom_call.1} parent=69 // pred_region
          _
        $region74: #{tpu_custom_call.1} parent=69 // pred_fallthru
          _
        // Predicated region
        $region75: #{tpu_custom_call.1} parent=69 // pred_check
          %p304 = pneg %p87
        $region76: #{tpu_custom_call.1} parent=69 // pred_check_branch
          %306 = sbr.rel (%p304) target = $region78
        $region77: #{tpu_custom_call.1} parent=69 // pred_region
          %307 = dma.done [#allocation6], 640
        $region78: #{tpu_custom_call.1} parent=69 // pred_fallthru
          _
        // Predicated region
        $region79: #{tpu_custom_call.1} parent=69 // pred_check
          %p308 = pneg %p108
        $region80: #{tpu_custom_call.1} parent=69 // pred_check_branch
          %310 = sbr.rel (%p308) target = $region82
        $region81: #{tpu_custom_call.1} parent=69 // pred_region
          %311 = dma.done [#allocation9], 160
        $region82: #{tpu_custom_call.1} parent=69 // pred_fallthru
          _
        // Predicated region
        $region83: #{tpu_custom_call.1} parent=69 // pred_check
          %p312 = pneg %p129
        $region84: #{tpu_custom_call.1} parent=69 // pred_check_branch
          %314 = sbr.rel (%p312) target = $region86
        $region85: #{tpu_custom_call.1} parent=69 // pred_region
          %315 = dma.done [#allocation9], 122880
        $region86: #{tpu_custom_call.1} parent=69 // pred_fallthru
          _
        // Predicated region
        $region87: #{tpu_custom_call.1} parent=69 // pred_check
          %p316 = pneg %p150
        $region88: #{tpu_custom_call.1} parent=69 // pred_check_branch
          %318 = sbr.rel (%p316) target = $region90
        $region89: #{tpu_custom_call.1} parent=69 // pred_region
          %319 = dma.done [#allocation12], 96
        $region90: #{tpu_custom_call.1} parent=69 // pred_fallthru
          _
        %s320 = sand.u32 %s53, 1
        %s321 = sand.u32 %s53, 1
        %s322 = smul.addr %s321, 4
        %s323 = scalar_lea.vmem [#allocation4], %s322
        %p324 = pneg %p66
        %p325 = pneg %p63
        %p326 = pneg %p87
        %p327 = pneg %p84
        %p328 = pneg %p108
        %p329 = pneg %p105
        %p330 = pneg %p129
        %p331 = pneg %p126
        %p332 = pneg %p150
        %p333 = pneg %p147
        %p334 = pneg %p176
        %p335 = pneg %p173
        %s336 = sand.u32 %s163, 1
        %s337 = scalar_lea.sflag [#allocation7], %s336
        %s338 = sand.u32 %s163, 1
        %s339 = smul.addr %s338, 6
        %s340 = scalar_lea.vmem [#allocation13], %s339
        %s341 = smul.u32 2, %s28
        %p342 = scmp.eq.s32.totalorder %s28, 0
        %p343 = scmp.eq.s32.totalorder %s29, 0
        %p344 = pnand %p342, %p343
        %p345 = pneg %p344
        // Predicated region
        $region91: #{tpu_custom_call.1} parent=69 // pred_check
          _
        $region92: #{tpu_custom_call.1} parent=69 // pred_check_branch
          %347 = sbr.rel (%p344) target = $region94
        $region93: #{tpu_custom_call.1} parent=69 // pred_region
          %348 = vst [vmem:[#allocation3] sm:$0xff] 0.0
          %v349 = vlaneseq
          %vm350 = vcmp.ge.s32.totalorder %v349, 0
          %vm351 = vcmp.lt.s32.totalorder %v349, 256
          %vm352 = vmand %vm350, %vm351
          %353 = vst.msk [vmem:[#allocation3 + $0x8] sm:$0x3] %vm352, 0.0
        $region94: #{tpu_custom_call.1} parent=69 // pred_fallthru
          _
        // Predicated region
        $region95: #{tpu_custom_call.1} parent=69 // pred_check
          %p354 = pneg %p343
        $region96: #{tpu_custom_call.1} parent=69 // pred_check_branch
          %356 = sbr.rel (%p354) target = $region98
        $region97: #{tpu_custom_call.1} parent=69 // pred_region
          %vm357 = vcmask 17408
          %358 = vst.msk [vmem:[#allocation2] sm:$0x3] %vm357, 0.0
        $region98: #{tpu_custom_call.1} parent=69 // pred_fallthru
          _
        %v359 = vld [vmem:[%s300] sm:$0x3]
        %v360 = vld [vmem:[%s300 + $0x2] sm:$0x3]
        %v361 = vunpack.c.l.bf16 %v359
        %v362 = vunpack.c.l.bf16 %v360
        %v363 = vld [vmem:[#allocation2] sm:$0x3]
        %vm364 = vcmask 1042432
        %v365 = vsel %vm364, %v361, 0.0
        %366 = vadd.xlane.f32.xlu0 %v365
        %v367 = vpop.xlane.xlu0 %366
        %v368 = vsel %vm364, %v362, 0.0
        %369 = vadd.xlane.f32.xlu0 %v368
        %v370 = vpop.xlane.xlu0 %369
        %v373 = vlaneseq
        %v374 = vand.u32 %v373, 127
        %v375 = vlaneseq
        %v376 = vshrl.u32 %v375, 7
        %v377 = vsub.s32 %v374, %v376
        %v378 = vrot.slane %v367, %v377
        %v379 = vlaneseq
        %v380 = vshrl.u32 %v379, 7
        %v381 = vsub.s32 %v374, %v380
        %v382 = vrot.slane %v370, %v381
        %vm383 = vcmask 1041409
        %v384 = vsel %vm383, %v382, %v378
        %v386 = vadd.f32 %v363, %v384
        %vm387 = vcmask 17408
        %388 = vst.msk [vmem:[#allocation2] sm:$0x3] %vm387, %v386
        %p389 = scmp.eq.s32.totalorder %s29, 1
        // Predicated region
        $region99: #{tpu_custom_call.1} parent=69 // pred_check
          %p390 = pneg %p389
        $region100: #{tpu_custom_call.1} parent=69 // pred_check_branch
          %392 = sbr.rel (%p390) target = $region102
        $region101: #{tpu_custom_call.1} parent=69 // pred_region
          %v393 = vld [vmem:[#allocation2] sm:$0x3]
          %v394 = vmul.f32 %v393, 0.00390625
          %v395 = vld [vmem:[#allocation8] sm:$0xff]
          %v396 = vld [vmem:[#allocation8 + $0x8] sm:$0x3]
          %v397 = vld [vmem:[#allocation5] ss:$4 sm:$0xff]
          %s398 = scalar_lea.vmem [#allocation5], 32
          %v399 = vld [vmem:[%s398] ss:$4 sm:$0x3]
          %401 = vset.pattern.permute.xlu0 0
          %402 = vperm.xlu0 %401, %v394
          %v403 = vpop.permute.xlu0 %402
          %v407 = vlaneseq
          %v408 = vshrl.u32 %v407, 7
          %v409 = vsub.s32 0, %v408
          %v410 = vrot.slane %v397, %v409
          %v411 = vlaneseq
          %v412 = vshrl.u32 %v411, 7
          %v413 = vsub.s32 1, %v412
          %v414 = vrot.slane %v397, %v413
          %v415 = vlaneseq
          %v416 = vshrl.u32 %v415, 7
          %v417 = vsub.s32 2, %v416
          %v418 = vrot.slane %v397, %v417
          %v419 = vlaneseq
          %v420 = vshrl.u32 %v419, 7
          %v421 = vsub.s32 3, %v420
          %v422 = vrot.slane %v397, %v421
          %v423 = vlaneseq
          %v424 = vshrl.u32 %v423, 7
          %v425 = vsub.s32 4, %v424
          %v426 = vrot.slane %v397, %v425
          %v427 = vlaneseq
          %v428 = vshrl.u32 %v427, 7
          %v429 = vsub.s32 5, %v428
          %v430 = vrot.slane %v397, %v429
          %v431 = vlaneseq
          %v432 = vshrl.u32 %v431, 7
          %v433 = vsub.s32 6, %v432
          %v434 = vrot.slane %v397, %v433
          %v435 = vlaneseq
          %v436 = vshrl.u32 %v435, 7
          %v437 = vsub.s32 7, %v436
          %v438 = vrot.slane %v397, %v437
          %v439 = vlaneseq
          %v440 = vshrl.u32 %v439, 7
          %v441 = vsub.s32 0, %v440
          %v442 = vrot.slane %v399, %v441
          %v443 = vlaneseq
          %v444 = vshrl.u32 %v443, 7
          %v445 = vsub.s32 1, %v444
          %v446 = vrot.slane %v399, %v445
          %v457 = vmul.f32 %v403, %v410
          %v458 = vmul.f32 %v403, %v414
          %v459 = vmul.f32 %v403, %v418
          %v460 = vmul.f32 %v403, %v422
          %v461 = vmul.f32 %v403, %v426
          %v462 = vmul.f32 %v403, %v430
          %v463 = vmul.f32 %v403, %v434
          %v464 = vmul.f32 %v403, %v438
          %v465 = vmul.f32 %v403, %v442
          %v466 = vmul.f32 %v403, %v446
          %v469 = vlaneseq
          %v470 = vshrl.u32 %v469, 7
          %v471 = vsub.s32 0, %v470
          %v472 = vrot.slane %v395, %v471
          %v473 = vlaneseq
          %v474 = vshrl.u32 %v473, 7
          %v475 = vsub.s32 1, %v474
          %v476 = vrot.slane %v395, %v475
          %v477 = vlaneseq
          %v478 = vshrl.u32 %v477, 7
          %v479 = vsub.s32 2, %v478
          %v480 = vrot.slane %v395, %v479
          %v481 = vlaneseq
          %v482 = vshrl.u32 %v481, 7
          %v483 = vsub.s32 3, %v482
          %v484 = vrot.slane %v395, %v483
          %v485 = vlaneseq
          %v486 = vshrl.u32 %v485, 7
          %v487 = vsub.s32 4, %v486
          %v488 = vrot.slane %v395, %v487
          %v489 = vlaneseq
          %v490 = vshrl.u32 %v489, 7
          %v491 = vsub.s32 5, %v490
          %v492 = vrot.slane %v395, %v491
          %v493 = vlaneseq
          %v494 = vshrl.u32 %v493, 7
          %v495 = vsub.s32 6, %v494
          %v496 = vrot.slane %v395, %v495
          %v497 = vlaneseq
          %v498 = vshrl.u32 %v497, 7
          %v499 = vsub.s32 7, %v498
          %v500 = vrot.slane %v395, %v499
          %v501 = vlaneseq
          %v502 = vshrl.u32 %v501, 7
          %v503 = vsub.s32 0, %v502
          %v504 = vrot.slane %v396, %v503
          %v505 = vlaneseq
          %v506 = vshrl.u32 %v505, 7
          %v507 = vsub.s32 1, %v506
          %v508 = vrot.slane %v396, %v507
          %v519 = vadd.f32 %v472, %v457
          %v520 = vadd.f32 %v476, %v458
          %v521 = vadd.f32 %v480, %v459
          %v522 = vadd.f32 %v484, %v460
          %v523 = vadd.f32 %v488, %v461
          %v524 = vadd.f32 %v492, %v462
          %v525 = vadd.f32 %v496, %v463
          %v526 = vadd.f32 %v500, %v464
          %v527 = vadd.f32 %v504, %v465
          %v528 = vadd.f32 %v508, %v466
          %s529 = scalar_lea.vmem [#allocation5], 1
          %v530 = vld [vmem:[%s529] ss:$4 sm:$0xff]
          %s531 = scalar_lea.vmem [#allocation5], 33
          %v532 = vld [vmem:[%s531] ss:$4 sm:$0x3]
          %533 = vset.pattern.permute.xlu0 1
          %534 = vperm.xlu0 %533, %v394
          %v535 = vpop.permute.xlu0 %534
          %v539 = vlaneseq
          %v540 = vshrl.u32 %v539, 7
          %v541 = vsub.s32 0, %v540
          %v542 = vrot.slane %v530, %v541
          %v543 = vlaneseq
          %v544 = vshrl.u32 %v543, 7
          %v545 = vsub.s32 1, %v544
          %v546 = vrot.slane %v530, %v545
          %v547 = vlaneseq
          %v548 = vshrl.u32 %v547, 7
          %v549 = vsub.s32 2, %v548
          %v550 = vrot.slane %v530, %v549
          %v551 = vlaneseq
          %v552 = vshrl.u32 %v551, 7
          %v553 = vsub.s32 3, %v552
          %v554 = vrot.slane %v530, %v553
          %v555 = vlaneseq
          %v556 = vshrl.u32 %v555, 7
          %v557 = vsub.s32 4, %v556
          %v558 = vrot.slane %v530, %v557
          %v559 = vlaneseq
          %v560 = vshrl.u32 %v559, 7
          %v561 = vsub.s32 5, %v560
          %v562 = vrot.slane %v530, %v561
          %v563 = vlaneseq
          %v564 = vshrl.u32 %v563, 7
          %v565 = vsub.s32 6, %v564
          %v566 = vrot.slane %v530, %v565
          %v567 = vlaneseq
          %v568 = vshrl.u32 %v567, 7
          %v569 = vsub.s32 7, %v568
          %v570 = vrot.slane %v530, %v569
          %v571 = vlaneseq
          %v572 = vshrl.u32 %v571, 7
          %v573 = vsub.s32 0, %v572
          %v574 = vrot.slane %v532, %v573
          %v575 = vlaneseq
          %v576 = vshrl.u32 %v575, 7
          %v577 = vsub.s32 1, %v576
          %v578 = vrot.slane %v532, %v577
          %v589 = vmul.f32 %v535, %v542
          %v590 = vmul.f32 %v535, %v546
          %v591 = vmul.f32 %v535, %v550
          %v592 = vmul.f32 %v535, %v554
          %v593 = vmul.f32 %v535, %v558
          %v594 = vmul.f32 %v535, %v562
          %v595 = vmul.f32 %v535, %v566
          %v596 = vmul.f32 %v535, %v570
          %v597 = vmul.f32 %v535, %v574
          %v598 = vmul.f32 %v535, %v578
          %v599 = vadd.f32 %v519, %v589
          %v600 = vadd.f32 %v520, %v590
          %v601 = vadd.f32 %v521, %v591
          %v602 = vadd.f32 %v522, %v592
          %v603 = vadd.f32 %v523, %v593
          %v604 = vadd.f32 %v524, %v594
          %v605 = vadd.f32 %v525, %v595
          %v606 = vadd.f32 %v526, %v596
          %v607 = vadd.f32 %v527, %v597
          %v608 = vadd.f32 %v528, %v598
          %s609 = scalar_lea.vmem [#allocation5], 2
          %v610 = vld [vmem:[%s609] ss:$4 sm:$0xff]
          %s611 = scalar_lea.vmem [#allocation5], 34
          %v612 = vld [vmem:[%s611] ss:$4 sm:$0x3]
          %613 = vset.pattern.permute.xlu0 2
          %614 = vperm.xlu0 %613, %v394
          %v615 = vpop.permute.xlu0 %614
          %v619 = vlaneseq
          %v620 = vshrl.u32 %v619, 7
          %v621 = vsub.s32 0, %v620
          %v622 = vrot.slane %v610, %v621
          %v623 = vlaneseq
          %v624 = vshrl.u32 %v623, 7
          %v625 = vsub.s32 1, %v624
          %v626 = vrot.slane %v610, %v625
          %v627 = vlaneseq
          %v628 = vshrl.u32 %v627, 7
          %v629 = vsub.s32 2, %v628
          %v630 = vrot.slane %v610, %v629
          %v631 = vlaneseq
          %v632 = vshrl.u32 %v631, 7
          %v633 = vsub.s32 3, %v632
          %v634 = vrot.slane %v610, %v633
          %v635 = vlaneseq
          %v636 = vshrl.u32 %v635, 7
          %v637 = vsub.s32 4, %v636
          %v638 = vrot.slane %v610, %v637
          %v639 = vlaneseq
          %v640 = vshrl.u32 %v639, 7
          %v641 = vsub.s32 5, %v640
          %v642 = vrot.slane %v610, %v641
          %v643 = vlaneseq
          %v644 = vshrl.u32 %v643, 7
          %v645 = vsub.s32 6, %v644
          %v646 = vrot.slane %v610, %v645
          %v647 = vlaneseq
          %v648 = vshrl.u32 %v647, 7
          %v649 = vsub.s32 7, %v648
          %v650 = vrot.slane %v610, %v649
          %v651 = vlaneseq
          %v652 = vshrl.u32 %v651, 7
          %v653 = vsub.s32 0, %v652
          %v654 = vrot.slane %v612, %v653
          %v655 = vlaneseq
          %v656 = vshrl.u32 %v655, 7
          %v657 = vsub.s32 1, %v656
          %v658 = vrot.slane %v612, %v657
          %v669 = vmul.f32 %v615, %v622
          %v670 = vmul.f32 %v615, %v626
          %v671 = vmul.f32 %v615, %v630
          %v672 = vmul.f32 %v615, %v634
          %v673 = vmul.f32 %v615, %v638
          %v674 = vmul.f32 %v615, %v642
          %v675 = vmul.f32 %v615, %v646
          %v676 = vmul.f32 %v615, %v650
          %v677 = vmul.f32 %v615, %v654
          %v678 = vmul.f32 %v615, %v658
          %v679 = vadd.f32 %v599, %v669
          %v680 = vadd.f32 %v600, %v670
          %v681 = vadd.f32 %v601, %v671
          %v682 = vadd.f32 %v602, %v672
          %v683 = vadd.f32 %v603, %v673
          %v684 = vadd.f32 %v604, %v674
          %v685 = vadd.f32 %v605, %v675
          %v686 = vadd.f32 %v606, %v676
          %v687 = vadd.f32 %v607, %v677
          %v688 = vadd.f32 %v608, %v678
          %v689 = vxor.u32 %v679, 2147483648
          %v690 = vxor.u32 %v680, 2147483648
          %v691 = vxor.u32 %v681, 2147483648
          %v692 = vxor.u32 %v682, 2147483648
          %v693 = vxor.u32 %v683, 2147483648
          %v694 = vxor.u32 %v684, 2147483648
          %v695 = vxor.u32 %v685, 2147483648
          %v696 = vxor.u32 %v686, 2147483648
          %v697 = vxor.u32 %v687, 2147483648
          %v698 = vxor.u32 %v688, 2147483648
          %v699 = vmul.f32 %v689, 1.442695
          %v700 = vpow.pop %v699
          %v701 = vmul.f32 %v690, 1.442695
          %v702 = vpow.pop %v701
          %v703 = vmul.f32 %v691, 1.442695
          %v704 = vpow.pop %v703
          %v705 = vmul.f32 %v692, 1.442695
          %v706 = vpow.pop %v705
          %v707 = vmul.f32 %v693, 1.442695
          %v708 = vpow.pop %v707
          %v709 = vmul.f32 %v694, 1.442695
          %v710 = vpow.pop %v709
          %v711 = vmul.f32 %v695, 1.442695
          %v712 = vpow.pop %v711
          %v713 = vmul.f32 %v696, 1.442695
          %v714 = vpow.pop %v713
          %v715 = vmul.f32 %v697, 1.442695
          %v716 = vpow.pop %v715
          %v717 = vmul.f32 %v698, 1.442695
          %v718 = vpow.pop %v717
          %v719 = vadd.f32 %v700, 1.0
          %v720 = vadd.f32 %v702, 1.0
          %v721 = vadd.f32 %v704, 1.0
          %v722 = vadd.f32 %v706, 1.0
          %v723 = vadd.f32 %v708, 1.0
          %v724 = vadd.f32 %v710, 1.0
          %v725 = vadd.f32 %v712, 1.0
          %v726 = vadd.f32 %v714, 1.0
          %v727 = vadd.f32 %v716, 1.0
          %v728 = vadd.f32 %v718, 1.0
          %v729 = vrcp.pop %v719
          %v730 = vmul.f32 1.0, %v729
          %v731 = vrcp.pop %v720
          %v732 = vmul.f32 1.0, %v731
          %v733 = vrcp.pop %v721
          %v734 = vmul.f32 1.0, %v733
          %v735 = vrcp.pop %v722
          %v736 = vmul.f32 1.0, %v735
          %v737 = vrcp.pop %v723
          %v738 = vmul.f32 1.0, %v737
          %v739 = vrcp.pop %v724
          %v740 = vmul.f32 1.0, %v739
          %v741 = vrcp.pop %v725
          %v742 = vmul.f32 1.0, %v741
          %v743 = vrcp.pop %v726
          %v744 = vmul.f32 1.0, %v743
          %v745 = vrcp.pop %v727
          %v746 = vmul.f32 1.0, %v745
          %v747 = vrcp.pop %v728
          %v748 = vmul.f32 1.0, %v747
          %v749 = vmul.f32 %v679, %v730
          %v750 = vmul.f32 %v680, %v732
          %v751 = vmul.f32 %v681, %v734
          %v752 = vmul.f32 %v682, %v736
          %v753 = vmul.f32 %v683, %v738
          %v754 = vmul.f32 %v684, %v740
          %v755 = vmul.f32 %v685, %v742
          %v756 = vmul.f32 %v686, %v744
          %v757 = vmul.f32 %v687, %v746
          %v758 = vmul.f32 %v688, %v748
          %v759 = vld [vmem:[#allocation3] sm:$0xff]
          %v760 = vld [vmem:[#allocation3 + $0x8] sm:$0x3]
          %vm761 = vcmask 1041408
          %v762 = vsel %vm761, %v749, 0.0
          %v763 = vrot.slane %v762, 4
          %v764 = vadd.f32 %v762, %v763
          %v765 = vrot.slane %v764, 2
          %v766 = vadd.f32 %v764, %v765
          %v767 = vrot.slane %v766, 1
          %v768 = vadd.f32 %v766, %v767
          %v769 = vsel %vm761, %v750, 0.0
          %v770 = vrot.slane %v769, 4
          %v771 = vadd.f32 %v769, %v770
          %v772 = vrot.slane %v771, 2
          %v773 = vadd.f32 %v771, %v772
          %v774 = vrot.slane %v773, 1
          %v775 = vadd.f32 %v773, %v774
          %v776 = vsel %vm761, %v751, 0.0
          %v777 = vrot.slane %v776, 4
          %v778 = vadd.f32 %v776, %v777
          %v779 = vrot.slane %v778, 2
          %v780 = vadd.f32 %v778, %v779
          %v781 = vrot.slane %v780, 1
          %v782 = vadd.f32 %v780, %v781
          %v783 = vsel %vm761, %v752, 0.0
          %v784 = vrot.slane %v783, 4
          %v785 = vadd.f32 %v783, %v784
          %v786 = vrot.slane %v785, 2
          %v787 = vadd.f32 %v785, %v786
          %v788 = vrot.slane %v787, 1
          %v789 = vadd.f32 %v787, %v788
          %v790 = vsel %vm761, %v753, 0.0
          %v791 = vrot.slane %v790, 4
          %v792 = vadd.f32 %v790, %v791
          %v793 = vrot.slane %v792, 2
          %v794 = vadd.f32 %v792, %v793
          %v795 = vrot.slane %v794, 1
          %v796 = vadd.f32 %v794, %v795
          %v797 = vsel %vm761, %v754, 0.0
          %v798 = vrot.slane %v797, 4
          %v799 = vadd.f32 %v797, %v798
          %v800 = vrot.slane %v799, 2
          %v801 = vadd.f32 %v799, %v800
          %v802 = vrot.slane %v801, 1
          %v803 = vadd.f32 %v801, %v802
          %v804 = vsel %vm761, %v755, 0.0
          %v805 = vrot.slane %v804, 4
          %v806 = vadd.f32 %v804, %v805
          %v807 = vrot.slane %v806, 2
          %v808 = vadd.f32 %v806, %v807
          %v809 = vrot.slane %v808, 1
          %v810 = vadd.f32 %v808, %v809
          %v811 = vsel %vm761, %v756, 0.0
          %v812 = vrot.slane %v811, 4
          %v813 = vadd.f32 %v811, %v812
          %v814 = vrot.slane %v813, 2
          %v815 = vadd.f32 %v813, %v814
          %v816 = vrot.slane %v815, 1
          %v817 = vadd.f32 %v815, %v816
          %v818 = vsel %vm761, %v757, 0.0
          %v819 = vrot.slane %v818, 4
          %v820 = vadd.f32 %v818, %v819
          %v821 = vrot.slane %v820, 2
          %v822 = vadd.f32 %v820, %v821
          %v823 = vrot.slane %v822, 1
          %v824 = vadd.f32 %v822, %v823
          %v825 = vsel %vm761, %v758, 0.0
          %v826 = vrot.slane %v825, 4
          %v827 = vadd.f32 %v825, %v826
          %v828 = vrot.slane %v827, 2
          %v829 = vadd.f32 %v827, %v828
          %v830 = vrot.slane %v829, 1
          %v831 = vadd.f32 %v829, %v830
          %v842 = vcombine.low %v768, %v775
          %v843 = vcombine.low %v782, %v789
          %v844 = vcombine.low %v796, %v803
          %v845 = vcombine.low %v810, %v817
          %v847 = vunpack.c.l.s4 1966171168
          %v848 = vunpack.c.0.s8 %v847
          %v849 = vlaneseq
          %v850 = vshrl.u32 %v849, 7
          %v851 = vsub.s32 %v848, %v850
          %v852 = vrot.slane %v842, %v851
          %v854 = vunpack.c.l.s4 1966171168
          %v855 = vunpack.c.0.s8 %v854
          %v856 = vlaneseq
          %v857 = vshrl.u32 %v856, 7
          %v858 = vsub.s32 %v855, %v857
          %v859 = vrot.slane %v843, %v858
          %v861 = vunpack.c.l.s4 1966171168
          %v862 = vunpack.c.0.s8 %v861
          %v863 = vlaneseq
          %v864 = vshrl.u32 %v863, 7
          %v865 = vsub.s32 %v862, %v864
          %v866 = vrot.slane %v844, %v865
          %v868 = vunpack.c.l.s4 1966171168
          %v869 = vunpack.c.0.s8 %v868
          %v870 = vlaneseq
          %v871 = vshrl.u32 %v870, 7
          %v872 = vsub.s32 %v869, %v871
          %v873 = vrot.slane %v845, %v872
          %v874 = vcombine.low %v852, %v859
          %v875 = vcombine.low %v866, %v873
          %v877 = vunpack.c.l.s4 1966171168
          %v878 = vunpack.c.0.s8 %v877
          %v879 = vlaneseq
          %v880 = vshrl.u32 %v879, 7
          %v881 = vsub.s32 %v878, %v880
          %v882 = vrot.slane %v874, %v881
          %v884 = vunpack.c.l.s4 1966171168
          %v885 = vunpack.c.0.s8 %v884
          %v886 = vlaneseq
          %v887 = vshrl.u32 %v886, 7
          %v888 = vsub.s32 %v885, %v887
          %v889 = vrot.slane %v875, %v888
          %v890 = vcombine.low %v882, %v889
          %v891 = vcombine.low %v824, %v831
          %v893 = vunpack.c.l.s4 1966171168
          %v894 = vunpack.c.0.s8 %v893
          %v895 = vlaneseq
          %v896 = vshrl.u32 %v895, 7
          %v897 = vsub.s32 %v894, %v896
          %v898 = vrot.slane %v891, %v897
          %v900 = vunpack.c.l.s4 1966171168
          %v901 = vunpack.c.0.s8 %v900
          %v902 = vlaneseq
          %v903 = vshrl.u32 %v902, 7
          %v904 = vsub.s32 %v901, %v903
          %v905 = vrot.slane %v898, %v904
          %v908 = vadd.f32 %v759, %v890
          %v909 = vadd.f32 %v760, %v905
          %910 = vst [vmem:[#allocation3] sm:$0xff] %v908
          %v911 = vlaneseq
          %vm912 = vcmp.ge.s32.totalorder %v911, 0
          %vm913 = vcmp.lt.s32.totalorder %v911, 256
          %vm914 = vmand %vm912, %vm913
          %915 = vst.msk [vmem:[#allocation3 + $0x8] sm:$0x3] %vm914, %v909
        $region102: #{tpu_custom_call.1} parent=69 // pred_fallthru
          _
        %p916 = scmp.eq.s32.totalorder %s28, 3
        %p917 = pnand %p916, %p389
        %p918 = pneg %p917
        // Predicated region
        $region103: #{tpu_custom_call.1} parent=69 // pred_check
          _
        $region104: #{tpu_custom_call.1} parent=69 // pred_check_branch
          %920 = sbr.rel (%p917) target = $region106
        $region105: #{tpu_custom_call.1} parent=69 // pred_region
          %v921 = vld [vmem:[#allocation3] sm:$0xff]
          %v922 = vld [vmem:[#allocation3 + $0x8] sm:$0x3]
          %v923 = vmul.f32 %v921, 0.125
          %v924 = vmul.f32 %v922, 0.125
          %v925 = vld [vmem:[#allocation10] sm:$0xff]
          %v926 = vld [vmem:[#allocation10 + $0x8] sm:$0xff]
          %v927 = vld [vmem:[#allocation10 + $0x10] sm:$0xff]
          %v928 = vld [vmem:[#allocation10 + $0x18] sm:$0xff]
          %v929 = vld [vmem:[#allocation10 + $0x20] sm:$0xff]
          %v930 = vld [vmem:[#allocation10 + $0x28] sm:$0xff]
          %v931 = vld [vmem:[#allocation10 + $0x30] sm:$0xff]
          %v932 = vld [vmem:[#allocation10 + $0x38] sm:$0xff]
          %v933 = vld [vmem:[#allocation10 + $0x40] sm:$0xff]
          %v934 = vld [vmem:[#allocation10 + $0x48] sm:$0xff]
          %v935 = vld [vmem:[#allocation10 + $0x50] sm:$0xff]
          %v936 = vld [vmem:[#allocation10 + $0x58] sm:$0xff]
          %v937 = vld [vmem:[#allocation10 + $0x60] sm:$0xff]
          %v938 = vld [vmem:[#allocation10 + $0x68] sm:$0xff]
          %v939 = vld [vmem:[#allocation10 + $0x70] sm:$0xff]
          %v940 = vld [vmem:[#allocation10 + $0x78] sm:$0xff]
          %v941 = vld [vmem:[#allocation10 + $0x80] sm:$0xff]
          %v942 = vld [vmem:[#allocation10 + $0x88] sm:$0xff]
          %v943 = vld [vmem:[#allocation10 + $0x90] sm:$0xff]
          %v944 = vld [vmem:[#allocation10 + $0x98] sm:$0xff]
          %v945 = vld [vmem:[#allocation10 + $0xa0] sm:$0xff]
          %v946 = vld [vmem:[#allocation10 + $0xa8] sm:$0xff]
          %v947 = vld [vmem:[#allocation10 + $0xb0] sm:$0xff]
          %v948 = vld [vmem:[#allocation10 + $0xb8] sm:$0xff]
          %v949 = vld [vmem:[#allocation10 + $0xc0] sm:$0xff]
          %v950 = vld [vmem:[#allocation10 + $0xc8] sm:$0xff]
          %v951 = vld [vmem:[#allocation10 + $0xd0] sm:$0xff]
          %v952 = vld [vmem:[#allocation10 + $0xd8] sm:$0xff]
          %v953 = vld [vmem:[#allocation10 + $0xe0] sm:$0xff]
          %v954 = vld [vmem:[#allocation10 + $0xe8] sm:$0xff]
          %v955 = vld [vmem:[#allocation10 + $0xf0] sm:$0xff]
          %v956 = vld [vmem:[#allocation10 + $0xf8] sm:$0xff]
          %v957 = vld [vmem:[#allocation10 + $0x100] sm:$0xff]
          %v958 = vld [vmem:[#allocation10 + $0x108] sm:$0xff]
          %v959 = vld [vmem:[#allocation10 + $0x110] sm:$0xff]
          %v960 = vld [vmem:[#allocation10 + $0x118] sm:$0xff]
          %v961 = vld [vmem:[#allocation10 + $0x120] sm:$0xff]
          %v962 = vld [vmem:[#allocation10 + $0x128] sm:$0xff]
          %v963 = vld [vmem:[#allocation10 + $0x130] sm:$0xff]
          %v964 = vld [vmem:[#allocation10 + $0x138] sm:$0xff]
          %v965 = vld [vmem:[#allocation10 + $0x140] sm:$0xff]
          %v966 = vld [vmem:[#allocation10 + $0x148] sm:$0xff]
          %v967 = vld [vmem:[#allocation10 + $0x150] sm:$0xff]
          %v968 = vld [vmem:[#allocation10 + $0x158] sm:$0xff]
          %v969 = vld [vmem:[#allocation10 + $0x160] sm:$0xff]
          %v970 = vld [vmem:[#allocation10 + $0x168] sm:$0xff]
          %v971 = vld [vmem:[#allocation10 + $0x170] sm:$0xff]
          %v972 = vld [vmem:[#allocation10 + $0x178] sm:$0xff]
          %v973 = vld [vmem:[#allocation10 + $0x180] sm:$0xff]
          %v974 = vld [vmem:[#allocation10 + $0x188] sm:$0xff]
          %v975 = vld [vmem:[#allocation10 + $0x190] sm:$0xff]
          %v976 = vld [vmem:[#allocation10 + $0x198] sm:$0xff]
          %v977 = vld [vmem:[#allocation10 + $0x1a0] sm:$0xff]
          %v978 = vld [vmem:[#allocation10 + $0x1a8] sm:$0xff]
          %v979 = vld [vmem:[#allocation10 + $0x1b0] sm:$0xff]
          %v980 = vld [vmem:[#allocation10 + $0x1b8] sm:$0xff]
          %v981 = vld [vmem:[#allocation10 + $0x1c0] sm:$0xff]
          %v982 = vld [vmem:[#allocation10 + $0x1c8] sm:$0xff]
          %v983 = vld [vmem:[#allocation10 + $0x1d0] sm:$0xff]
          %v984 = vld [vmem:[#allocation10 + $0x1d8] sm:$0xff]
          %v985 = vld [vmem:[#allocation10 + $0x1e0] sm:$0xff]
          %v986 = vld [vmem:[#allocation10 + $0x1e8] sm:$0xff]
          %v987 = vld [vmem:[#allocation10 + $0x1f0] sm:$0xff]
          %v988 = vld [vmem:[#allocation10 + $0x1f8] sm:$0xff]
          %v989 = vld [vmem:[#allocation10 + $0x200] sm:$0xff]
          %v990 = vld [vmem:[#allocation10 + $0x208] sm:$0xff]
          %v991 = vld [vmem:[#allocation10 + $0x210] sm:$0xff]
          %v992 = vld [vmem:[#allocation10 + $0x218] sm:$0xff]
          %v993 = vld [vmem:[#allocation10 + $0x220] sm:$0xff]
          %v994 = vld [vmem:[#allocation10 + $0x228] sm:$0xff]
          %v995 = vld [vmem:[#allocation10 + $0x230] sm:$0xff]
          %v996 = vld [vmem:[#allocation10 + $0x238] sm:$0xff]
          %v997 = vld [vmem:[#allocation10 + $0x240] sm:$0xff]
          %v998 = vld [vmem:[#allocation10 + $0x248] sm:$0xff]
          %v999 = vld [vmem:[#allocation10 + $0x250] sm:$0xff]
          %v1000 = vld [vmem:[#allocation10 + $0x258] sm:$0xff]
          %v1001 = vld [vmem:[#allocation10 + $0x260] sm:$0xff]
          %v1002 = vld [vmem:[#allocation10 + $0x268] sm:$0xff]
          %v1003 = vld [vmem:[#allocation10 + $0x270] sm:$0xff]
          %v1004 = vld [vmem:[#allocation10 + $0x278] sm:$0xff]
          %v1005 = vld [vmem:[#allocation10 + $0x280] sm:$0xff]
          %v1006 = vld [vmem:[#allocation10 + $0x288] sm:$0xff]
          %v1007 = vld [vmem:[#allocation10 + $0x290] sm:$0xff]
          %v1008 = vld [vmem:[#allocation10 + $0x298] sm:$0xff]
          %v1009 = vld [vmem:[#allocation10 + $0x2a0] sm:$0xff]
          %v1010 = vld [vmem:[#allocation10 + $0x2a8] sm:$0xff]
          %v1011 = vld [vmem:[#allocation10 + $0x2b0] sm:$0xff]
          %v1012 = vld [vmem:[#allocation10 + $0x2b8] sm:$0xff]
          %v1013 = vld [vmem:[#allocation10 + $0x2c0] sm:$0xff]
          %v1014 = vld [vmem:[#allocation10 + $0x2c8] sm:$0xff]
          %v1015 = vld [vmem:[#allocation10 + $0x2d0] sm:$0xff]
          %v1016 = vld [vmem:[#allocation10 + $0x2d8] sm:$0xff]
          %v1017 = vld [vmem:[#allocation10 + $0x2e0] sm:$0xff]
          %v1018 = vld [vmem:[#allocation10 + $0x2e8] sm:$0xff]
          %v1019 = vld [vmem:[#allocation10 + $0x2f0] sm:$0xff]
          %v1020 = vld [vmem:[#allocation10 + $0x2f8] sm:$0xff]
          %v1021 = vld [vmem:[#allocation10 + $0x300] sm:$0xff]
          %v1022 = vld [vmem:[#allocation10 + $0x308] sm:$0xff]
          %v1023 = vld [vmem:[#allocation10 + $0x310] sm:$0xff]
          %v1024 = vld [vmem:[#allocation10 + $0x318] sm:$0xff]
          %v1025 = vld [vmem:[#allocation10 + $0x320] sm:$0xff]
          %v1026 = vld [vmem:[#allocation10 + $0x328] sm:$0xff]
          %v1027 = vld [vmem:[#allocation10 + $0x330] sm:$0xff]
          %v1028 = vld [vmem:[#allocation10 + $0x338] sm:$0xff]
          %v1029 = vld [vmem:[#allocation10 + $0x340] sm:$0xff]
          %v1030 = vld [vmem:[#allocation10 + $0x348] sm:$0xff]
          %v1031 = vld [vmem:[#allocation10 + $0x350] sm:$0xff]
          %v1032 = vld [vmem:[#allocation10 + $0x358] sm:$0xff]
          %v1033 = vld [vmem:[#allocation10 + $0x360] sm:$0xff]
          %v1034 = vld [vmem:[#allocation10 + $0x368] sm:$0xff]
          %v1035 = vld [vmem:[#allocation10 + $0x370] sm:$0xff]
          %v1036 = vld [vmem:[#allocation10 + $0x378] sm:$0xff]
          %v1037 = vld [vmem:[#allocation10 + $0x380] sm:$0xff]
          %v1038 = vld [vmem:[#allocation10 + $0x388] sm:$0xff]
          %v1039 = vld [vmem:[#allocation10 + $0x390] sm:$0xff]
          %v1040 = vld [vmem:[#allocation10 + $0x398] sm:$0xff]
          %v1041 = vld [vmem:[#allocation10 + $0x3a0] sm:$0xff]
          %v1042 = vld [vmem:[#allocation10 + $0x3a8] sm:$0xff]
          %v1043 = vld [vmem:[#allocation10 + $0x3b0] sm:$0xff]
          %v1044 = vld [vmem:[#allocation10 + $0x3b8] sm:$0xff]
          %v1045 = vld [vmem:[#allocation10 + $0x3c0] sm:$0xff]
          %v1046 = vld [vmem:[#allocation10 + $0x3c8] sm:$0xff]
          %v1047 = vld [vmem:[#allocation10 + $0x3d0] sm:$0xff]
          %v1048 = vld [vmem:[#allocation10 + $0x3d8] sm:$0xff]
          %v1049 = vld [vmem:[#allocation10 + $0x3e0] sm:$0xff]
          %v1050 = vld [vmem:[#allocation10 + $0x3e8] sm:$0xff]
          %v1051 = vld [vmem:[#allocation10 + $0x3f0] sm:$0xff]
          %v1052 = vld [vmem:[#allocation10 + $0x3f8] sm:$0xff]
          %v1053 = vld [vmem:[#allocation10 + $0x400] sm:$0xff]
          %v1054 = vld [vmem:[#allocation10 + $0x408] sm:$0xff]
          %v1055 = vld [vmem:[#allocation10 + $0x410] sm:$0xff]
          %v1056 = vld [vmem:[#allocation10 + $0x418] sm:$0xff]
          %v1057 = vld [vmem:[#allocation10 + $0x420] sm:$0xff]
          %v1058 = vld [vmem:[#allocation10 + $0x428] sm:$0xff]
          %v1059 = vld [vmem:[#allocation10 + $0x430] sm:$0xff]
          %v1060 = vld [vmem:[#allocation10 + $0x438] sm:$0xff]
          %v1061 = vld [vmem:[#allocation10 + $0x440] sm:$0xff]
          %v1062 = vld [vmem:[#allocation10 + $0x448] sm:$0xff]
          %v1063 = vld [vmem:[#allocation10 + $0x450] sm:$0xff]
          %v1064 = vld [vmem:[#allocation10 + $0x458] sm:$0xff]
          %v1065 = vld [vmem:[#allocation10 + $0x460] sm:$0xff]
          %v1066 = vld [vmem:[#allocation10 + $0x468] sm:$0xff]
          %v1067 = vld [vmem:[#allocation10 + $0x470] sm:$0xff]
          %v1068 = vld [vmem:[#allocation10 + $0x478] sm:$0xff]
          %v1069 = vld [vmem:[#allocation10 + $0x480] sm:$0xff]
          %v1070 = vld [vmem:[#allocation10 + $0x488] sm:$0xff]
          %v1071 = vld [vmem:[#allocation10 + $0x490] sm:$0xff]
          %v1072 = vld [vmem:[#allocation10 + $0x498] sm:$0xff]
          %v1073 = vld [vmem:[#allocation10 + $0x4a0] sm:$0xff]
          %v1074 = vld [vmem:[#allocation10 + $0x4a8] sm:$0xff]
          %v1075 = vld [vmem:[#allocation10 + $0x4b0] sm:$0xff]
          %v1076 = vld [vmem:[#allocation10 + $0x4b8] sm:$0xff]
          %v1077 = vld [vmem:[#allocation10 + $0x4c0] sm:$0xff]
          %v1078 = vld [vmem:[#allocation10 + $0x4c8] sm:$0xff]
          %v1079 = vld [vmem:[#allocation10 + $0x4d0] sm:$0xff]
          %v1080 = vld [vmem:[#allocation10 + $0x4d8] sm:$0xff]
          %v1081 = vld [vmem:[#allocation10 + $0x4e0] sm:$0xff]
          %v1082 = vld [vmem:[#allocation10 + $0x4e8] sm:$0xff]
          %v1083 = vld [vmem:[#allocation10 + $0x4f0] sm:$0xff]
          %v1084 = vld [vmem:[#allocation10 + $0x4f8] sm:$0xff]
          %v1085 = vld [vmem:[#allocation10 + $0x500] sm:$0xff]
          %v1086 = vld [vmem:[#allocation10 + $0x508] sm:$0xff]
          %v1087 = vld [vmem:[#allocation10 + $0x510] sm:$0xff]
          %v1088 = vld [vmem:[#allocation10 + $0x518] sm:$0xff]
          %v1089 = vld [vmem:[#allocation10 + $0x520] sm:$0xff]
          %v1090 = vld [vmem:[#allocation10 + $0x528] sm:$0xff]
          %v1091 = vld [vmem:[#allocation10 + $0x530] sm:$0xff]
          %v1092 = vld [vmem:[#allocation10 + $0x538] sm:$0xff]
          %v1093 = vld [vmem:[#allocation10 + $0x540] sm:$0xff]
          %v1094 = vld [vmem:[#allocation10 + $0x548] sm:$0xff]
          %v1095 = vld [vmem:[#allocation10 + $0x550] sm:$0xff]
          %v1096 = vld [vmem:[#allocation10 + $0x558] sm:$0xff]
          %v1097 = vld [vmem:[#allocation10 + $0x560] sm:$0xff]
          %v1098 = vld [vmem:[#allocation10 + $0x568] sm:$0xff]
          %v1099 = vld [vmem:[#allocation10 + $0x570] sm:$0xff]
          %v1100 = vld [vmem:[#allocation10 + $0x578] sm:$0xff]
          %v1101 = vld [vmem:[#allocation10 + $0x580] sm:$0xff]
          %v1102 = vld [vmem:[#allocation10 + $0x588] sm:$0xff]
          %v1103 = vld [vmem:[#allocation10 + $0x590] sm:$0xff]
          %v1104 = vld [vmem:[#allocation10 + $0x598] sm:$0xff]
          %v1105 = vld [vmem:[#allocation10 + $0x5a0] sm:$0xff]
          %v1106 = vld [vmem:[#allocation10 + $0x5a8] sm:$0xff]
          %v1107 = vld [vmem:[#allocation10 + $0x5b0] sm:$0xff]
          %v1108 = vld [vmem:[#allocation10 + $0x5b8] sm:$0xff]
          %v1109 = vld [vmem:[#allocation10 + $0x5c0] sm:$0xff]
          %v1110 = vld [vmem:[#allocation10 + $0x5c8] sm:$0xff]
          %v1111 = vld [vmem:[#allocation10 + $0x5d0] sm:$0xff]
          %v1112 = vld [vmem:[#allocation10 + $0x5d8] sm:$0xff]
          %v1113 = vld [vmem:[#allocation10 + $0x5e0] sm:$0xff]
          %v1114 = vld [vmem:[#allocation10 + $0x5e8] sm:$0xff]
          %v1115 = vld [vmem:[#allocation10 + $0x5f0] sm:$0xff]
          %v1116 = vld [vmem:[#allocation10 + $0x5f8] sm:$0xff]
          %v1117 = vld [vmem:[#allocation10 + $0x600] sm:$0xff]
          %v1118 = vld [vmem:[#allocation10 + $0x608] sm:$0xff]
          %v1119 = vld [vmem:[#allocation10 + $0x610] sm:$0xff]
          %v1120 = vld [vmem:[#allocation10 + $0x618] sm:$0xff]
          %v1121 = vld [vmem:[#allocation10 + $0x620] sm:$0xff]
          %v1122 = vld [vmem:[#allocation10 + $0x628] sm:$0xff]
          %v1123 = vld [vmem:[#allocation10 + $0x630] sm:$0xff]
          %v1124 = vld [vmem:[#allocation10 + $0x638] sm:$0xff]
          %v1125 = vld [vmem:[#allocation10 + $0x640] sm:$0xff]
          %v1126 = vld [vmem:[#allocation10 + $0x648] sm:$0xff]
          %v1127 = vld [vmem:[#allocation10 + $0x650] sm:$0xff]
          %v1128 = vld [vmem:[#allocation10 + $0x658] sm:$0xff]
          %v1129 = vld [vmem:[#allocation10 + $0x660] sm:$0xff]
          %v1130 = vld [vmem:[#allocation10 + $0x668] sm:$0xff]
          %v1131 = vld [vmem:[#allocation10 + $0x670] sm:$0xff]
          %v1132 = vld [vmem:[#allocation10 + $0x678] sm:$0xff]
          %v1133 = vld [vmem:[#allocation10 + $0x680] sm:$0xff]
          %v1134 = vld [vmem:[#allocation10 + $0x688] sm:$0xff]
          %v1135 = vld [vmem:[#allocation10 + $0x690] sm:$0xff]
          %v1136 = vld [vmem:[#allocation10 + $0x698] sm:$0xff]
          %v1137 = vld [vmem:[#allocation10 + $0x6a0] sm:$0xff]
          %v1138 = vld [vmem:[#allocation10 + $0x6a8] sm:$0xff]
          %v1139 = vld [vmem:[#allocation10 + $0x6b0] sm:$0xff]
          %v1140 = vld [vmem:[#allocation10 + $0x6b8] sm:$0xff]
          %v1141 = vld [vmem:[#allocation10 + $0x6c0] sm:$0xff]
          %v1142 = vld [vmem:[#allocation10 + $0x6c8] sm:$0xff]
          %v1143 = vld [vmem:[#allocation10 + $0x6d0] sm:$0xff]
          %v1144 = vld [vmem:[#allocation10 + $0x6d8] sm:$0xff]
          %v1145 = vld [vmem:[#allocation10 + $0x6e0] sm:$0xff]
          %v1146 = vld [vmem:[#allocation10 + $0x6e8] sm:$0xff]
          %v1147 = vld [vmem:[#allocation10 + $0x6f0] sm:$0xff]
          %v1148 = vld [vmem:[#allocation10 + $0x6f8] sm:$0xff]
          %v1149 = vld [vmem:[#allocation10 + $0x700] sm:$0xff]
          %v1150 = vld [vmem:[#allocation10 + $0x708] sm:$0xff]
          %v1151 = vld [vmem:[#allocation10 + $0x710] sm:$0xff]
          %v1152 = vld [vmem:[#allocation10 + $0x718] sm:$0xff]
          %v1153 = vld [vmem:[#allocation10 + $0x720] sm:$0xff]
          %v1154 = vld [vmem:[#allocation10 + $0x728] sm:$0xff]
          %v1155 = vld [vmem:[#allocation10 + $0x730] sm:$0xff]
          %v1156 = vld [vmem:[#allocation10 + $0x738] sm:$0xff]
          %v1157 = vld [vmem:[#allocation10 + $0x740] sm:$0xff]
          %v1158 = vld [vmem:[#allocation10 + $0x748] sm:$0xff]
          %v1159 = vld [vmem:[#allocation10 + $0x750] sm:$0xff]
          %v1160 = vld [vmem:[#allocation10 + $0x758] sm:$0xff]
          %v1161 = vld [vmem:[#allocation10 + $0x760] sm:$0xff]
          %v1162 = vld [vmem:[#allocation10 + $0x768] sm:$0xff]
          %v1163 = vld [vmem:[#allocation10 + $0x770] sm:$0xff]
          %v1164 = vld [vmem:[#allocation10 + $0x778] sm:$0xff]
          %v1165 = vld [vmem:[#allocation10 + $0x780] sm:$0xff]
          %v1166 = vld [vmem:[#allocation10 + $0x788] sm:$0xff]
          %v1167 = vld [vmem:[#allocation10 + $0x790] sm:$0xff]
          %v1168 = vld [vmem:[#allocation10 + $0x798] sm:$0xff]
          %v1169 = vld [vmem:[#allocation10 + $0x7a0] sm:$0xff]
          %v1170 = vld [vmem:[#allocation10 + $0x7a8] sm:$0xff]
          %v1171 = vld [vmem:[#allocation10 + $0x7b0] sm:$0xff]
          %v1172 = vld [vmem:[#allocation10 + $0x7b8] sm:$0xff]
          %v1173 = vld [vmem:[#allocation10 + $0x7c0] sm:$0xff]
          %v1174 = vld [vmem:[#allocation10 + $0x7c8] sm:$0xff]
          %v1175 = vld [vmem:[#allocation10 + $0x7d0] sm:$0xff]
          %v1176 = vld [vmem:[#allocation10 + $0x7d8] sm:$0xff]
          %v1177 = vld [vmem:[#allocation10 + $0x7e0] sm:$0xff]
          %v1178 = vld [vmem:[#allocation10 + $0x7e8] sm:$0xff]
          %v1179 = vld [vmem:[#allocation10 + $0x7f0] sm:$0xff]
          %v1180 = vld [vmem:[#allocation10 + $0x7f8] sm:$0xff]
          %v1181 = vld [vmem:[#allocation10 + $0x800] sm:$0xff]
          %v1182 = vld [vmem:[#allocation10 + $0x808] sm:$0xff]
          %v1183 = vld [vmem:[#allocation10 + $0x810] sm:$0xff]
          %v1184 = vld [vmem:[#allocation10 + $0x818] sm:$0xff]
          %v1185 = vld [vmem:[#allocation10 + $0x820] sm:$0xff]
          %v1186 = vld [vmem:[#allocation10 + $0x828] sm:$0xff]
          %v1187 = vld [vmem:[#allocation10 + $0x830] sm:$0xff]
          %v1188 = vld [vmem:[#allocation10 + $0x838] sm:$0xff]
          %v1189 = vld [vmem:[#allocation10 + $0x840] sm:$0xff]
          %v1190 = vld [vmem:[#allocation10 + $0x848] sm:$0xff]
          %v1191 = vld [vmem:[#allocation10 + $0x850] sm:$0xff]
          %v1192 = vld [vmem:[#allocation10 + $0x858] sm:$0xff]
          %v1193 = vld [vmem:[#allocation10 + $0x860] sm:$0xff]
          %v1194 = vld [vmem:[#allocation10 + $0x868] sm:$0xff]
          %v1195 = vld [vmem:[#allocation10 + $0x870] sm:$0xff]
          %v1196 = vld [vmem:[#allocation10 + $0x878] sm:$0xff]
          %v1197 = vld [vmem:[#allocation10 + $0x880] sm:$0xff]
          %v1198 = vld [vmem:[#allocation10 + $0x888] sm:$0xff]
          %v1199 = vld [vmem:[#allocation10 + $0x890] sm:$0xff]
          %v1200 = vld [vmem:[#allocation10 + $0x898] sm:$0xff]
          %v1201 = vld [vmem:[#allocation10 + $0x8a0] sm:$0xff]
          %v1202 = vld [vmem:[#allocation10 + $0x8a8] sm:$0xff]
          %v1203 = vld [vmem:[#allocation10 + $0x8b0] sm:$0xff]
          %v1204 = vld [vmem:[#allocation10 + $0x8b8] sm:$0xff]
          %v1205 = vld [vmem:[#allocation10 + $0x8c0] sm:$0xff]
          %v1206 = vld [vmem:[#allocation10 + $0x8c8] sm:$0xff]
          %v1207 = vld [vmem:[#allocation10 + $0x8d0] sm:$0xff]
          %v1208 = vld [vmem:[#allocation10 + $0x8d8] sm:$0xff]
          %v1209 = vld [vmem:[#allocation10 + $0x8e0] sm:$0xff]
          %v1210 = vld [vmem:[#allocation10 + $0x8e8] sm:$0xff]
          %v1211 = vld [vmem:[#allocation10 + $0x8f0] sm:$0xff]
          %v1212 = vld [vmem:[#allocation10 + $0x8f8] sm:$0xff]
          %v1213 = vld [vmem:[#allocation10 + $0x900] sm:$0xff]
          %v1214 = vld [vmem:[#allocation10 + $0x908] sm:$0xff]
          %v1215 = vld [vmem:[#allocation10 + $0x910] sm:$0xff]
          %v1216 = vld [vmem:[#allocation10 + $0x918] sm:$0xff]
          %v1217 = vld [vmem:[#allocation10 + $0x920] sm:$0xff]
          %v1218 = vld [vmem:[#allocation10 + $0x928] sm:$0xff]
          %v1219 = vld [vmem:[#allocation10 + $0x930] sm:$0xff]
          %v1220 = vld [vmem:[#allocation10 + $0x938] sm:$0xff]
          %v1221 = vld [vmem:[#allocation10 + $0x940] sm:$0xff]
          %v1222 = vld [vmem:[#allocation10 + $0x948] sm:$0xff]
          %v1223 = vld [vmem:[#allocation10 + $0x950] sm:$0xff]
          %v1224 = vld [vmem:[#allocation10 + $0x958] sm:$0xff]
          %v1225 = vld [vmem:[#allocation10 + $0x960] sm:$0xff]
          %v1226 = vld [vmem:[#allocation10 + $0x968] sm:$0xff]
          %v1227 = vld [vmem:[#allocation10 + $0x970] sm:$0xff]
          %v1228 = vld [vmem:[#allocation10 + $0x978] sm:$0xff]
          %v1229 = vld [vmem:[#allocation10 + $0x980] sm:$0xff]
          %v1230 = vld [vmem:[#allocation10 + $0x988] sm:$0xff]
          %v1231 = vld [vmem:[#allocation10 + $0x990] sm:$0xff]
          %v1232 = vld [vmem:[#allocation10 + $0x998] sm:$0xff]
          %v1233 = vld [vmem:[#allocation10 + $0x9a0] sm:$0xff]
          %v1234 = vld [vmem:[#allocation10 + $0x9a8] sm:$0xff]
          %v1235 = vld [vmem:[#allocation10 + $0x9b0] sm:$0xff]
          %v1236 = vld [vmem:[#allocation10 + $0x9b8] sm:$0xff]
          %v1237 = vld [vmem:[#allocation10 + $0x9c0] sm:$0xff]
          %v1238 = vld [vmem:[#allocation10 + $0x9c8] sm:$0xff]
          %v1239 = vld [vmem:[#allocation10 + $0x9d0] sm:$0xff]
          %v1240 = vld [vmem:[#allocation10 + $0x9d8] sm:$0xff]
          %v1241 = vld [vmem:[#allocation10 + $0x9e0] sm:$0xff]
          %v1242 = vld [vmem:[#allocation10 + $0x9e8] sm:$0xff]
          %v1243 = vld [vmem:[#allocation10 + $0x9f0] sm:$0xff]
          %v1244 = vld [vmem:[#allocation10 + $0x9f8] sm:$0xff]
          %v1245 = vld [vmem:[#allocation10 + $0xa00] sm:$0xff]
          %v1246 = vld [vmem:[#allocation10 + $0xa08] sm:$0xff]
          %v1247 = vld [vmem:[#allocation10 + $0xa10] sm:$0xff]
          %v1248 = vld [vmem:[#allocation10 + $0xa18] sm:$0xff]
          %v1249 = vld [vmem:[#allocation10 + $0xa20] sm:$0xff]
          %v1250 = vld [vmem:[#allocation10 + $0xa28] sm:$0xff]
          %v1251 = vld [vmem:[#allocation10 + $0xa30] sm:$0xff]
          %v1252 = vld [vmem:[#allocation10 + $0xa38] sm:$0xff]
          %v1253 = vld [vmem:[#allocation10 + $0xa40] sm:$0xff]
          %v1254 = vld [vmem:[#allocation10 + $0xa48] sm:$0xff]
          %v1255 = vld [vmem:[#allocation10 + $0xa50] sm:$0xff]
          %v1256 = vld [vmem:[#allocation10 + $0xa58] sm:$0xff]
          %v1257 = vld [vmem:[#allocation10 + $0xa60] sm:$0xff]
          %v1258 = vld [vmem:[#allocation10 + $0xa68] sm:$0xff]
          %v1259 = vld [vmem:[#allocation10 + $0xa70] sm:$0xff]
          %v1260 = vld [vmem:[#allocation10 + $0xa78] sm:$0xff]
          %v1261 = vld [vmem:[#allocation10 + $0xa80] sm:$0xff]
          %v1262 = vld [vmem:[#allocation10 + $0xa88] sm:$0xff]
          %v1263 = vld [vmem:[#allocation10 + $0xa90] sm:$0xff]
          %v1264 = vld [vmem:[#allocation10 + $0xa98] sm:$0xff]
          %v1265 = vld [vmem:[#allocation10 + $0xaa0] sm:$0xff]
          %v1266 = vld [vmem:[#allocation10 + $0xaa8] sm:$0xff]
          %v1267 = vld [vmem:[#allocation10 + $0xab0] sm:$0xff]
          %v1268 = vld [vmem:[#allocation10 + $0xab8] sm:$0xff]
          %v1269 = vld [vmem:[#allocation10 + $0xac0] sm:$0xff]
          %v1270 = vld [vmem:[#allocation10 + $0xac8] sm:$0xff]
          %v1271 = vld [vmem:[#allocation10 + $0xad0] sm:$0xff]
          %v1272 = vld [vmem:[#allocation10 + $0xad8] sm:$0xff]
          %v1273 = vld [vmem:[#allocation10 + $0xae0] sm:$0xff]
          %v1274 = vld [vmem:[#allocation10 + $0xae8] sm:$0xff]
          %v1275 = vld [vmem:[#allocation10 + $0xaf0] sm:$0xff]
          %v1276 = vld [vmem:[#allocation10 + $0xaf8] sm:$0xff]
          %v1277 = vld [vmem:[#allocation10 + $0xb00] sm:$0xff]
          %v1278 = vld [vmem:[#allocation10 + $0xb08] sm:$0xff]
          %v1279 = vld [vmem:[#allocation10 + $0xb10] sm:$0xff]
          %v1280 = vld [vmem:[#allocation10 + $0xb18] sm:$0xff]
          %v1281 = vld [vmem:[#allocation10 + $0xb20] sm:$0xff]
          %v1282 = vld [vmem:[#allocation10 + $0xb28] sm:$0xff]
          %v1283 = vld [vmem:[#allocation10 + $0xb30] sm:$0xff]
          %v1284 = vld [vmem:[#allocation10 + $0xb38] sm:$0xff]
          %v1285 = vld [vmem:[#allocation10 + $0xb40] sm:$0xff]
          %v1286 = vld [vmem:[#allocation10 + $0xb48] sm:$0xff]
          %v1287 = vld [vmem:[#allocation10 + $0xb50] sm:$0xff]
          %v1288 = vld [vmem:[#allocation10 + $0xb58] sm:$0xff]
          %v1289 = vld [vmem:[#allocation10 + $0xb60] sm:$0xff]
          %v1290 = vld [vmem:[#allocation10 + $0xb68] sm:$0xff]
          %v1291 = vld [vmem:[#allocation10 + $0xb70] sm:$0xff]
          %v1292 = vld [vmem:[#allocation10 + $0xb78] sm:$0xff]
          %v1293 = vld [vmem:[#allocation10 + $0xb80] sm:$0xff]
          %v1294 = vld [vmem:[#allocation10 + $0xb88] sm:$0xff]
          %v1295 = vld [vmem:[#allocation10 + $0xb90] sm:$0xff]
          %v1296 = vld [vmem:[#allocation10 + $0xb98] sm:$0xff]
          %v1297 = vld [vmem:[#allocation10 + $0xba0] sm:$0xff]
          %v1298 = vld [vmem:[#allocation10 + $0xba8] sm:$0xff]
          %v1299 = vld [vmem:[#allocation10 + $0xbb0] sm:$0xff]
          %v1300 = vld [vmem:[#allocation10 + $0xbb8] sm:$0xff]
          %v1301 = vld [vmem:[#allocation10 + $0xbc0] sm:$0xff]
          %v1302 = vld [vmem:[#allocation10 + $0xbc8] sm:$0xff]
          %v1303 = vld [vmem:[#allocation10 + $0xbd0] sm:$0xff]
          %v1304 = vld [vmem:[#allocation10 + $0xbd8] sm:$0xff]
          %v1305 = vld [vmem:[#allocation10 + $0xbe0] sm:$0xff]
          %v1306 = vld [vmem:[#allocation10 + $0xbe8] sm:$0xff]
          %v1307 = vld [vmem:[#allocation10 + $0xbf0] sm:$0xff]
          %v1308 = vld [vmem:[#allocation10 + $0xbf8] sm:$0xff]
          %v1309 = vld [vmem:[#allocation10 + $0xc00] sm:$0xff]
          %v1310 = vld [vmem:[#allocation10 + $0xc08] sm:$0xff]
          %v1311 = vld [vmem:[#allocation10 + $0xc10] sm:$0xff]
          %v1312 = vld [vmem:[#allocation10 + $0xc18] sm:$0xff]
          %v1313 = vld [vmem:[#allocation10 + $0xc20] sm:$0xff]
          %v1314 = vld [vmem:[#allocation10 + $0xc28] sm:$0xff]
          %v1315 = vld [vmem:[#allocation10 + $0xc30] sm:$0xff]
          %v1316 = vld [vmem:[#allocation10 + $0xc38] sm:$0xff]
          %v1317 = vld [vmem:[#allocation10 + $0xc40] sm:$0xff]
          %v1318 = vld [vmem:[#allocation10 + $0xc48] sm:$0xff]
          %v1319 = vld [vmem:[#allocation10 + $0xc50] sm:$0xff]
          %v1320 = vld [vmem:[#allocation10 + $0xc58] sm:$0xff]
          %v1321 = vld [vmem:[#allocation10 + $0xc60] sm:$0xff]
          %v1322 = vld [vmem:[#allocation10 + $0xc68] sm:$0xff]
          %v1323 = vld [vmem:[#allocation10 + $0xc70] sm:$0xff]
          %v1324 = vld [vmem:[#allocation10 + $0xc78] sm:$0xff]
          %v1325 = vld [vmem:[#allocation10 + $0xc80] sm:$0xff]
          %v1326 = vld [vmem:[#allocation10 + $0xc88] sm:$0xff]
          %v1327 = vld [vmem:[#allocation10 + $0xc90] sm:$0xff]
          %v1328 = vld [vmem:[#allocation10 + $0xc98] sm:$0xff]
          %v1329 = vld [vmem:[#allocation10 + $0xca0] sm:$0xff]
          %v1330 = vld [vmem:[#allocation10 + $0xca8] sm:$0xff]
          %v1331 = vld [vmem:[#allocation10 + $0xcb0] sm:$0xff]
          %v1332 = vld [vmem:[#allocation10 + $0xcb8] sm:$0xff]
          %v1333 = vld [vmem:[#allocation10 + $0xcc0] sm:$0xff]
          %v1334 = vld [vmem:[#allocation10 + $0xcc8] sm:$0xff]
          %v1335 = vld [vmem:[#allocation10 + $0xcd0] sm:$0xff]
          %v1336 = vld [vmem:[#allocation10 + $0xcd8] sm:$0xff]
          %v1337 = vld [vmem:[#allocation10 + $0xce0] sm:$0xff]
          %v1338 = vld [vmem:[#allocation10 + $0xce8] sm:$0xff]
          %v1339 = vld [vmem:[#allocation10 + $0xcf0] sm:$0xff]
          %v1340 = vld [vmem:[#allocation10 + $0xcf8] sm:$0xff]
          %v1341 = vld [vmem:[#allocation10 + $0xd00] sm:$0xff]
          %v1342 = vld [vmem:[#allocation10 + $0xd08] sm:$0xff]
          %v1343 = vld [vmem:[#allocation10 + $0xd10] sm:$0xff]
          %v1344 = vld [vmem:[#allocation10 + $0xd18] sm:$0xff]
          %v1345 = vld [vmem:[#allocation10 + $0xd20] sm:$0xff]
          %v1346 = vld [vmem:[#allocation10 + $0xd28] sm:$0xff]
          %v1347 = vld [vmem:[#allocation10 + $0xd30] sm:$0xff]
          %v1348 = vld [vmem:[#allocation10 + $0xd38] sm:$0xff]
          %v1349 = vld [vmem:[#allocation10 + $0xd40] sm:$0xff]
          %v1350 = vld [vmem:[#allocation10 + $0xd48] sm:$0xff]
          %v1351 = vld [vmem:[#allocation10 + $0xd50] sm:$0xff]
          %v1352 = vld [vmem:[#allocation10 + $0xd58] sm:$0xff]
          %v1353 = vld [vmem:[#allocation10 + $0xd60] sm:$0xff]
          %v1354 = vld [vmem:[#allocation10 + $0xd68] sm:$0xff]
          %v1355 = vld [vmem:[#allocation10 + $0xd70] sm:$0xff]
          %v1356 = vld [vmem:[#allocation10 + $0xd78] sm:$0xff]
          %v1357 = vld [vmem:[#allocation10 + $0xd80] sm:$0xff]
          %v1358 = vld [vmem:[#allocation10 + $0xd88] sm:$0xff]
          %v1359 = vld [vmem:[#allocation10 + $0xd90] sm:$0xff]
          %v1360 = vld [vmem:[#allocation10 + $0xd98] sm:$0xff]
          %v1361 = vld [vmem:[#allocation10 + $0xda0] sm:$0xff]
          %v1362 = vld [vmem:[#allocation10 + $0xda8] sm:$0xff]
          %v1363 = vld [vmem:[#allocation10 + $0xdb0] sm:$0xff]
          %v1364 = vld [vmem:[#allocation10 + $0xdb8] sm:$0xff]
          %v1365 = vld [vmem:[#allocation10 + $0xdc0] sm:$0xff]
          %v1366 = vld [vmem:[#allocation10 + $0xdc8] sm:$0xff]
          %v1367 = vld [vmem:[#allocation10 + $0xdd0] sm:$0xff]
          %v1368 = vld [vmem:[#allocation10 + $0xdd8] sm:$0xff]
          %v1369 = vld [vmem:[#allocation10 + $0xde0] sm:$0xff]
          %v1370 = vld [vmem:[#allocation10 + $0xde8] sm:$0xff]
          %v1371 = vld [vmem:[#allocation10 + $0xdf0] sm:$0xff]
          %v1372 = vld [vmem:[#allocation10 + $0xdf8] sm:$0xff]
          %v1373 = vld [vmem:[#allocation10 + $0xe00] sm:$0xff]
          %v1374 = vld [vmem:[#allocation10 + $0xe08] sm:$0xff]
          %v1375 = vld [vmem:[#allocation10 + $0xe10] sm:$0xff]
          %v1376 = vld [vmem:[#allocation10 + $0xe18] sm:$0xff]
          %v1377 = vld [vmem:[#allocation10 + $0xe20] sm:$0xff]
          %v1378 = vld [vmem:[#allocation10 + $0xe28] sm:$0xff]
          %v1379 = vld [vmem:[#allocation10 + $0xe30] sm:$0xff]
          %v1380 = vld [vmem:[#allocation10 + $0xe38] sm:$0xff]
          %v1381 = vld [vmem:[#allocation10 + $0xe40] sm:$0xff]
          %v1382 = vld [vmem:[#allocation10 + $0xe48] sm:$0xff]
          %v1383 = vld [vmem:[#allocation10 + $0xe50] sm:$0xff]
          %v1384 = vld [vmem:[#allocation10 + $0xe58] sm:$0xff]
          %v1385 = vld [vmem:[#allocation10 + $0xe60] sm:$0xff]
          %v1386 = vld [vmem:[#allocation10 + $0xe68] sm:$0xff]
          %v1387 = vld [vmem:[#allocation10 + $0xe70] sm:$0xff]
          %v1388 = vld [vmem:[#allocation10 + $0xe78] sm:$0xff]
          %v1389 = vld [vmem:[#allocation10 + $0xe80] sm:$0xff]
          %v1390 = vld [vmem:[#allocation10 + $0xe88] sm:$0xff]
          %v1391 = vld [vmem:[#allocation10 + $0xe90] sm:$0xff]
          %v1392 = vld [vmem:[#allocation10 + $0xe98] sm:$0xff]
          %v1393 = vld [vmem:[#allocation10 + $0xea0] sm:$0xff]
          %v1394 = vld [vmem:[#allocation10 + $0xea8] sm:$0xff]
          %v1395 = vld [vmem:[#allocation10 + $0xeb0] sm:$0xff]
          %v1396 = vld [vmem:[#allocation10 + $0xeb8] sm:$0xff]
          %v1397 = vld [vmem:[#allocation10 + $0xec0] sm:$0xff]
          %v1398 = vld [vmem:[#allocation10 + $0xec8] sm:$0xff]
          %v1399 = vld [vmem:[#allocation10 + $0xed0] sm:$0xff]
          %v1400 = vld [vmem:[#allocation10 + $0xed8] sm:$0xff]
          %v1401 = vld [vmem:[#allocation10 + $0xee0] sm:$0xff]
          %v1402 = vld [vmem:[#allocation10 + $0xee8] sm:$0xff]
          %v1403 = vld [vmem:[#allocation10 + $0xef0] sm:$0xff]
          %v1404 = vld [vmem:[#allocation10 + $0xef8] sm:$0xff]
          %v1405 = vld [vmem:[#allocation10 + $0xf00] sm:$0xff]
          %v1406 = vld [vmem:[#allocation10 + $0xf08] sm:$0xff]
          %v1407 = vld [vmem:[#allocation10 + $0xf10] sm:$0xff]
          %v1408 = vld [vmem:[#allocation10 + $0xf18] sm:$0xff]
          %v1409 = vld [vmem:[#allocation10 + $0xf20] sm:$0xff]
          %v1410 = vld [vmem:[#allocation10 + $0xf28] sm:$0xff]
          %v1411 = vld [vmem:[#allocation10 + $0xf30] sm:$0xff]
          %v1412 = vld [vmem:[#allocation10 + $0xf38] sm:$0xff]
          %v1413 = vld [vmem:[#allocation10 + $0xf40] sm:$0xff]
          %v1414 = vld [vmem:[#allocation10 + $0xf48] sm:$0xff]
          %v1415 = vld [vmem:[#allocation10 + $0xf50] sm:$0xff]
          %v1416 = vld [vmem:[#allocation10 + $0xf58] sm:$0xff]
          %v1417 = vld [vmem:[#allocation10 + $0xf60] sm:$0xff]
          %v1418 = vld [vmem:[#allocation10 + $0xf68] sm:$0xff]
          %v1419 = vld [vmem:[#allocation10 + $0xf70] sm:$0xff]
          %v1420 = vld [vmem:[#allocation10 + $0xf78] sm:$0xff]
          %v1421 = vld [vmem:[#allocation10 + $0xf80] sm:$0xff]
          %v1422 = vld [vmem:[#allocation10 + $0xf88] sm:$0xff]
          %v1423 = vld [vmem:[#allocation10 + $0xf90] sm:$0xff]
          %v1424 = vld [vmem:[#allocation10 + $0xf98] sm:$0xff]
          %v1425 = vld [vmem:[#allocation10 + $0xfa0] sm:$0xff]
          %v1426 = vld [vmem:[#allocation10 + $0xfa8] sm:$0xff]
          %v1427 = vld [vmem:[#allocation10 + $0xfb0] sm:$0xff]
          %v1428 = vld [vmem:[#allocation10 + $0xfb8] sm:$0xff]
          %v1429 = vld [vmem:[#allocation10 + $0xfc0] sm:$0xff]
          %v1430 = vld [vmem:[#allocation10 + $0xfc8] sm:$0xff]
          %v1431 = vld [vmem:[#allocation10 + $0xfd0] sm:$0xff]
          %v1432 = vld [vmem:[#allocation10 + $0xfd8] sm:$0xff]
          %v1433 = vld [vmem:[#allocation10 + $0xfe0] sm:$0xff]
          %v1434 = vld [vmem:[#allocation10 + $0xfe8] sm:$0xff]
          %v1435 = vld [vmem:[#allocation10 + $0xff0] sm:$0xff]
          %v1436 = vld [vmem:[#allocation10 + $0xff8] sm:$0xff]
          %v1437 = vld [vmem:[#allocation10 + $0x1000] sm:$0xff]
          %v1438 = vld [vmem:[#allocation10 + $0x1008] sm:$0xff]
          %v1439 = vld [vmem:[#allocation10 + $0x1010] sm:$0xff]
          %v1440 = vld [vmem:[#allocation10 + $0x1018] sm:$0xff]
          %v1441 = vld [vmem:[#allocation10 + $0x1020] sm:$0xff]
          %v1442 = vld [vmem:[#allocation10 + $0x1028] sm:$0xff]
          %v1443 = vld [vmem:[#allocation10 + $0x1030] sm:$0xff]
          %v1444 = vld [vmem:[#allocation10 + $0x1038] sm:$0xff]
          %v1445 = vld [vmem:[#allocation10 + $0x1040] sm:$0xff]
          %v1446 = vld [vmem:[#allocation10 + $0x1048] sm:$0xff]
          %v1447 = vld [vmem:[#allocation10 + $0x1050] sm:$0xff]
          %v1448 = vld [vmem:[#allocation10 + $0x1058] sm:$0xff]
          %v1449 = vld [vmem:[#allocation10 + $0x1060] sm:$0xff]
          %v1450 = vld [vmem:[#allocation10 + $0x1068] sm:$0xff]
          %v1451 = vld [vmem:[#allocation10 + $0x1070] sm:$0xff]
          %v1452 = vld [vmem:[#allocation10 + $0x1078] sm:$0xff]
          %v1453 = vld [vmem:[#allocation10 + $0x1080] sm:$0xff]
          %v1454 = vld [vmem:[#allocation10 + $0x1088] sm:$0xff]
          %v1455 = vld [vmem:[#allocation10 + $0x1090] sm:$0xff]
          %v1456 = vld [vmem:[#allocation10 + $0x1098] sm:$0xff]
          %v1457 = vld [vmem:[#allocation10 + $0x10a0] sm:$0xff]
          %v1458 = vld [vmem:[#allocation10 + $0x10a8] sm:$0xff]
          %v1459 = vld [vmem:[#allocation10 + $0x10b0] sm:$0xff]
          %v1460 = vld [vmem:[#allocation10 + $0x10b8] sm:$0xff]
          %v1461 = vld [vmem:[#allocation10 + $0x10c0] sm:$0xff]
          %v1462 = vld [vmem:[#allocation10 + $0x10c8] sm:$0xff]
          %v1463 = vld [vmem:[#allocation10 + $0x10d0] sm:$0xff]
          %v1464 = vld [vmem:[#allocation10 + $0x10d8] sm:$0xff]
          %v1465 = vld [vmem:[#allocation10 + $0x10e0] sm:$0xff]
          %v1466 = vld [vmem:[#allocation10 + $0x10e8] sm:$0xff]
          %v1467 = vld [vmem:[#allocation10 + $0x10f0] sm:$0xff]
          %v1468 = vld [vmem:[#allocation10 + $0x10f8] sm:$0xff]
          %v1469 = vld [vmem:[#allocation10 + $0x1100] sm:$0xff]
          %v1470 = vld [vmem:[#allocation10 + $0x1108] sm:$0xff]
          %v1471 = vld [vmem:[#allocation10 + $0x1110] sm:$0xff]
          %v1472 = vld [vmem:[#allocation10 + $0x1118] sm:$0xff]
          %v1473 = vld [vmem:[#allocation10 + $0x1120] sm:$0xff]
          %v1474 = vld [vmem:[#allocation10 + $0x1128] sm:$0xff]
          %v1475 = vld [vmem:[#allocation10 + $0x1130] sm:$0xff]
          %v1476 = vld [vmem:[#allocation10 + $0x1138] sm:$0xff]
          %v1477 = vld [vmem:[#allocation10 + $0x1140] sm:$0xff]
          %v1478 = vld [vmem:[#allocation10 + $0x1148] sm:$0xff]
          %v1479 = vld [vmem:[#allocation10 + $0x1150] sm:$0xff]
          %v1480 = vld [vmem:[#allocation10 + $0x1158] sm:$0xff]
          %v1481 = vld [vmem:[#allocation10 + $0x1160] sm:$0xff]
          %v1482 = vld [vmem:[#allocation10 + $0x1168] sm:$0xff]
          %v1483 = vld [vmem:[#allocation10 + $0x1170] sm:$0xff]
          %v1484 = vld [vmem:[#allocation10 + $0x1178] sm:$0xff]
          %v1485 = vld [vmem:[#allocation10 + $0x1180] sm:$0xff]
          %v1486 = vld [vmem:[#allocation10 + $0x1188] sm:$0xff]
          %v1487 = vld [vmem:[#allocation10 + $0x1190] sm:$0xff]
          %v1488 = vld [vmem:[#allocation10 + $0x1198] sm:$0xff]
          %v1489 = vld [vmem:[#allocation10 + $0x11a0] sm:$0xff]
          %v1490 = vld [vmem:[#allocation10 + $0x11a8] sm:$0xff]
          %v1491 = vld [vmem:[#allocation10 + $0x11b0] sm:$0xff]
          %v1492 = vld [vmem:[#allocation10 + $0x11b8] sm:$0xff]
          %v1493 = vld [vmem:[#allocation10 + $0x11c0] sm:$0xff]
          %v1494 = vld [vmem:[#allocation10 + $0x11c8] sm:$0xff]
          %v1495 = vld [vmem:[#allocation10 + $0x11d0] sm:$0xff]
          %v1496 = vld [vmem:[#allocation10 + $0x11d8] sm:$0xff]
          %v1497 = vld [vmem:[#allocation10 + $0x11e0] sm:$0xff]
          %v1498 = vld [vmem:[#allocation10 + $0x11e8] sm:$0xff]
          %v1499 = vld [vmem:[#allocation10 + $0x11f0] sm:$0xff]
          %v1500 = vld [vmem:[#allocation10 + $0x11f8] sm:$0xff]
          %v1501 = vld [vmem:[#allocation10 + $0x1200] sm:$0xff]
          %v1502 = vld [vmem:[#allocation10 + $0x1208] sm:$0xff]
          %v1503 = vld [vmem:[#allocation10 + $0x1210] sm:$0xff]
          %v1504 = vld [vmem:[#allocation10 + $0x1218] sm:$0xff]
          %v1505 = vld [vmem:[#allocation10 + $0x1220] sm:$0xff]
          %v1506 = vld [vmem:[#allocation10 + $0x1228] sm:$0xff]
          %v1507 = vld [vmem:[#allocation10 + $0x1230] sm:$0xff]
          %v1508 = vld [vmem:[#allocation10 + $0x1238] sm:$0xff]
          %v1509 = vld [vmem:[#allocation10 + $0x1240] sm:$0xff]
          %v1510 = vld [vmem:[#allocation10 + $0x1248] sm:$0xff]
          %v1511 = vld [vmem:[#allocation10 + $0x1250] sm:$0xff]
          %v1512 = vld [vmem:[#allocation10 + $0x1258] sm:$0xff]
          %v1513 = vld [vmem:[#allocation10 + $0x1260] sm:$0xff]
          %v1514 = vld [vmem:[#allocation10 + $0x1268] sm:$0xff]
          %v1515 = vld [vmem:[#allocation10 + $0x1270] sm:$0xff]
          %v1516 = vld [vmem:[#allocation10 + $0x1278] sm:$0xff]
          %v1517 = vld [vmem:[#allocation10 + $0x1280] sm:$0xff]
          %v1518 = vld [vmem:[#allocation10 + $0x1288] sm:$0xff]
          %v1519 = vld [vmem:[#allocation10 + $0x1290] sm:$0xff]
          %v1520 = vld [vmem:[#allocation10 + $0x1298] sm:$0xff]
          %v1521 = vld [vmem:[#allocation10 + $0x12a0] sm:$0xff]
          %v1522 = vld [vmem:[#allocation10 + $0x12a8] sm:$0xff]
          %v1523 = vld [vmem:[#allocation10 + $0x12b0] sm:$0xff]
          %v1524 = vld [vmem:[#allocation10 + $0x12b8] sm:$0xff]
          %v1525 = vld [vmem:[#allocation10 + $0x12c0] sm:$0xff]
          %v1526 = vld [vmem:[#allocation10 + $0x12c8] sm:$0xff]
          %v1527 = vld [vmem:[#allocation10 + $0x12d0] sm:$0xff]
          %v1528 = vld [vmem:[#allocation10 + $0x12d8] sm:$0xff]
          %v1529 = vld [vmem:[#allocation10 + $0x12e0] sm:$0xff]
          %v1530 = vld [vmem:[#allocation10 + $0x12e8] sm:$0xff]
          %v1531 = vld [vmem:[#allocation10 + $0x12f0] sm:$0xff]
          %v1532 = vld [vmem:[#allocation10 + $0x12f8] sm:$0xff]
          %v1533 = vld [vmem:[#allocation10 + $0x1300] sm:$0xff]
          %v1534 = vld [vmem:[#allocation10 + $0x1308] sm:$0xff]
          %v1535 = vld [vmem:[#allocation10 + $0x1310] sm:$0xff]
          %v1536 = vld [vmem:[#allocation10 + $0x1318] sm:$0xff]
          %v1537 = vld [vmem:[#allocation10 + $0x1320] sm:$0xff]
          %v1538 = vld [vmem:[#allocation10 + $0x1328] sm:$0xff]
          %v1539 = vld [vmem:[#allocation10 + $0x1330] sm:$0xff]
          %v1540 = vld [vmem:[#allocation10 + $0x1338] sm:$0xff]
          %v1541 = vld [vmem:[#allocation10 + $0x1340] sm:$0xff]
          %v1542 = vld [vmem:[#allocation10 + $0x1348] sm:$0xff]
          %v1543 = vld [vmem:[#allocation10 + $0x1350] sm:$0xff]
          %v1544 = vld [vmem:[#allocation10 + $0x1358] sm:$0xff]
          %v1545 = vld [vmem:[#allocation10 + $0x1360] sm:$0xff]
          %v1546 = vld [vmem:[#allocation10 + $0x1368] sm:$0xff]
          %v1547 = vld [vmem:[#allocation10 + $0x1370] sm:$0xff]
          %v1548 = vld [vmem:[#allocation10 + $0x1378] sm:$0xff]
          %v1549 = vld [vmem:[#allocation10 + $0x1380] sm:$0xff]
          %v1550 = vld [vmem:[#allocation10 + $0x1388] sm:$0xff]
          %v1551 = vld [vmem:[#allocation10 + $0x1390] sm:$0xff]
          %v1552 = vld [vmem:[#allocation10 + $0x1398] sm:$0xff]
          %v1553 = vld [vmem:[#allocation10 + $0x13a0] sm:$0xff]
          %v1554 = vld [vmem:[#allocation10 + $0x13a8] sm:$0xff]
          %v1555 = vld [vmem:[#allocation10 + $0x13b0] sm:$0xff]
          %v1556 = vld [vmem:[#allocation10 + $0x13b8] sm:$0xff]
          %v1557 = vld [vmem:[#allocation10 + $0x13c0] sm:$0xff]
          %v1558 = vld [vmem:[#allocation10 + $0x13c8] sm:$0xff]
          %v1559 = vld [vmem:[#allocation10 + $0x13d0] sm:$0xff]
          %v1560 = vld [vmem:[#allocation10 + $0x13d8] sm:$0xff]
          %v1561 = vld [vmem:[#allocation10 + $0x13e0] sm:$0xff]
          %v1562 = vld [vmem:[#allocation10 + $0x13e8] sm:$0xff]
          %v1563 = vld [vmem:[#allocation10 + $0x13f0] sm:$0xff]
          %v1564 = vld [vmem:[#allocation10 + $0x13f8] sm:$0xff]
          %v1565 = vld [vmem:[#allocation10 + $0x1400] sm:$0xff]
          %v1566 = vld [vmem:[#allocation10 + $0x1408] sm:$0xff]
          %v1567 = vld [vmem:[#allocation10 + $0x1410] sm:$0xff]
          %v1568 = vld [vmem:[#allocation10 + $0x1418] sm:$0xff]
          %v1569 = vld [vmem:[#allocation10 + $0x1420] sm:$0xff]
          %v1570 = vld [vmem:[#allocation10 + $0x1428] sm:$0xff]
          %v1571 = vld [vmem:[#allocation10 + $0x1430] sm:$0xff]
          %v1572 = vld [vmem:[#allocation10 + $0x1438] sm:$0xff]
          %v1573 = vld [vmem:[#allocation10 + $0x1440] sm:$0xff]
          %v1574 = vld [vmem:[#allocation10 + $0x1448] sm:$0xff]
          %v1575 = vld [vmem:[#allocation10 + $0x1450] sm:$0xff]
          %v1576 = vld [vmem:[#allocation10 + $0x1458] sm:$0xff]
          %v1577 = vld [vmem:[#allocation10 + $0x1460] sm:$0xff]
          %v1578 = vld [vmem:[#allocation10 + $0x1468] sm:$0xff]
          %v1579 = vld [vmem:[#allocation10 + $0x1470] sm:$0xff]
          %v1580 = vld [vmem:[#allocation10 + $0x1478] sm:$0xff]
          %v1581 = vld [vmem:[#allocation10 + $0x1480] sm:$0xff]
          %v1582 = vld [vmem:[#allocation10 + $0x1488] sm:$0xff]
          %v1583 = vld [vmem:[#allocation10 + $0x1490] sm:$0xff]
          %v1584 = vld [vmem:[#allocation10 + $0x1498] sm:$0xff]
          %v1585 = vld [vmem:[#allocation10 + $0x14a0] sm:$0xff]
          %v1586 = vld [vmem:[#allocation10 + $0x14a8] sm:$0xff]
          %v1587 = vld [vmem:[#allocation10 + $0x14b0] sm:$0xff]
          %v1588 = vld [vmem:[#allocation10 + $0x14b8] sm:$0xff]
          %v1589 = vld [vmem:[#allocation10 + $0x14c0] sm:$0xff]
          %v1590 = vld [vmem:[#allocation10 + $0x14c8] sm:$0xff]
          %v1591 = vld [vmem:[#allocation10 + $0x14d0] sm:$0xff]
          %v1592 = vld [vmem:[#allocation10 + $0x14d8] sm:$0xff]
          %v1593 = vld [vmem:[#allocation10 + $0x14e0] sm:$0xff]
          %v1594 = vld [vmem:[#allocation10 + $0x14e8] sm:$0xff]
          %v1595 = vld [vmem:[#allocation10 + $0x14f0] sm:$0xff]
          %v1596 = vld [vmem:[#allocation10 + $0x14f8] sm:$0xff]
          %v1597 = vld [vmem:[#allocation10 + $0x1500] sm:$0xff]
          %v1598 = vld [vmem:[#allocation10 + $0x1508] sm:$0xff]
          %v1599 = vld [vmem:[#allocation10 + $0x1510] sm:$0xff]
          %v1600 = vld [vmem:[#allocation10 + $0x1518] sm:$0xff]
          %v1601 = vld [vmem:[#allocation10 + $0x1520] sm:$0xff]
          %v1602 = vld [vmem:[#allocation10 + $0x1528] sm:$0xff]
          %v1603 = vld [vmem:[#allocation10 + $0x1530] sm:$0xff]
          %v1604 = vld [vmem:[#allocation10 + $0x1538] sm:$0xff]
          %v1605 = vld [vmem:[#allocation10 + $0x1540] sm:$0xff]
          %v1606 = vld [vmem:[#allocation10 + $0x1548] sm:$0xff]
          %v1607 = vld [vmem:[#allocation10 + $0x1550] sm:$0xff]
          %v1608 = vld [vmem:[#allocation10 + $0x1558] sm:$0xff]
          %v1609 = vld [vmem:[#allocation10 + $0x1560] sm:$0xff]
          %v1610 = vld [vmem:[#allocation10 + $0x1568] sm:$0xff]
          %v1611 = vld [vmem:[#allocation10 + $0x1570] sm:$0xff]
          %v1612 = vld [vmem:[#allocation10 + $0x1578] sm:$0xff]
          %v1613 = vld [vmem:[#allocation10 + $0x1580] sm:$0xff]
          %v1614 = vld [vmem:[#allocation10 + $0x1588] sm:$0xff]
          %v1615 = vld [vmem:[#allocation10 + $0x1590] sm:$0xff]
          %v1616 = vld [vmem:[#allocation10 + $0x1598] sm:$0xff]
          %v1617 = vld [vmem:[#allocation10 + $0x15a0] sm:$0xff]
          %v1618 = vld [vmem:[#allocation10 + $0x15a8] sm:$0xff]
          %v1619 = vld [vmem:[#allocation10 + $0x15b0] sm:$0xff]
          %v1620 = vld [vmem:[#allocation10 + $0x15b8] sm:$0xff]
          %v1621 = vld [vmem:[#allocation10 + $0x15c0] sm:$0xff]
          %v1622 = vld [vmem:[#allocation10 + $0x15c8] sm:$0xff]
          %v1623 = vld [vmem:[#allocation10 + $0x15d0] sm:$0xff]
          %v1624 = vld [vmem:[#allocation10 + $0x15d8] sm:$0xff]
          %v1625 = vld [vmem:[#allocation10 + $0x15e0] sm:$0xff]
          %v1626 = vld [vmem:[#allocation10 + $0x15e8] sm:$0xff]
          %v1627 = vld [vmem:[#allocation10 + $0x15f0] sm:$0xff]
          %v1628 = vld [vmem:[#allocation10 + $0x15f8] sm:$0xff]
          %v1629 = vld [vmem:[#allocation10 + $0x1600] sm:$0xff]
          %v1630 = vld [vmem:[#allocation10 + $0x1608] sm:$0xff]
          %v1631 = vld [vmem:[#allocation10 + $0x1610] sm:$0xff]
          %v1632 = vld [vmem:[#allocation10 + $0x1618] sm:$0xff]
          %v1633 = vld [vmem:[#allocation10 + $0x1620] sm:$0xff]
          %v1634 = vld [vmem:[#allocation10 + $0x1628] sm:$0xff]
          %v1635 = vld [vmem:[#allocation10 + $0x1630] sm:$0xff]
          %v1636 = vld [vmem:[#allocation10 + $0x1638] sm:$0xff]
          %v1637 = vld [vmem:[#allocation10 + $0x1640] sm:$0xff]
          %v1638 = vld [vmem:[#allocation10 + $0x1648] sm:$0xff]
          %v1639 = vld [vmem:[#allocation10 + $0x1650] sm:$0xff]
          %v1640 = vld [vmem:[#allocation10 + $0x1658] sm:$0xff]
          %v1641 = vld [vmem:[#allocation10 + $0x1660] sm:$0xff]
          %v1642 = vld [vmem:[#allocation10 + $0x1668] sm:$0xff]
          %v1643 = vld [vmem:[#allocation10 + $0x1670] sm:$0xff]
          %v1644 = vld [vmem:[#allocation10 + $0x1678] sm:$0xff]
          %v1645 = vld [vmem:[#allocation10 + $0x1680] sm:$0xff]
          %v1646 = vld [vmem:[#allocation10 + $0x1688] sm:$0xff]
          %v1647 = vld [vmem:[#allocation10 + $0x1690] sm:$0xff]
          %v1648 = vld [vmem:[#allocation10 + $0x1698] sm:$0xff]
          %v1649 = vld [vmem:[#allocation10 + $0x16a0] sm:$0xff]
          %v1650 = vld [vmem:[#allocation10 + $0x16a8] sm:$0xff]
          %v1651 = vld [vmem:[#allocation10 + $0x16b0] sm:$0xff]
          %v1652 = vld [vmem:[#allocation10 + $0x16b8] sm:$0xff]
          %v1653 = vld [vmem:[#allocation10 + $0x16c0] sm:$0xff]
          %v1654 = vld [vmem:[#allocation10 + $0x16c8] sm:$0xff]
          %v1655 = vld [vmem:[#allocation10 + $0x16d0] sm:$0xff]
          %v1656 = vld [vmem:[#allocation10 + $0x16d8] sm:$0xff]
          %v1657 = vld [vmem:[#allocation10 + $0x16e0] sm:$0xff]
          %v1658 = vld [vmem:[#allocation10 + $0x16e8] sm:$0xff]
          %v1659 = vld [vmem:[#allocation10 + $0x16f0] sm:$0xff]
          %v1660 = vld [vmem:[#allocation10 + $0x16f8] sm:$0xff]
          %v1661 = vld [vmem:[#allocation10 + $0x1700] sm:$0xff]
          %v1662 = vld [vmem:[#allocation10 + $0x1708] sm:$0xff]
          %v1663 = vld [vmem:[#allocation10 + $0x1710] sm:$0xff]
          %v1664 = vld [vmem:[#allocation10 + $0x1718] sm:$0xff]
          %v1665 = vld [vmem:[#allocation10 + $0x1720] sm:$0xff]
          %v1666 = vld [vmem:[#allocation10 + $0x1728] sm:$0xff]
          %v1667 = vld [vmem:[#allocation10 + $0x1730] sm:$0xff]
          %v1668 = vld [vmem:[#allocation10 + $0x1738] sm:$0xff]
          %v1669 = vld [vmem:[#allocation10 + $0x1740] sm:$0xff]
          %v1670 = vld [vmem:[#allocation10 + $0x1748] sm:$0xff]
          %v1671 = vld [vmem:[#allocation10 + $0x1750] sm:$0xff]
          %v1672 = vld [vmem:[#allocation10 + $0x1758] sm:$0xff]
          %v1673 = vld [vmem:[#allocation10 + $0x1760] sm:$0xff]
          %v1674 = vld [vmem:[#allocation10 + $0x1768] sm:$0xff]
          %v1675 = vld [vmem:[#allocation10 + $0x1770] sm:$0xff]
          %v1676 = vld [vmem:[#allocation10 + $0x1778] sm:$0xff]
          %v1677 = vld [vmem:[#allocation10 + $0x1780] sm:$0xff]
          %v1678 = vld [vmem:[#allocation10 + $0x1788] sm:$0xff]
          %v1679 = vld [vmem:[#allocation10 + $0x1790] sm:$0xff]
          %v1680 = vld [vmem:[#allocation10 + $0x1798] sm:$0xff]
          %v1681 = vld [vmem:[#allocation10 + $0x17a0] sm:$0xff]
          %v1682 = vld [vmem:[#allocation10 + $0x17a8] sm:$0xff]
          %v1683 = vld [vmem:[#allocation10 + $0x17b0] sm:$0xff]
          %v1684 = vld [vmem:[#allocation10 + $0x17b8] sm:$0xff]
          %v1685 = vld [vmem:[#allocation10 + $0x17c0] sm:$0xff]
          %v1686 = vld [vmem:[#allocation10 + $0x17c8] sm:$0xff]
          %v1687 = vld [vmem:[#allocation10 + $0x17d0] sm:$0xff]
          %v1688 = vld [vmem:[#allocation10 + $0x17d8] sm:$0xff]
          %v1689 = vld [vmem:[#allocation10 + $0x17e0] sm:$0xff]
          %v1690 = vld [vmem:[#allocation10 + $0x17e8] sm:$0xff]
          %v1691 = vld [vmem:[#allocation10 + $0x17f0] sm:$0xff]
          %v1692 = vld [vmem:[#allocation10 + $0x17f8] sm:$0xff]
          %v1693 = vld [vmem:[#allocation10 + $0x1800] sm:$0xff]
          %v1694 = vld [vmem:[#allocation10 + $0x1808] sm:$0xff]
          %v1695 = vld [vmem:[#allocation10 + $0x1810] sm:$0xff]
          %v1696 = vld [vmem:[#allocation10 + $0x1818] sm:$0xff]
          %v1697 = vld [vmem:[#allocation10 + $0x1820] sm:$0xff]
          %v1698 = vld [vmem:[#allocation10 + $0x1828] sm:$0xff]
          %v1699 = vld [vmem:[#allocation10 + $0x1830] sm:$0xff]
          %v1700 = vld [vmem:[#allocation10 + $0x1838] sm:$0xff]
          %v1701 = vld [vmem:[#allocation10 + $0x1840] sm:$0xff]
          %v1702 = vld [vmem:[#allocation10 + $0x1848] sm:$0xff]
          %v1703 = vld [vmem:[#allocation10 + $0x1850] sm:$0xff]
          %v1704 = vld [vmem:[#allocation10 + $0x1858] sm:$0xff]
          %v1705 = vld [vmem:[#allocation10 + $0x1860] sm:$0xff]
          %v1706 = vld [vmem:[#allocation10 + $0x1868] sm:$0xff]
          %v1707 = vld [vmem:[#allocation10 + $0x1870] sm:$0xff]
          %v1708 = vld [vmem:[#allocation10 + $0x1878] sm:$0xff]
          %v1709 = vld [vmem:[#allocation10 + $0x1880] sm:$0xff]
          %v1710 = vld [vmem:[#allocation10 + $0x1888] sm:$0xff]
          %v1711 = vld [vmem:[#allocation10 + $0x1890] sm:$0xff]
          %v1712 = vld [vmem:[#allocation10 + $0x1898] sm:$0xff]
          %v1713 = vld [vmem:[#allocation10 + $0x18a0] sm:$0xff]
          %v1714 = vld [vmem:[#allocation10 + $0x18a8] sm:$0xff]
          %v1715 = vld [vmem:[#allocation10 + $0x18b0] sm:$0xff]
          %v1716 = vld [vmem:[#allocation10 + $0x18b8] sm:$0xff]
          %v1717 = vld [vmem:[#allocation10 + $0x18c0] sm:$0xff]
          %v1718 = vld [vmem:[#allocation10 + $0x18c8] sm:$0xff]
          %v1719 = vld [vmem:[#allocation10 + $0x18d0] sm:$0xff]
          %v1720 = vld [vmem:[#allocation10 + $0x18d8] sm:$0xff]
          %v1721 = vld [vmem:[#allocation10 + $0x18e0] sm:$0xff]
          %v1722 = vld [vmem:[#allocation10 + $0x18e8] sm:$0xff]
          %v1723 = vld [vmem:[#allocation10 + $0x18f0] sm:$0xff]
          %v1724 = vld [vmem:[#allocation10 + $0x18f8] sm:$0xff]
          %v1725 = vld [vmem:[#allocation10 + $0x1900] sm:$0xff]
          %v1726 = vld [vmem:[#allocation10 + $0x1908] sm:$0xff]
          %v1727 = vld [vmem:[#allocation10 + $0x1910] sm:$0xff]
          %v1728 = vld [vmem:[#allocation10 + $0x1918] sm:$0xff]
          %v1729 = vld [vmem:[#allocation10 + $0x1920] sm:$0xff]
          %v1730 = vld [vmem:[#allocation10 + $0x1928] sm:$0xff]
          %v1731 = vld [vmem:[#allocation10 + $0x1930] sm:$0xff]
          %v1732 = vld [vmem:[#allocation10 + $0x1938] sm:$0xff]
          %v1733 = vld [vmem:[#allocation10 + $0x1940] sm:$0xff]
          %v1734 = vld [vmem:[#allocation10 + $0x1948] sm:$0xff]
          %v1735 = vld [vmem:[#allocation10 + $0x1950] sm:$0xff]
          %v1736 = vld [vmem:[#allocation10 + $0x1958] sm:$0xff]
          %v1737 = vld [vmem:[#allocation10 + $0x1960] sm:$0xff]
          %v1738 = vld [vmem:[#allocation10 + $0x1968] sm:$0xff]
          %v1739 = vld [vmem:[#allocation10 + $0x1970] sm:$0xff]
          %v1740 = vld [vmem:[#allocation10 + $0x1978] sm:$0xff]
          %v1741 = vld [vmem:[#allocation10 + $0x1980] sm:$0xff]
          %v1742 = vld [vmem:[#allocation10 + $0x1988] sm:$0xff]
          %v1743 = vld [vmem:[#allocation10 + $0x1990] sm:$0xff]
          %v1744 = vld [vmem:[#allocation10 + $0x1998] sm:$0xff]
          %v1745 = vld [vmem:[#allocation10 + $0x19a0] sm:$0xff]
          %v1746 = vld [vmem:[#allocation10 + $0x19a8] sm:$0xff]
          %v1747 = vld [vmem:[#allocation10 + $0x19b0] sm:$0xff]
          %v1748 = vld [vmem:[#allocation10 + $0x19b8] sm:$0xff]
          %v1749 = vld [vmem:[#allocation10 + $0x19c0] sm:$0xff]
          %v1750 = vld [vmem:[#allocation10 + $0x19c8] sm:$0xff]
          %v1751 = vld [vmem:[#allocation10 + $0x19d0] sm:$0xff]
          %v1752 = vld [vmem:[#allocation10 + $0x19d8] sm:$0xff]
          %v1753 = vld [vmem:[#allocation10 + $0x19e0] sm:$0xff]
          %v1754 = vld [vmem:[#allocation10 + $0x19e8] sm:$0xff]
          %v1755 = vld [vmem:[#allocation10 + $0x19f0] sm:$0xff]
          %v1756 = vld [vmem:[#allocation10 + $0x19f8] sm:$0xff]
          %v1757 = vld [vmem:[#allocation10 + $0x1a00] sm:$0xff]
          %v1758 = vld [vmem:[#allocation10 + $0x1a08] sm:$0xff]
          %v1759 = vld [vmem:[#allocation10 + $0x1a10] sm:$0xff]
          %v1760 = vld [vmem:[#allocation10 + $0x1a18] sm:$0xff]
          %v1761 = vld [vmem:[#allocation10 + $0x1a20] sm:$0xff]
          %v1762 = vld [vmem:[#allocation10 + $0x1a28] sm:$0xff]
          %v1763 = vld [vmem:[#allocation10 + $0x1a30] sm:$0xff]
          %v1764 = vld [vmem:[#allocation10 + $0x1a38] sm:$0xff]
          %v1765 = vld [vmem:[#allocation10 + $0x1a40] sm:$0xff]
          %v1766 = vld [vmem:[#allocation10 + $0x1a48] sm:$0xff]
          %v1767 = vld [vmem:[#allocation10 + $0x1a50] sm:$0xff]
          %v1768 = vld [vmem:[#allocation10 + $0x1a58] sm:$0xff]
          %v1769 = vld [vmem:[#allocation10 + $0x1a60] sm:$0xff]
          %v1770 = vld [vmem:[#allocation10 + $0x1a68] sm:$0xff]
          %v1771 = vld [vmem:[#allocation10 + $0x1a70] sm:$0xff]
          %v1772 = vld [vmem:[#allocation10 + $0x1a78] sm:$0xff]
          %v1773 = vld [vmem:[#allocation10 + $0x1a80] sm:$0xff]
          %v1774 = vld [vmem:[#allocation10 + $0x1a88] sm:$0xff]
          %v1775 = vld [vmem:[#allocation10 + $0x1a90] sm:$0xff]
          %v1776 = vld [vmem:[#allocation10 + $0x1a98] sm:$0xff]
          %v1777 = vld [vmem:[#allocation10 + $0x1aa0] sm:$0xff]
          %v1778 = vld [vmem:[#allocation10 + $0x1aa8] sm:$0xff]
          %v1779 = vld [vmem:[#allocation10 + $0x1ab0] sm:$0xff]
          %v1780 = vld [vmem:[#allocation10 + $0x1ab8] sm:$0xff]
          %v1781 = vld [vmem:[#allocation10 + $0x1ac0] sm:$0xff]
          %v1782 = vld [vmem:[#allocation10 + $0x1ac8] sm:$0xff]
          %v1783 = vld [vmem:[#allocation10 + $0x1ad0] sm:$0xff]
          %v1784 = vld [vmem:[#allocation10 + $0x1ad8] sm:$0xff]
          %v1785 = vld [vmem:[#allocation10 + $0x1ae0] sm:$0xff]
          %v1786 = vld [vmem:[#allocation10 + $0x1ae8] sm:$0xff]
          %v1787 = vld [vmem:[#allocation10 + $0x1af0] sm:$0xff]
          %v1788 = vld [vmem:[#allocation10 + $0x1af8] sm:$0xff]
          %v1789 = vld [vmem:[#allocation10 + $0x1b00] sm:$0xff]
          %v1790 = vld [vmem:[#allocation10 + $0x1b08] sm:$0xff]
          %v1791 = vld [vmem:[#allocation10 + $0x1b10] sm:$0xff]
          %v1792 = vld [vmem:[#allocation10 + $0x1b18] sm:$0xff]
          %v1793 = vld [vmem:[#allocation10 + $0x1b20] sm:$0xff]
          %v1794 = vld [vmem:[#allocation10 + $0x1b28] sm:$0xff]
          %v1795 = vld [vmem:[#allocation10 + $0x1b30] sm:$0xff]
          %v1796 = vld [vmem:[#allocation10 + $0x1b38] sm:$0xff]
          %v1797 = vld [vmem:[#allocation10 + $0x1b40] sm:$0xff]
          %v1798 = vld [vmem:[#allocation10 + $0x1b48] sm:$0xff]
          %v1799 = vld [vmem:[#allocation10 + $0x1b50] sm:$0xff]
          %v1800 = vld [vmem:[#allocation10 + $0x1b58] sm:$0xff]
          %v1801 = vld [vmem:[#allocation10 + $0x1b60] sm:$0xff]
          %v1802 = vld [vmem:[#allocation10 + $0x1b68] sm:$0xff]
          %v1803 = vld [vmem:[#allocation10 + $0x1b70] sm:$0xff]
          %v1804 = vld [vmem:[#allocation10 + $0x1b78] sm:$0xff]
          %v1805 = vld [vmem:[#allocation10 + $0x1b80] sm:$0xff]
          %v1806 = vld [vmem:[#allocation10 + $0x1b88] sm:$0xff]
          %v1807 = vld [vmem:[#allocation10 + $0x1b90] sm:$0xff]
          %v1808 = vld [vmem:[#allocation10 + $0x1b98] sm:$0xff]
          %v1809 = vld [vmem:[#allocation10 + $0x1ba0] sm:$0xff]
          %v1810 = vld [vmem:[#allocation10 + $0x1ba8] sm:$0xff]
          %v1811 = vld [vmem:[#allocation10 + $0x1bb0] sm:$0xff]
          %v1812 = vld [vmem:[#allocation10 + $0x1bb8] sm:$0xff]
          %v1813 = vld [vmem:[#allocation10 + $0x1bc0] sm:$0xff]
          %v1814 = vld [vmem:[#allocation10 + $0x1bc8] sm:$0xff]
          %v1815 = vld [vmem:[#allocation10 + $0x1bd0] sm:$0xff]
          %v1816 = vld [vmem:[#allocation10 + $0x1bd8] sm:$0xff]
          %v1817 = vld [vmem:[#allocation10 + $0x1be0] sm:$0xff]
          %v1818 = vld [vmem:[#allocation10 + $0x1be8] sm:$0xff]
          %v1819 = vld [vmem:[#allocation10 + $0x1bf0] sm:$0xff]
          %v1820 = vld [vmem:[#allocation10 + $0x1bf8] sm:$0xff]
          %v1821 = vld [vmem:[#allocation10 + $0x1c00] sm:$0xff]
          %v1822 = vld [vmem:[#allocation10 + $0x1c08] sm:$0xff]
          %v1823 = vld [vmem:[#allocation10 + $0x1c10] sm:$0xff]
          %v1824 = vld [vmem:[#allocation10 + $0x1c18] sm:$0xff]
          %v1825 = vld [vmem:[#allocation10 + $0x1c20] sm:$0xff]
          %v1826 = vld [vmem:[#allocation10 + $0x1c28] sm:$0xff]
          %v1827 = vld [vmem:[#allocation10 + $0x1c30] sm:$0xff]
          %v1828 = vld [vmem:[#allocation10 + $0x1c38] sm:$0xff]
          %v1829 = vld [vmem:[#allocation10 + $0x1c40] sm:$0xff]
          %v1830 = vld [vmem:[#allocation10 + $0x1c48] sm:$0xff]
          %v1831 = vld [vmem:[#allocation10 + $0x1c50] sm:$0xff]
          %v1832 = vld [vmem:[#allocation10 + $0x1c58] sm:$0xff]
          %v1833 = vld [vmem:[#allocation10 + $0x1c60] sm:$0xff]
          %v1834 = vld [vmem:[#allocation10 + $0x1c68] sm:$0xff]
          %v1835 = vld [vmem:[#allocation10 + $0x1c70] sm:$0xff]
          %v1836 = vld [vmem:[#allocation10 + $0x1c78] sm:$0xff]
          %v1837 = vld [vmem:[#allocation10 + $0x1c80] sm:$0xff]
          %v1838 = vld [vmem:[#allocation10 + $0x1c88] sm:$0xff]
          %v1839 = vld [vmem:[#allocation10 + $0x1c90] sm:$0xff]
          %v1840 = vld [vmem:[#allocation10 + $0x1c98] sm:$0xff]
          %v1841 = vld [vmem:[#allocation10 + $0x1ca0] sm:$0xff]
          %v1842 = vld [vmem:[#allocation10 + $0x1ca8] sm:$0xff]
          %v1843 = vld [vmem:[#allocation10 + $0x1cb0] sm:$0xff]
          %v1844 = vld [vmem:[#allocation10 + $0x1cb8] sm:$0xff]
          %v1845 = vld [vmem:[#allocation10 + $0x1cc0] sm:$0xff]
          %v1846 = vld [vmem:[#allocation10 + $0x1cc8] sm:$0xff]
          %v1847 = vld [vmem:[#allocation10 + $0x1cd0] sm:$0xff]
          %v1848 = vld [vmem:[#allocation10 + $0x1cd8] sm:$0xff]
          %v1849 = vld [vmem:[#allocation10 + $0x1ce0] sm:$0xff]
          %v1850 = vld [vmem:[#allocation10 + $0x1ce8] sm:$0xff]
          %v1851 = vld [vmem:[#allocation10 + $0x1cf0] sm:$0xff]
          %v1852 = vld [vmem:[#allocation10 + $0x1cf8] sm:$0xff]
          %v1853 = vld [vmem:[#allocation10 + $0x1d00] sm:$0xff]
          %v1854 = vld [vmem:[#allocation10 + $0x1d08] sm:$0xff]
          %v1855 = vld [vmem:[#allocation10 + $0x1d10] sm:$0xff]
          %v1856 = vld [vmem:[#allocation10 + $0x1d18] sm:$0xff]
          %v1857 = vld [vmem:[#allocation10 + $0x1d20] sm:$0xff]
          %v1858 = vld [vmem:[#allocation10 + $0x1d28] sm:$0xff]
          %v1859 = vld [vmem:[#allocation10 + $0x1d30] sm:$0xff]
          %v1860 = vld [vmem:[#allocation10 + $0x1d38] sm:$0xff]
          %v1861 = vld [vmem:[#allocation10 + $0x1d40] sm:$0xff]
          %v1862 = vld [vmem:[#allocation10 + $0x1d48] sm:$0xff]
          %v1863 = vld [vmem:[#allocation10 + $0x1d50] sm:$0xff]
          %v1864 = vld [vmem:[#allocation10 + $0x1d58] sm:$0xff]
          %v1865 = vld [vmem:[#allocation10 + $0x1d60] sm:$0xff]
          %v1866 = vld [vmem:[#allocation10 + $0x1d68] sm:$0xff]
          %v1867 = vld [vmem:[#allocation10 + $0x1d70] sm:$0xff]
          %v1868 = vld [vmem:[#allocation10 + $0x1d78] sm:$0xff]
          %v1869 = vld [vmem:[#allocation10 + $0x1d80] sm:$0xff]
          %v1870 = vld [vmem:[#allocation10 + $0x1d88] sm:$0xff]
          %v1871 = vld [vmem:[#allocation10 + $0x1d90] sm:$0xff]
          %v1872 = vld [vmem:[#allocation10 + $0x1d98] sm:$0xff]
          %v1873 = vld [vmem:[#allocation10 + $0x1da0] sm:$0xff]
          %v1874 = vld [vmem:[#allocation10 + $0x1da8] sm:$0xff]
          %v1875 = vld [vmem:[#allocation10 + $0x1db0] sm:$0xff]
          %v1876 = vld [vmem:[#allocation10 + $0x1db8] sm:$0xff]
          %v1877 = vld [vmem:[#allocation10 + $0x1dc0] sm:$0xff]
          %v1878 = vld [vmem:[#allocation10 + $0x1dc8] sm:$0xff]
          %v1879 = vld [vmem:[#allocation10 + $0x1dd0] sm:$0xff]
          %v1880 = vld [vmem:[#allocation10 + $0x1dd8] sm:$0xff]
          %v1881 = vld [vmem:[#allocation10 + $0x1de0] sm:$0xff]
          %v1882 = vld [vmem:[#allocation10 + $0x1de8] sm:$0xff]
          %v1883 = vld [vmem:[#allocation10 + $0x1df0] sm:$0xff]
          %v1884 = vld [vmem:[#allocation10 + $0x1df8] sm:$0xff]
          %v1885 = vld [vmem:[#allocation11] sm:$0x3f]
          %v1888 = vlaneseq
          %v1889 = vshrl.u32 %v1888, 7
          %v1890 = vsub.s32 0, %v1889
          %v1891 = vrot.slane %v923, %v1890
          %v1892 = vlaneseq
          %v1893 = vshrl.u32 %v1892, 7
          %v1894 = vsub.s32 1, %v1893
          %v1895 = vrot.slane %v923, %v1894
          %v1896 = vlaneseq
          %v1897 = vshrl.u32 %v1896, 7
          %v1898 = vsub.s32 2, %v1897
          %v1899 = vrot.slane %v923, %v1898
          %v1900 = vlaneseq
          %v1901 = vshrl.u32 %v1900, 7
          %v1902 = vsub.s32 3, %v1901
          %v1903 = vrot.slane %v923, %v1902
          %v1904 = vlaneseq
          %v1905 = vshrl.u32 %v1904, 7
          %v1906 = vsub.s32 4, %v1905
          %v1907 = vrot.slane %v923, %v1906
          %v1908 = vlaneseq
          %v1909 = vshrl.u32 %v1908, 7
          %v1910 = vsub.s32 5, %v1909
          %v1911 = vrot.slane %v923, %v1910
          %v1912 = vlaneseq
          %v1913 = vshrl.u32 %v1912, 7
          %v1914 = vsub.s32 6, %v1913
          %v1915 = vrot.slane %v923, %v1914
          %v1916 = vlaneseq
          %v1917 = vshrl.u32 %v1916, 7
          %v1918 = vsub.s32 7, %v1917
          %v1919 = vrot.slane %v923, %v1918
          %v1920 = vlaneseq
          %v1921 = vshrl.u32 %v1920, 7
          %v1922 = vsub.s32 0, %v1921
          %v1923 = vrot.slane %v924, %v1922
          %v1924 = vlaneseq
          %v1925 = vshrl.u32 %v1924, 7
          %v1926 = vsub.s32 1, %v1925
          %v1927 = vrot.slane %v924, %v1926
          %v1939 = vlaneseq
          %v1940 = vshrl.u32 %v1939, 7
          %v1941 = vsub.s32 0, %v1940
          %v1942 = vrot.slane %v1885, %v1941
          %v1943 = vlaneseq
          %v1944 = vshrl.u32 %v1943, 7
          %v1945 = vsub.s32 1, %v1944
          %v1946 = vrot.slane %v1885, %v1945
          %v1947 = vlaneseq
          %v1948 = vshrl.u32 %v1947, 7
          %v1949 = vsub.s32 2, %v1948
          %v1950 = vrot.slane %v1885, %v1949
          %v1951 = vlaneseq
          %v1952 = vshrl.u32 %v1951, 7
          %v1953 = vsub.s32 3, %v1952
          %v1954 = vrot.slane %v1885, %v1953
          %v1955 = vlaneseq
          %v1956 = vshrl.u32 %v1955, 7
          %v1957 = vsub.s32 4, %v1956
          %v1958 = vrot.slane %v1885, %v1957
          %v1959 = vlaneseq
          %v1960 = vshrl.u32 %v1959, 7
          %v1961 = vsub.s32 5, %v1960
          %v1962 = vrot.slane %v1885, %v1961
          %1969 = vmatprep.subr.mxu0 %v926
          %1970 = vmatpush1.msra.mxu0 %v925
          %1971 = vmatprep.subr.mxu0 %v932
          %1972 = vmatpush1.msra.mxu0 %v931
          %1973 = vmatprep.subr.mxu0 %v938
          %1974 = vmatpush1.msra.mxu0 %v937
          %1975 = vmatprep.subr.mxu0 %v944
          %1976 = vmatpush1.msra.mxu0 %v943
          %1977 = vmatprep.subr.mxu0 %v950
          %1978 = vmatpush1.msra.mxu0 %v949
          %1979 = vmatprep.subr.mxu0 %v956
          %1980 = vmatpush1.msra.mxu0 %v955
          %1981 = vmatprep.subr.mxu0 %v962
          %1982 = vmatpush1.msra.mxu0 %v961
          %1983 = vmatprep.subr.mxu0 %v968
          %1984 = vmatpush1.msra.mxu0 %v967
          %1985 = vmatprep.subr.mxu0 %v974
          %1986 = vmatpush1.msra.mxu0 %v973
          %1987 = vmatprep.subr.mxu0 %v980
          %1988 = vmatpush1.msra.mxu0 %v979
          %1989 = vmatprep.subr.mxu0 %v986
          %1990 = vmatpush1.msra.mxu0 %v985
          %1991 = vmatprep.subr.mxu0 %v992
          %1992 = vmatpush1.msra.mxu0 %v991
          %1993 = vmatprep.subr.mxu0 %v998
          %1994 = vmatpush1.msra.mxu0 %v997
          %1995 = vmatprep.subr.mxu0 %v1004
          %1996 = vmatpush1.msra.mxu0 %v1003
          %1997 = vmatprep.subr.mxu0 %v1010
          %1998 = vmatpush1.msra.mxu0 %v1009
          %1999 = vmatprep.subr.mxu0 %v1016
          %2000 = vmatpush1.msra.mxu0 %v1015
          %2001 = vmatprep.subr.mxu0 %v1022
          %2002 = vmatpush1.msra.mxu0 %v1021
          %2003 = vmatprep.subr.mxu0 %v1028
          %2004 = vmatpush1.msra.mxu0 %v1027
          %2005 = vmatprep.subr.mxu0 %v1034
          %2006 = vmatpush1.msra.mxu0 %v1033
          %2007 = vmatprep.subr.mxu0 %v1040
          %2008 = vmatpush1.msra.mxu0 %v1039
          %2009 = vmatprep.subr.mxu0 %v1046
          %2010 = vmatpush1.msra.mxu0 %v1045
          %2011 = vmatprep.subr.mxu0 %v1052
          %2012 = vmatpush1.msra.mxu0 %v1051
          %2013 = vmatprep.subr.mxu0 %v1058
          %2014 = vmatpush1.msra.mxu0 %v1057
          %2015 = vmatprep.subr.mxu0 %v1064
          %2016 = vmatpush1.msra.mxu0 %v1063
          %2017 = vmatprep.subr.mxu0 %v1070
          %2018 = vmatpush1.msra.mxu0 %v1069
          %2019 = vmatprep.subr.mxu0 %v1076
          %2020 = vmatpush1.msra.mxu0 %v1075
          %2021 = vmatprep.subr.mxu0 %v1082
          %2022 = vmatpush1.msra.mxu0 %v1081
          %2023 = vmatprep.subr.mxu0 %v1088
          %2024 = vmatpush1.msra.mxu0 %v1087
          %2025 = vmatprep.subr.mxu0 %v1094
          %2026 = vmatpush1.msra.mxu0 %v1093
          %2027 = vmatprep.subr.mxu0 %v1100
          %2028 = vmatpush1.msra.mxu0 %v1099
          %2029 = vmatprep.subr.mxu0 %v1106
          %2030 = vmatpush1.msra.mxu0 %v1105
          %2031 = vmatprep.subr.mxu0 %v1112
          %2032 = vmatpush1.msra.mxu0 %v1111
          %2033 = vmatprep.mubr.f32.mxu0 %v1895
          %2034 = vmatmul.mubr.f32.gmra.mrb[0].mxu0 %v1891
          %v2035 = vpop.f32.mrb[0].mxu0
          %v2036 = vadd.f32 %v1942, %v2035
          %v2037 = vpop.f32.mrb[0].mxu0
          %v2038 = vadd.f32 %v1946, %v2037
          %2039 = vdwg.mxu0
          %2040 = vmatprep.subr.mxu0 %v1118
          %2041 = vmatpush1.msra.mxu0 %v1117
          %2042 = vmatprep.subr.mxu0 %v1124
          %2043 = vmatpush1.msra.mxu0 %v1123
          %2044 = vmatprep.subr.mxu0 %v1130
          %2045 = vmatpush1.msra.mxu0 %v1129
          %2046 = vmatprep.subr.mxu0 %v1136
          %2047 = vmatpush1.msra.mxu0 %v1135
          %2048 = vmatprep.subr.mxu0 %v1142
          %2049 = vmatpush1.msra.mxu0 %v1141
          %2050 = vmatprep.subr.mxu0 %v1148
          %2051 = vmatpush1.msra.mxu0 %v1147
          %2052 = vmatprep.subr.mxu0 %v1154
          %2053 = vmatpush1.msra.mxu0 %v1153
          %2054 = vmatprep.subr.mxu0 %v1160
          %2055 = vmatpush1.msra.mxu0 %v1159
          %2056 = vmatprep.subr.mxu0 %v1166
          %2057 = vmatpush1.msra.mxu0 %v1165
          %2058 = vmatprep.subr.mxu0 %v1172
          %2059 = vmatpush1.msra.mxu0 %v1171
          %2060 = vmatprep.subr.mxu0 %v1178
          %2061 = vmatpush1.msra.mxu0 %v1177
          %2062 = vmatprep.subr.mxu0 %v1184
          %2063 = vmatpush1.msra.mxu0 %v1183
          %2064 = vmatprep.subr.mxu0 %v1190
          %2065 = vmatpush1.msra.mxu0 %v1189
          %2066 = vmatprep.subr.mxu0 %v1196
          %2067 = vmatpush1.msra.mxu0 %v1195
          %2068 = vmatprep.subr.mxu0 %v1202
          %2069 = vmatpush1.msra.mxu0 %v1201
          %2070 = vmatprep.subr.mxu0 %v1208
          %2071 = vmatpush1.msra.mxu0 %v1207
          %2072 = vmatprep.subr.mxu0 %v1214
          %2073 = vmatpush1.msra.mxu0 %v1213
          %2074 = vmatprep.subr.mxu0 %v1220
          %2075 = vmatpush1.msra.mxu0 %v1219
          %2076 = vmatprep.subr.mxu0 %v1226
          %2077 = vmatpush1.msra.mxu0 %v1225
          %2078 = vmatprep.subr.mxu0 %v1232
          %2079 = vmatpush1.msra.mxu0 %v1231
          %2080 = vmatprep.subr.mxu0 %v1238
          %2081 = vmatpush1.msra.mxu0 %v1237
          %2082 = vmatprep.subr.mxu0 %v1244
          %2083 = vmatpush1.msra.mxu0 %v1243
          %2084 = vmatprep.subr.mxu0 %v1250
          %2085 = vmatpush1.msra.mxu0 %v1249
          %2086 = vmatprep.subr.mxu0 %v1256
          %2087 = vmatpush1.msra.mxu0 %v1255
          %2088 = vmatprep.subr.mxu0 %v1262
          %2089 = vmatpush1.msra.mxu0 %v1261
          %2090 = vmatprep.subr.mxu0 %v1268
          %2091 = vmatpush1.msra.mxu0 %v1267
          %2092 = vmatprep.subr.mxu0 %v1274
          %2093 = vmatpush1.msra.mxu0 %v1273
          %2094 = vmatprep.subr.mxu0 %v1280
          %2095 = vmatpush1.msra.mxu0 %v1279
          %2096 = vmatprep.subr.mxu0 %v1286
          %2097 = vmatpush1.msra.mxu0 %v1285
          %2098 = vmatprep.subr.mxu0 %v1292
          %2099 = vmatpush1.msra.mxu0 %v1291
          %2100 = vmatprep.subr.mxu0 %v1298
          %2101 = vmatpush1.msra.mxu0 %v1297
          %2102 = vmatprep.subr.mxu0 %v1304
          %2103 = vmatpush1.msra.mxu0 %v1303
          %2104 = vmatprep.mubr.f32.mxu0 %v1903
          %2105 = vmatmul.mubr.f32.gmra.mrb[0].mxu0 %v1899
          %v2106 = vpop.f32.mrb[0].mxu0
          %v2107 = vadd.f32 %v2036, %v2106
          %v2108 = vpop.f32.mrb[0].mxu0
          %v2109 = vadd.f32 %v2038, %v2108
          %2110 = vdwg.mxu0
          %2111 = vmatprep.subr.mxu0 %v1310
          %2112 = vmatpush1.msra.mxu0 %v1309
          %2113 = vmatprep.subr.mxu0 %v1316
          %2114 = vmatpush1.msra.mxu0 %v1315
          %2115 = vmatprep.subr.mxu0 %v1322
          %2116 = vmatpush1.msra.mxu0 %v1321
          %2117 = vmatprep.subr.mxu0 %v1328
          %2118 = vmatpush1.msra.mxu0 %v1327
          %2119 = vmatprep.subr.mxu0 %v1334
          %2120 = vmatpush1.msra.mxu0 %v1333
          %2121 = vmatprep.subr.mxu0 %v1340
          %2122 = vmatpush1.msra.mxu0 %v1339
          %2123 = vmatprep.subr.mxu0 %v1346
          %2124 = vmatpush1.msra.mxu0 %v1345
          %2125 = vmatprep.subr.mxu0 %v1352
          %2126 = vmatpush1.msra.mxu0 %v1351
          %2127 = vmatprep.subr.mxu0 %v1358
          %2128 = vmatpush1.msra.mxu0 %v1357
          %2129 = vmatprep.subr.mxu0 %v1364
          %2130 = vmatpush1.msra.mxu0 %v1363
          %2131 = vmatprep.subr.mxu0 %v1370
          %2132 = vmatpush1.msra.mxu0 %v1369
          %2133 = vmatprep.subr.mxu0 %v1376
          %2134 = vmatpush1.msra.mxu0 %v1375
          %2135 = vmatprep.subr.mxu0 %v1382
          %2136 = vmatpush1.msra.mxu0 %v1381
          %2137 = vmatprep.subr.mxu0 %v1388
          %2138 = vmatpush1.msra.mxu0 %v1387
          %2139 = vmatprep.subr.mxu0 %v1394
          %2140 = vmatpush1.msra.mxu0 %v1393
          %2141 = vmatprep.subr.mxu0 %v1400
          %2142 = vmatpush1.msra.mxu0 %v1399
          %2143 = vmatprep.subr.mxu0 %v1406
          %2144 = vmatpush1.msra.mxu0 %v1405
          %2145 = vmatprep.subr.mxu0 %v1412
          %2146 = vmatpush1.msra.mxu0 %v1411
          %2147 = vmatprep.subr.mxu0 %v1418
          %2148 = vmatpush1.msra.mxu0 %v1417
          %2149 = vmatprep.subr.mxu0 %v1424
          %2150 = vmatpush1.msra.mxu0 %v1423
          %2151 = vmatprep.subr.mxu0 %v1430
          %2152 = vmatpush1.msra.mxu0 %v1429
          %2153 = vmatprep.subr.mxu0 %v1436
          %2154 = vmatpush1.msra.mxu0 %v1435
          %2155 = vmatprep.subr.mxu0 %v1442
          %2156 = vmatpush1.msra.mxu0 %v1441
          %2157 = vmatprep.subr.mxu0 %v1448
          %2158 = vmatpush1.msra.mxu0 %v1447
          %2159 = vmatprep.subr.mxu0 %v1454
          %2160 = vmatpush1.msra.mxu0 %v1453
          %2161 = vmatprep.subr.mxu0 %v1460
          %2162 = vmatpush1.msra.mxu0 %v1459
          %2163 = vmatprep.subr.mxu0 %v1466
          %2164 = vmatpush1.msra.mxu0 %v1465
          %2165 = vmatprep.subr.mxu0 %v1472
          %2166 = vmatpush1.msra.mxu0 %v1471
          %2167 = vmatprep.subr.mxu0 %v1478
          %2168 = vmatpush1.msra.mxu0 %v1477
          %2169 = vmatprep.subr.mxu0 %v1484
          %2170 = vmatpush1.msra.mxu0 %v1483
          %2171 = vmatprep.subr.mxu0 %v1490
          %2172 = vmatpush1.msra.mxu0 %v1489
          %2173 = vmatprep.subr.mxu0 %v1496
          %2174 = vmatpush1.msra.mxu0 %v1495
          %2175 = vmatprep.mubr.f32.mxu0 %v1911
          %2176 = vmatmul.mubr.f32.gmra.mrb[0].mxu0 %v1907
          %v2177 = vpop.f32.mrb[0].mxu0
          %v2178 = vadd.f32 %v2107, %v2177
          %v2179 = vpop.f32.mrb[0].mxu0
          %v2180 = vadd.f32 %v2109, %v2179
          %2181 = vdwg.mxu0
          %2182 = vmatprep.subr.mxu0 %v1502
          %2183 = vmatpush1.msra.mxu0 %v1501
          %2184 = vmatprep.subr.mxu0 %v1508
          %2185 = vmatpush1.msra.mxu0 %v1507
          %2186 = vmatprep.subr.mxu0 %v1514
          %2187 = vmatpush1.msra.mxu0 %v1513
          %2188 = vmatprep.subr.mxu0 %v1520
          %2189 = vmatpush1.msra.mxu0 %v1519
          %2190 = vmatprep.subr.mxu0 %v1526
          %2191 = vmatpush1.msra.mxu0 %v1525
          %2192 = vmatprep.subr.mxu0 %v1532
          %2193 = vmatpush1.msra.mxu0 %v1531
          %2194 = vmatprep.subr.mxu0 %v1538
          %2195 = vmatpush1.msra.mxu0 %v1537
          %2196 = vmatprep.subr.mxu0 %v1544
          %2197 = vmatpush1.msra.mxu0 %v1543
          %2198 = vmatprep.subr.mxu0 %v1550
          %2199 = vmatpush1.msra.mxu0 %v1549
          %2200 = vmatprep.subr.mxu0 %v1556
          %2201 = vmatpush1.msra.mxu0 %v1555
          %2202 = vmatprep.subr.mxu0 %v1562
          %2203 = vmatpush1.msra.mxu0 %v1561
          %2204 = vmatprep.subr.mxu0 %v1568
          %2205 = vmatpush1.msra.mxu0 %v1567
          %2206 = vmatprep.subr.mxu0 %v1574
          %2207 = vmatpush1.msra.mxu0 %v1573
          %2208 = vmatprep.subr.mxu0 %v1580
          %2209 = vmatpush1.msra.mxu0 %v1579
          %2210 = vmatprep.subr.mxu0 %v1586
          %2211 = vmatpush1.msra.mxu0 %v1585
          %2212 = vmatprep.subr.mxu0 %v1592
          %2213 = vmatpush1.msra.mxu0 %v1591
          %2214 = vmatprep.subr.mxu0 %v1598
          %2215 = vmatpush1.msra.mxu0 %v1597
          %2216 = vmatprep.subr.mxu0 %v1604
          %2217 = vmatpush1.msra.mxu0 %v1603
          %2218 = vmatprep.subr.mxu0 %v1610
          %2219 = vmatpush1.msra.mxu0 %v1609
          %2220 = vmatprep.subr.mxu0 %v1616
          %2221 = vmatpush1.msra.mxu0 %v1615
          %2222 = vmatprep.subr.mxu0 %v1622
          %2223 = vmatpush1.msra.mxu0 %v1621
          %2224 = vmatprep.subr.mxu0 %v1628
          %2225 = vmatpush1.msra.mxu0 %v1627
          %2226 = vmatprep.subr.mxu0 %v1634
          %2227 = vmatpush1.msra.mxu0 %v1633
          %2228 = vmatprep.subr.mxu0 %v1640
          %2229 = vmatpush1.msra.mxu0 %v1639
          %2230 = vmatprep.subr.mxu0 %v1646
          %2231 = vmatpush1.msra.mxu0 %v1645
          %2232 = vmatprep.subr.mxu0 %v1652
          %2233 = vmatpush1.msra.mxu0 %v1651
          %2234 = vmatprep.subr.mxu0 %v1658
          %2235 = vmatpush1.msra.mxu0 %v1657
          %2236 = vmatprep.subr.mxu0 %v1664
          %2237 = vmatpush1.msra.mxu0 %v1663
          %2238 = vmatprep.subr.mxu0 %v1670
          %2239 = vmatpush1.msra.mxu0 %v1669
          %2240 = vmatprep.subr.mxu0 %v1676
          %2241 = vmatpush1.msra.mxu0 %v1675
          %2242 = vmatprep.subr.mxu0 %v1682
          %2243 = vmatpush1.msra.mxu0 %v1681
          %2244 = vmatprep.subr.mxu0 %v1688
          %2245 = vmatpush1.msra.mxu0 %v1687
          %2246 = vmatprep.mubr.f32.mxu0 %v1919
          %2247 = vmatmul.mubr.f32.gmra.mrb[0].mxu0 %v1915
          %v2248 = vpop.f32.mrb[0].mxu0
          %v2249 = vadd.f32 %v2178, %v2248
          %v2250 = vpop.f32.mrb[0].mxu0
          %v2251 = vadd.f32 %v2180, %v2250
          %2252 = vdwg.mxu0
          %2253 = vmatprep.subr.mxu0 %v1694
          %2254 = vmatpush1.msra.mxu0 %v1693
          %2255 = vmatprep.subr.mxu0 %v1700
          %2256 = vmatpush1.msra.mxu0 %v1699
          %2257 = vmatprep.subr.mxu0 %v1706
          %2258 = vmatpush1.msra.mxu0 %v1705
          %2259 = vmatprep.subr.mxu0 %v1712
          %2260 = vmatpush1.msra.mxu0 %v1711
          %2261 = vmatprep.subr.mxu0 %v1718
          %2262 = vmatpush1.msra.mxu0 %v1717
          %2263 = vmatprep.subr.mxu0 %v1724
          %2264 = vmatpush1.msra.mxu0 %v1723
          %2265 = vmatprep.subr.mxu0 %v1730
          %2266 = vmatpush1.msra.mxu0 %v1729
          %2267 = vmatprep.subr.mxu0 %v1736
          %2268 = vmatpush1.msra.mxu0 %v1735
          %2269 = vmatprep.subr.mxu0 %v1742
          %2270 = vmatpush1.msra.mxu0 %v1741
          %2271 = vmatprep.subr.mxu0 %v1748
          %2272 = vmatpush1.msra.mxu0 %v1747
          %2273 = vmatprep.subr.mxu0 %v1754
          %2274 = vmatpush1.msra.mxu0 %v1753
          %2275 = vmatprep.subr.mxu0 %v1760
          %2276 = vmatpush1.msra.mxu0 %v1759
          %2277 = vmatprep.subr.mxu0 %v1766
          %2278 = vmatpush1.msra.mxu0 %v1765
          %2279 = vmatprep.subr.mxu0 %v1772
          %2280 = vmatpush1.msra.mxu0 %v1771
          %2281 = vmatprep.subr.mxu0 %v1778
          %2282 = vmatpush1.msra.mxu0 %v1777
          %2283 = vmatprep.subr.mxu0 %v1784
          %2284 = vmatpush1.msra.mxu0 %v1783
          %2285 = vmatprep.subr.mxu0 %v1790
          %2286 = vmatpush1.msra.mxu0 %v1789
          %2287 = vmatprep.subr.mxu0 %v1796
          %2288 = vmatpush1.msra.mxu0 %v1795
          %2289 = vmatprep.subr.mxu0 %v1802
          %2290 = vmatpush1.msra.mxu0 %v1801
          %2291 = vmatprep.subr.mxu0 %v1808
          %2292 = vmatpush1.msra.mxu0 %v1807
          %2293 = vmatprep.subr.mxu0 %v1814
          %2294 = vmatpush1.msra.mxu0 %v1813
          %2295 = vmatprep.subr.mxu0 %v1820
          %2296 = vmatpush1.msra.mxu0 %v1819
          %2297 = vmatprep.subr.mxu0 %v1826
          %2298 = vmatpush1.msra.mxu0 %v1825
          %2299 = vmatprep.subr.mxu0 %v1832
          %2300 = vmatpush1.msra.mxu0 %v1831
          %2301 = vmatprep.subr.mxu0 %v1838
          %2302 = vmatpush1.msra.mxu0 %v1837
          %2303 = vmatprep.subr.mxu0 %v1844
          %2304 = vmatpush1.msra.mxu0 %v1843
          %2305 = vmatprep.subr.mxu0 %v1850
          %2306 = vmatpush1.msra.mxu0 %v1849
          %2307 = vmatprep.subr.mxu0 %v1856
          %2308 = vmatpush1.msra.mxu0 %v1855
          %2309 = vmatprep.subr.mxu0 %v1862
          %2310 = vmatpush1.msra.mxu0 %v1861
          %2311 = vmatprep.subr.mxu0 %v1868
          %2312 = vmatpush1.msra.mxu0 %v1867
          %2313 = vmatprep.subr.mxu0 %v1874
          %2314 = vmatpush1.msra.mxu0 %v1873
          %2315 = vmatprep.subr.mxu0 %v1880
          %2316 = vmatpush1.msra.mxu0 %v1879
          %2317 = vmatprep.mubr.f32.mxu0 %v1927
          %2318 = vmatmul.mubr.f32.gmra.mrb[0].mxu0 %v1923
          %v2319 = vpop.f32.mrb[0].mxu0
          %v2320 = vadd.f32 %v2249, %v2319
          %v2321 = vpop.f32.mrb[0].mxu0
          %v2322 = vadd.f32 %v2251, %v2321
          %2323 = vdwg.mxu0
          %2324 = vmatprep.subr.mxu0 %v928
          %2325 = vmatpush1.msra.mxu0 %v927
          %2326 = vmatprep.subr.mxu0 %v934
          %2327 = vmatpush1.msra.mxu0 %v933
          %2328 = vmatprep.subr.mxu0 %v940
          %2329 = vmatpush1.msra.mxu0 %v939
          %2330 = vmatprep.subr.mxu0 %v946
          %2331 = vmatpush1.msra.mxu0 %v945
          %2332 = vmatprep.subr.mxu0 %v952
          %2333 = vmatpush1.msra.mxu0 %v951
          %2334 = vmatprep.subr.mxu0 %v958
          %2335 = vmatpush1.msra.mxu0 %v957
          %2336 = vmatprep.subr.mxu0 %v964
          %2337 = vmatpush1.msra.mxu0 %v963
          %2338 = vmatprep.subr.mxu0 %v970
          %2339 = vmatpush1.msra.mxu0 %v969
          %2340 = vmatprep.subr.mxu0 %v976
          %2341 = vmatpush1.msra.mxu0 %v975
          %2342 = vmatprep.subr.mxu0 %v982
          %2343 = vmatpush1.msra.mxu0 %v981
          %2344 = vmatprep.subr.mxu0 %v988
          %2345 = vmatpush1.msra.mxu0 %v987
          %2346 = vmatprep.subr.mxu0 %v994
          %2347 = vmatpush1.msra.mxu0 %v993
          %2348 = vmatprep.subr.mxu0 %v1000
          %2349 = vmatpush1.msra.mxu0 %v999
          %2350 = vmatprep.subr.mxu0 %v1006
          %2351 = vmatpush1.msra.mxu0 %v1005
          %2352 = vmatprep.subr.mxu0 %v1012
          %2353 = vmatpush1.msra.mxu0 %v1011
          %2354 = vmatprep.subr.mxu0 %v1018
          %2355 = vmatpush1.msra.mxu0 %v1017
          %2356 = vmatprep.subr.mxu0 %v1024
          %2357 = vmatpush1.msra.mxu0 %v1023
          %2358 = vmatprep.subr.mxu0 %v1030
          %2359 = vmatpush1.msra.mxu0 %v1029
          %2360 = vmatprep.subr.mxu0 %v1036
          %2361 = vmatpush1.msra.mxu0 %v1035
          %2362 = vmatprep.subr.mxu0 %v1042
          %2363 = vmatpush1.msra.mxu0 %v1041
          %2364 = vmatprep.subr.mxu0 %v1048
          %2365 = vmatpush1.msra.mxu0 %v1047
          %2366 = vmatprep.subr.mxu0 %v1054
          %2367 = vmatpush1.msra.mxu0 %v1053
          %2368 = vmatprep.subr.mxu0 %v1060
          %2369 = vmatpush1.msra.mxu0 %v1059
          %2370 = vmatprep.subr.mxu0 %v1066
          %2371 = vmatpush1.msra.mxu0 %v1065
          %2372 = vmatprep.subr.mxu0 %v1072
          %2373 = vmatpush1.msra.mxu0 %v1071
          %2374 = vmatprep.subr.mxu0 %v1078
          %2375 = vmatpush1.msra.mxu0 %v1077
          %2376 = vmatprep.subr.mxu0 %v1084
          %2377 = vmatpush1.msra.mxu0 %v1083
          %2378 = vmatprep.subr.mxu0 %v1090
          %2379 = vmatpush1.msra.mxu0 %v1089
          %2380 = vmatprep.subr.mxu0 %v1096
          %2381 = vmatpush1.msra.mxu0 %v1095
          %2382 = vmatprep.subr.mxu0 %v1102
          %2383 = vmatpush1.msra.mxu0 %v1101
          %2384 = vmatprep.subr.mxu0 %v1108
          %2385 = vmatpush1.msra.mxu0 %v1107
          %2386 = vmatprep.subr.mxu0 %v1114
          %2387 = vmatpush1.msra.mxu0 %v1113
          %2388 = vmatprep.mubr.f32.mxu0 %v1895
          %2389 = vmatmul.mubr.f32.gmra.mrb[0].mxu0 %v1891
          %v2390 = vpop.f32.mrb[0].mxu0
          %v2391 = vadd.f32 %v1950, %v2390
          %v2392 = vpop.f32.mrb[0].mxu0
          %v2393 = vadd.f32 %v1954, %v2392
          %2394 = vdwg.mxu0
          %2395 = vmatprep.subr.mxu0 %v1120
          %2396 = vmatpush1.msra.mxu0 %v1119
          %2397 = vmatprep.subr.mxu0 %v1126
          %2398 = vmatpush1.msra.mxu0 %v1125
          %2399 = vmatprep.subr.mxu0 %v1132
          %2400 = vmatpush1.msra.mxu0 %v1131
          %2401 = vmatprep.subr.mxu0 %v1138
          %2402 = vmatpush1.msra.mxu0 %v1137
          %2403 = vmatprep.subr.mxu0 %v1144
          %2404 = vmatpush1.msra.mxu0 %v1143
          %2405 = vmatprep.subr.mxu0 %v1150
          %2406 = vmatpush1.msra.mxu0 %v1149
          %2407 = vmatprep.subr.mxu0 %v1156
          %2408 = vmatpush1.msra.mxu0 %v1155
          %2409 = vmatprep.subr.mxu0 %v1162
          %2410 = vmatpush1.msra.mxu0 %v1161
          %2411 = vmatprep.subr.mxu0 %v1168
          %2412 = vmatpush1.msra.mxu0 %v1167
          %2413 = vmatprep.subr.mxu0 %v1174
          %2414 = vmatpush1.msra.mxu0 %v1173
          %2415 = vmatprep.subr.mxu0 %v1180
          %2416 = vmatpush1.msra.mxu0 %v1179
          %2417 = vmatprep.subr.mxu0 %v1186
          %2418 = vmatpush1.msra.mxu0 %v1185
          %2419 = vmatprep.subr.mxu0 %v1192
          %2420 = vmatpush1.msra.mxu0 %v1191
          %2421 = vmatprep.subr.mxu0 %v1198
          %2422 = vmatpush1.msra.mxu0 %v1197
          %2423 = vmatprep.subr.mxu0 %v1204
          %2424 = vmatpush1.msra.mxu0 %v1203
          %2425 = vmatprep.subr.mxu0 %v1210
          %2426 = vmatpush1.msra.mxu0 %v1209
          %2427 = vmatprep.subr.mxu0 %v1216
          %2428 = vmatpush1.msra.mxu0 %v1215
          %2429 = vmatprep.subr.mxu0 %v1222
          %2430 = vmatpush1.msra.mxu0 %v1221
          %2431 = vmatprep.subr.mxu0 %v1228
          %2432 = vmatpush1.msra.mxu0 %v1227
          %2433 = vmatprep.subr.mxu0 %v1234
          %2434 = vmatpush1.msra.mxu0 %v1233
          %2435 = vmatprep.subr.mxu0 %v1240
          %2436 = vmatpush1.msra.mxu0 %v1239
          %2437 = vmatprep.subr.mxu0 %v1246
          %2438 = vmatpush1.msra.mxu0 %v1245
          %2439 = vmatprep.subr.mxu0 %v1252
          %2440 = vmatpush1.msra.mxu0 %v1251
          %2441 = vmatprep.subr.mxu0 %v1258
          %2442 = vmatpush1.msra.mxu0 %v1257
          %2443 = vmatprep.subr.mxu0 %v1264
          %2444 = vmatpush1.msra.mxu0 %v1263
          %2445 = vmatprep.subr.mxu0 %v1270
          %2446 = vmatpush1.msra.mxu0 %v1269
          %2447 = vmatprep.subr.mxu0 %v1276
          %2448 = vmatpush1.msra.mxu0 %v1275
          %2449 = vmatprep.subr.mxu0 %v1282
          %2450 = vmatpush1.msra.mxu0 %v1281
          %2451 = vmatprep.subr.mxu0 %v1288
          %2452 = vmatpush1.msra.mxu0 %v1287
          %2453 = vmatprep.subr.mxu0 %v1294
          %2454 = vmatpush1.msra.mxu0 %v1293
          %2455 = vmatprep.subr.mxu0 %v1300
          %2456 = vmatpush1.msra.mxu0 %v1299
          %2457 = vmatprep.subr.mxu0 %v1306
          %2458 = vmatpush1.msra.mxu0 %v1305
          %2459 = vmatprep.mubr.f32.mxu0 %v1903
          %2460 = vmatmul.mubr.f32.gmra.mrb[0].mxu0 %v1899
          %v2461 = vpop.f32.mrb[0].mxu0
          %v2462 = vadd.f32 %v2391, %v2461
          %v2463 = vpop.f32.mrb[0].mxu0
          %v2464 = vadd.f32 %v2393, %v2463
          %2465 = vdwg.mxu0
          %2466 = vmatprep.subr.mxu0 %v1312
          %2467 = vmatpush1.msra.mxu0 %v1311
          %2468 = vmatprep.subr.mxu0 %v1318
          %2469 = vmatpush1.msra.mxu0 %v1317
          %2470 = vmatprep.subr.mxu0 %v1324
          %2471 = vmatpush1.msra.mxu0 %v1323
          %2472 = vmatprep.subr.mxu0 %v1330
          %2473 = vmatpush1.msra.mxu0 %v1329
          %2474 = vmatprep.subr.mxu0 %v1336
          %2475 = vmatpush1.msra.mxu0 %v1335
          %2476 = vmatprep.subr.mxu0 %v1342
          %2477 = vmatpush1.msra.mxu0 %v1341
          %2478 = vmatprep.subr.mxu0 %v1348
          %2479 = vmatpush1.msra.mxu0 %v1347
          %2480 = vmatprep.subr.mxu0 %v1354
          %2481 = vmatpush1.msra.mxu0 %v1353
          %2482 = vmatprep.subr.mxu0 %v1360
          %2483 = vmatpush1.msra.mxu0 %v1359
          %2484 = vmatprep.subr.mxu0 %v1366
          %2485 = vmatpush1.msra.mxu0 %v1365
          %2486 = vmatprep.subr.mxu0 %v1372
          %2487 = vmatpush1.msra.mxu0 %v1371
          %2488 = vmatprep.subr.mxu0 %v1378
          %2489 = vmatpush1.msra.mxu0 %v1377
          %2490 = vmatprep.subr.mxu0 %v1384
          %2491 = vmatpush1.msra.mxu0 %v1383
          %2492 = vmatprep.subr.mxu0 %v1390
          %2493 = vmatpush1.msra.mxu0 %v1389
          %2494 = vmatprep.subr.mxu0 %v1396
          %2495 = vmatpush1.msra.mxu0 %v1395
          %2496 = vmatprep.subr.mxu0 %v1402
          %2497 = vmatpush1.msra.mxu0 %v1401
          %2498 = vmatprep.subr.mxu0 %v1408
          %2499 = vmatpush1.msra.mxu0 %v1407
          %2500 = vmatprep.subr.mxu0 %v1414
          %2501 = vmatpush1.msra.mxu0 %v1413
          %2502 = vmatprep.subr.mxu0 %v1420
          %2503 = vmatpush1.msra.mxu0 %v1419
          %2504 = vmatprep.subr.mxu0 %v1426
          %2505 = vmatpush1.msra.mxu0 %v1425
          %2506 = vmatprep.subr.mxu0 %v1432
          %2507 = vmatpush1.msra.mxu0 %v1431
          %2508 = vmatprep.subr.mxu0 %v1438
          %2509 = vmatpush1.msra.mxu0 %v1437
          %2510 = vmatprep.subr.mxu0 %v1444
          %2511 = vmatpush1.msra.mxu0 %v1443
          %2512 = vmatprep.subr.mxu0 %v1450
          %2513 = vmatpush1.msra.mxu0 %v1449
          %2514 = vmatprep.subr.mxu0 %v1456
          %2515 = vmatpush1.msra.mxu0 %v1455
          %2516 = vmatprep.subr.mxu0 %v1462
          %2517 = vmatpush1.msra.mxu0 %v1461
          %2518 = vmatprep.subr.mxu0 %v1468
          %2519 = vmatpush1.msra.mxu0 %v1467
          %2520 = vmatprep.subr.mxu0 %v1474
          %2521 = vmatpush1.msra.mxu0 %v1473
          %2522 = vmatprep.subr.mxu0 %v1480
          %2523 = vmatpush1.msra.mxu0 %v1479
          %2524 = vmatprep.subr.mxu0 %v1486
          %2525 = vmatpush1.msra.mxu0 %v1485
          %2526 = vmatprep.subr.mxu0 %v1492
          %2527 = vmatpush1.msra.mxu0 %v1491
          %2528 = vmatprep.subr.mxu0 %v1498
          %2529 = vmatpush1.msra.mxu0 %v1497
          %2530 = vmatprep.mubr.f32.mxu0 %v1911
          %2531 = vmatmul.mubr.f32.gmra.mrb[0].mxu0 %v1907
          %v2532 = vpop.f32.mrb[0].mxu0
          %v2533 = vadd.f32 %v2462, %v2532
          %v2534 = vpop.f32.mrb[0].mxu0
          %v2535 = vadd.f32 %v2464, %v2534
          %2536 = vdwg.mxu0
          %2537 = vmatprep.subr.mxu0 %v1504
          %2538 = vmatpush1.msra.mxu0 %v1503
          %2539 = vmatprep.subr.mxu0 %v1510
          %2540 = vmatpush1.msra.mxu0 %v1509
          %2541 = vmatprep.subr.mxu0 %v1516
          %2542 = vmatpush1.msra.mxu0 %v1515
          %2543 = vmatprep.subr.mxu0 %v1522
          %2544 = vmatpush1.msra.mxu0 %v1521
          %2545 = vmatprep.subr.mxu0 %v1528
          %2546 = vmatpush1.msra.mxu0 %v1527
          %2547 = vmatprep.subr.mxu0 %v1534
          %2548 = vmatpush1.msra.mxu0 %v1533
          %2549 = vmatprep.subr.mxu0 %v1540
          %2550 = vmatpush1.msra.mxu0 %v1539
          %2551 = vmatprep.subr.mxu0 %v1546
          %2552 = vmatpush1.msra.mxu0 %v1545
          %2553 = vmatprep.subr.mxu0 %v1552
          %2554 = vmatpush1.msra.mxu0 %v1551
          %2555 = vmatprep.subr.mxu0 %v1558
          %2556 = vmatpush1.msra.mxu0 %v1557
          %2557 = vmatprep.subr.mxu0 %v1564
          %2558 = vmatpush1.msra.mxu0 %v1563
          %2559 = vmatprep.subr.mxu0 %v1570
          %2560 = vmatpush1.msra.mxu0 %v1569
          %2561 = vmatprep.subr.mxu0 %v1576
          %2562 = vmatpush1.msra.mxu0 %v1575
          %2563 = vmatprep.subr.mxu0 %v1582
          %2564 = vmatpush1.msra.mxu0 %v1581
          %2565 = vmatprep.subr.mxu0 %v1588
          %2566 = vmatpush1.msra.mxu0 %v1587
          %2567 = vmatprep.subr.mxu0 %v1594
          %2568 = vmatpush1.msra.mxu0 %v1593
          %2569 = vmatprep.subr.mxu0 %v1600
          %2570 = vmatpush1.msra.mxu0 %v1599
          %2571 = vmatprep.subr.mxu0 %v1606
          %2572 = vmatpush1.msra.mxu0 %v1605
          %2573 = vmatprep.subr.mxu0 %v1612
          %2574 = vmatpush1.msra.mxu0 %v1611
          %2575 = vmatprep.subr.mxu0 %v1618
          %2576 = vmatpush1.msra.mxu0 %v1617
          %2577 = vmatprep.subr.mxu0 %v1624
          %2578 = vmatpush1.msra.mxu0 %v1623
          %2579 = vmatprep.subr.mxu0 %v1630
          %2580 = vmatpush1.msra.mxu0 %v1629
          %2581 = vmatprep.subr.mxu0 %v1636
          %2582 = vmatpush1.msra.mxu0 %v1635
          %2583 = vmatprep.subr.mxu0 %v1642
          %2584 = vmatpush1.msra.mxu0 %v1641
          %2585 = vmatprep.subr.mxu0 %v1648
          %2586 = vmatpush1.msra.mxu0 %v1647
          %2587 = vmatprep.subr.mxu0 %v1654
          %2588 = vmatpush1.msra.mxu0 %v1653
          %2589 = vmatprep.subr.mxu0 %v1660
          %2590 = vmatpush1.msra.mxu0 %v1659
          %2591 = vmatprep.subr.mxu0 %v1666
          %2592 = vmatpush1.msra.mxu0 %v1665
          %2593 = vmatprep.subr.mxu0 %v1672
          %2594 = vmatpush1.msra.mxu0 %v1671
          %2595 = vmatprep.subr.mxu0 %v1678
          %2596 = vmatpush1.msra.mxu0 %v1677
          %2597 = vmatprep.subr.mxu0 %v1684
          %2598 = vmatpush1.msra.mxu0 %v1683
          %2599 = vmatprep.subr.mxu0 %v1690
          %2600 = vmatpush1.msra.mxu0 %v1689
          %2601 = vmatprep.mubr.f32.mxu0 %v1919
          %2602 = vmatmul.mubr.f32.gmra.mrb[0].mxu0 %v1915
          %v2603 = vpop.f32.mrb[0].mxu0
          %v2604 = vadd.f32 %v2533, %v2603
          %v2605 = vpop.f32.mrb[0].mxu0
          %v2606 = vadd.f32 %v2535, %v2605
          %2607 = vdwg.mxu0
          %2608 = vmatprep.subr.mxu0 %v1696
          %2609 = vmatpush1.msra.mxu0 %v1695
          %2610 = vmatprep.subr.mxu0 %v1702
          %2611 = vmatpush1.msra.mxu0 %v1701
          %2612 = vmatprep.subr.mxu0 %v1708
          %2613 = vmatpush1.msra.mxu0 %v1707
          %2614 = vmatprep.subr.mxu0 %v1714
          %2615 = vmatpush1.msra.mxu0 %v1713
          %2616 = vmatprep.subr.mxu0 %v1720
          %2617 = vmatpush1.msra.mxu0 %v1719
          %2618 = vmatprep.subr.mxu0 %v1726
          %2619 = vmatpush1.msra.mxu0 %v1725
          %2620 = vmatprep.subr.mxu0 %v1732
          %2621 = vmatpush1.msra.mxu0 %v1731
          %2622 = vmatprep.subr.mxu0 %v1738
          %2623 = vmatpush1.msra.mxu0 %v1737
          %2624 = vmatprep.subr.mxu0 %v1744
          %2625 = vmatpush1.msra.mxu0 %v1743
          %2626 = vmatprep.subr.mxu0 %v1750
          %2627 = vmatpush1.msra.mxu0 %v1749
          %2628 = vmatprep.subr.mxu0 %v1756
          %2629 = vmatpush1.msra.mxu0 %v1755
          %2630 = vmatprep.subr.mxu0 %v1762
          %2631 = vmatpush1.msra.mxu0 %v1761
          %2632 = vmatprep.subr.mxu0 %v1768
          %2633 = vmatpush1.msra.mxu0 %v1767
          %2634 = vmatprep.subr.mxu0 %v1774
          %2635 = vmatpush1.msra.mxu0 %v1773
          %2636 = vmatprep.subr.mxu0 %v1780
          %2637 = vmatpush1.msra.mxu0 %v1779
          %2638 = vmatprep.subr.mxu0 %v1786
          %2639 = vmatpush1.msra.mxu0 %v1785
          %2640 = vmatprep.subr.mxu0 %v1792
          %2641 = vmatpush1.msra.mxu0 %v1791
          %2642 = vmatprep.subr.mxu0 %v1798
          %2643 = vmatpush1.msra.mxu0 %v1797
          %2644 = vmatprep.subr.mxu0 %v1804
          %2645 = vmatpush1.msra.mxu0 %v1803
          %2646 = vmatprep.subr.mxu0 %v1810
          %2647 = vmatpush1.msra.mxu0 %v1809
          %2648 = vmatprep.subr.mxu0 %v1816
          %2649 = vmatpush1.msra.mxu0 %v1815
          %2650 = vmatprep.subr.mxu0 %v1822
          %2651 = vmatpush1.msra.mxu0 %v1821
          %2652 = vmatprep.subr.mxu0 %v1828
          %2653 = vmatpush1.msra.mxu0 %v1827
          %2654 = vmatprep.subr.mxu0 %v1834
          %2655 = vmatpush1.msra.mxu0 %v1833
          %2656 = vmatprep.subr.mxu0 %v1840
          %2657 = vmatpush1.msra.mxu0 %v1839
          %2658 = vmatprep.subr.mxu0 %v1846
          %2659 = vmatpush1.msra.mxu0 %v1845
          %2660 = vmatprep.subr.mxu0 %v1852
          %2661 = vmatpush1.msra.mxu0 %v1851
          %2662 = vmatprep.subr.mxu0 %v1858
          %2663 = vmatpush1.msra.mxu0 %v1857
          %2664 = vmatprep.subr.mxu0 %v1864
          %2665 = vmatpush1.msra.mxu0 %v1863
          %2666 = vmatprep.subr.mxu0 %v1870
          %2667 = vmatpush1.msra.mxu0 %v1869
          %2668 = vmatprep.subr.mxu0 %v1876
          %2669 = vmatpush1.msra.mxu0 %v1875
          %2670 = vmatprep.subr.mxu0 %v1882
          %2671 = vmatpush1.msra.mxu0 %v1881
          %2672 = vmatprep.mubr.f32.mxu0 %v1927
          %2673 = vmatmul.mubr.f32.gmra.mrb[0].mxu0 %v1923
          %v2674 = vpop.f32.mrb[0].mxu0
          %v2675 = vadd.f32 %v2604, %v2674
          %v2676 = vpop.f32.mrb[0].mxu0
          %v2677 = vadd.f32 %v2606, %v2676
          %2678 = vdwg.mxu0
          %2679 = vmatprep.subr.mxu0 %v930
          %2680 = vmatpush1.msra.mxu0 %v929
          %2681 = vmatprep.subr.mxu0 %v936
          %2682 = vmatpush1.msra.mxu0 %v935
          %2683 = vmatprep.subr.mxu0 %v942
          %2684 = vmatpush1.msra.mxu0 %v941
          %2685 = vmatprep.subr.mxu0 %v948
          %2686 = vmatpush1.msra.mxu0 %v947
          %2687 = vmatprep.subr.mxu0 %v954
          %2688 = vmatpush1.msra.mxu0 %v953
          %2689 = vmatprep.subr.mxu0 %v960
          %2690 = vmatpush1.msra.mxu0 %v959
          %2691 = vmatprep.subr.mxu0 %v966
          %2692 = vmatpush1.msra.mxu0 %v965
          %2693 = vmatprep.subr.mxu0 %v972
          %2694 = vmatpush1.msra.mxu0 %v971
          %2695 = vmatprep.subr.mxu0 %v978
          %2696 = vmatpush1.msra.mxu0 %v977
          %2697 = vmatprep.subr.mxu0 %v984
          %2698 = vmatpush1.msra.mxu0 %v983
          %2699 = vmatprep.subr.mxu0 %v990
          %2700 = vmatpush1.msra.mxu0 %v989
          %2701 = vmatprep.subr.mxu0 %v996
          %2702 = vmatpush1.msra.mxu0 %v995
          %2703 = vmatprep.subr.mxu0 %v1002
          %2704 = vmatpush1.msra.mxu0 %v1001
          %2705 = vmatprep.subr.mxu0 %v1008
          %2706 = vmatpush1.msra.mxu0 %v1007
          %2707 = vmatprep.subr.mxu0 %v1014
          %2708 = vmatpush1.msra.mxu0 %v1013
          %2709 = vmatprep.subr.mxu0 %v1020
          %2710 = vmatpush1.msra.mxu0 %v1019
          %2711 = vmatprep.subr.mxu0 %v1026
          %2712 = vmatpush1.msra.mxu0 %v1025
          %2713 = vmatprep.subr.mxu0 %v1032
          %2714 = vmatpush1.msra.mxu0 %v1031
          %2715 = vmatprep.subr.mxu0 %v1038
          %2716 = vmatpush1.msra.mxu0 %v1037
          %2717 = vmatprep.subr.mxu0 %v1044
          %2718 = vmatpush1.msra.mxu0 %v1043
          %2719 = vmatprep.subr.mxu0 %v1050
          %2720 = vmatpush1.msra.mxu0 %v1049
          %2721 = vmatprep.subr.mxu0 %v1056
          %2722 = vmatpush1.msra.mxu0 %v1055
          %2723 = vmatprep.subr.mxu0 %v1062
          %2724 = vmatpush1.msra.mxu0 %v1061
          %2725 = vmatprep.subr.mxu0 %v1068
          %2726 = vmatpush1.msra.mxu0 %v1067
          %2727 = vmatprep.subr.mxu0 %v1074
          %2728 = vmatpush1.msra.mxu0 %v1073
          %2729 = vmatprep.subr.mxu0 %v1080
          %2730 = vmatpush1.msra.mxu0 %v1079
          %2731 = vmatprep.subr.mxu0 %v1086
          %2732 = vmatpush1.msra.mxu0 %v1085
          %2733 = vmatprep.subr.mxu0 %v1092
          %2734 = vmatpush1.msra.mxu0 %v1091
          %2735 = vmatprep.subr.mxu0 %v1098
          %2736 = vmatpush1.msra.mxu0 %v1097
          %2737 = vmatprep.subr.mxu0 %v1104
          %2738 = vmatpush1.msra.mxu0 %v1103
          %2739 = vmatprep.subr.mxu0 %v1110
          %2740 = vmatpush1.msra.mxu0 %v1109
          %2741 = vmatprep.subr.mxu0 %v1116
          %2742 = vmatpush1.msra.mxu0 %v1115
          %2743 = vmatprep.mubr.f32.mxu0 %v1895
          %2744 = vmatmul.mubr.f32.gmra.mrb[0].mxu0 %v1891
          %v2745 = vpop.f32.mrb[0].mxu0
          %v2746 = vadd.f32 %v1958, %v2745
          %v2747 = vpop.f32.mrb[0].mxu0
          %v2748 = vadd.f32 %v1962, %v2747
          %2749 = vdwg.mxu0
          %2750 = vmatprep.subr.mxu0 %v1122
          %2751 = vmatpush1.msra.mxu0 %v1121
          %2752 = vmatprep.subr.mxu0 %v1128
          %2753 = vmatpush1.msra.mxu0 %v1127
          %2754 = vmatprep.subr.mxu0 %v1134
          %2755 = vmatpush1.msra.mxu0 %v1133
          %2756 = vmatprep.subr.mxu0 %v1140
          %2757 = vmatpush1.msra.mxu0 %v1139
          %2758 = vmatprep.subr.mxu0 %v1146
          %2759 = vmatpush1.msra.mxu0 %v1145
          %2760 = vmatprep.subr.mxu0 %v1152
          %2761 = vmatpush1.msra.mxu0 %v1151
          %2762 = vmatprep.subr.mxu0 %v1158
          %2763 = vmatpush1.msra.mxu0 %v1157
          %2764 = vmatprep.subr.mxu0 %v1164
          %2765 = vmatpush1.msra.mxu0 %v1163
          %2766 = vmatprep.subr.mxu0 %v1170
          %2767 = vmatpush1.msra.mxu0 %v1169
          %2768 = vmatprep.subr.mxu0 %v1176
          %2769 = vmatpush1.msra.mxu0 %v1175
          %2770 = vmatprep.subr.mxu0 %v1182
          %2771 = vmatpush1.msra.mxu0 %v1181
          %2772 = vmatprep.subr.mxu0 %v1188
          %2773 = vmatpush1.msra.mxu0 %v1187
          %2774 = vmatprep.subr.mxu0 %v1194
          %2775 = vmatpush1.msra.mxu0 %v1193
          %2776 = vmatprep.subr.mxu0 %v1200
          %2777 = vmatpush1.msra.mxu0 %v1199
          %2778 = vmatprep.subr.mxu0 %v1206
          %2779 = vmatpush1.msra.mxu0 %v1205
          %2780 = vmatprep.subr.mxu0 %v1212
          %2781 = vmatpush1.msra.mxu0 %v1211
          %2782 = vmatprep.subr.mxu0 %v1218
          %2783 = vmatpush1.msra.mxu0 %v1217
          %2784 = vmatprep.subr.mxu0 %v1224
          %2785 = vmatpush1.msra.mxu0 %v1223
          %2786 = vmatprep.subr.mxu0 %v1230
          %2787 = vmatpush1.msra.mxu0 %v1229
          %2788 = vmatprep.subr.mxu0 %v1236
          %2789 = vmatpush1.msra.mxu0 %v1235
          %2790 = vmatprep.subr.mxu0 %v1242
          %2791 = vmatpush1.msra.mxu0 %v1241
          %2792 = vmatprep.subr.mxu0 %v1248
          %2793 = vmatpush1.msra.mxu0 %v1247
          %2794 = vmatprep.subr.mxu0 %v1254
          %2795 = vmatpush1.msra.mxu0 %v1253
          %2796 = vmatprep.subr.mxu0 %v1260
          %2797 = vmatpush1.msra.mxu0 %v1259
          %2798 = vmatprep.subr.mxu0 %v1266
          %2799 = vmatpush1.msra.mxu0 %v1265
          %2800 = vmatprep.subr.mxu0 %v1272
          %2801 = vmatpush1.msra.mxu0 %v1271
          %2802 = vmatprep.subr.mxu0 %v1278
          %2803 = vmatpush1.msra.mxu0 %v1277
          %2804 = vmatprep.subr.mxu0 %v1284
          %2805 = vmatpush1.msra.mxu0 %v1283
          %2806 = vmatprep.subr.mxu0 %v1290
          %2807 = vmatpush1.msra.mxu0 %v1289
          %2808 = vmatprep.subr.mxu0 %v1296
          %2809 = vmatpush1.msra.mxu0 %v1295
          %2810 = vmatprep.subr.mxu0 %v1302
          %2811 = vmatpush1.msra.mxu0 %v1301
          %2812 = vmatprep.subr.mxu0 %v1308
          %2813 = vmatpush1.msra.mxu0 %v1307
          %2814 = vmatprep.mubr.f32.mxu0 %v1903
          %2815 = vmatmul.mubr.f32.gmra.mrb[0].mxu0 %v1899
          %v2816 = vpop.f32.mrb[0].mxu0
          %v2817 = vadd.f32 %v2746, %v2816
          %v2818 = vpop.f32.mrb[0].mxu0
          %v2819 = vadd.f32 %v2748, %v2818
          %2820 = vdwg.mxu0
          %2821 = vmatprep.subr.mxu0 %v1314
          %2822 = vmatpush1.msra.mxu0 %v1313
          %2823 = vmatprep.subr.mxu0 %v1320
          %2824 = vmatpush1.msra.mxu0 %v1319
          %2825 = vmatprep.subr.mxu0 %v1326
          %2826 = vmatpush1.msra.mxu0 %v1325
          %2827 = vmatprep.subr.mxu0 %v1332
          %2828 = vmatpush1.msra.mxu0 %v1331
          %2829 = vmatprep.subr.mxu0 %v1338
          %2830 = vmatpush1.msra.mxu0 %v1337
          %2831 = vmatprep.subr.mxu0 %v1344
          %2832 = vmatpush1.msra.mxu0 %v1343
          %2833 = vmatprep.subr.mxu0 %v1350
          %2834 = vmatpush1.msra.mxu0 %v1349
          %2835 = vmatprep.subr.mxu0 %v1356
          %2836 = vmatpush1.msra.mxu0 %v1355
          %2837 = vmatprep.subr.mxu0 %v1362
          %2838 = vmatpush1.msra.mxu0 %v1361
          %2839 = vmatprep.subr.mxu0 %v1368
          %2840 = vmatpush1.msra.mxu0 %v1367
          %2841 = vmatprep.subr.mxu0 %v1374
          %2842 = vmatpush1.msra.mxu0 %v1373
          %2843 = vmatprep.subr.mxu0 %v1380
          %2844 = vmatpush1.msra.mxu0 %v1379
          %2845 = vmatprep.subr.mxu0 %v1386
          %2846 = vmatpush1.msra.mxu0 %v1385
          %2847 = vmatprep.subr.mxu0 %v1392
          %2848 = vmatpush1.msra.mxu0 %v1391
          %2849 = vmatprep.subr.mxu0 %v1398
          %2850 = vmatpush1.msra.mxu0 %v1397
          %2851 = vmatprep.subr.mxu0 %v1404
          %2852 = vmatpush1.msra.mxu0 %v1403
          %2853 = vmatprep.subr.mxu0 %v1410
          %2854 = vmatpush1.msra.mxu0 %v1409
          %2855 = vmatprep.subr.mxu0 %v1416
          %2856 = vmatpush1.msra.mxu0 %v1415
          %2857 = vmatprep.subr.mxu0 %v1422
          %2858 = vmatpush1.msra.mxu0 %v1421
          %2859 = vmatprep.subr.mxu0 %v1428
          %2860 = vmatpush1.msra.mxu0 %v1427
          %2861 = vmatprep.subr.mxu0 %v1434
          %2862 = vmatpush1.msra.mxu0 %v1433
          %2863 = vmatprep.subr.mxu0 %v1440
          %2864 = vmatpush1.msra.mxu0 %v1439
          %2865 = vmatprep.subr.mxu0 %v1446
          %2866 = vmatpush1.msra.mxu0 %v1445
          %2867 = vmatprep.subr.mxu0 %v1452
          %2868 = vmatpush1.msra.mxu0 %v1451
          %2869 = vmatprep.subr.mxu0 %v1458
          %2870 = vmatpush1.msra.mxu0 %v1457
          %2871 = vmatprep.subr.mxu0 %v1464
          %2872 = vmatpush1.msra.mxu0 %v1463
          %2873 = vmatprep.subr.mxu0 %v1470
          %2874 = vmatpush1.msra.mxu0 %v1469
          %2875 = vmatprep.subr.mxu0 %v1476
          %2876 = vmatpush1.msra.mxu0 %v1475
          %2877 = vmatprep.subr.mxu0 %v1482
          %2878 = vmatpush1.msra.mxu0 %v1481
          %2879 = vmatprep.subr.mxu0 %v1488
          %2880 = vmatpush1.msra.mxu0 %v1487
          %2881 = vmatprep.subr.mxu0 %v1494
          %2882 = vmatpush1.msra.mxu0 %v1493
          %2883 = vmatprep.subr.mxu0 %v1500
          %2884 = vmatpush1.msra.mxu0 %v1499
          %2885 = vmatprep.mubr.f32.mxu0 %v1911
          %2886 = vmatmul.mubr.f32.gmra.mrb[0].mxu0 %v1907
          %v2887 = vpop.f32.mrb[0].mxu0
          %v2888 = vadd.f32 %v2817, %v2887
          %v2889 = vpop.f32.mrb[0].mxu0
          %v2890 = vadd.f32 %v2819, %v2889
          %2891 = vdwg.mxu0
          %2892 = vmatprep.subr.mxu0 %v1506
          %2893 = vmatpush1.msra.mxu0 %v1505
          %2894 = vmatprep.subr.mxu0 %v1512
          %2895 = vmatpush1.msra.mxu0 %v1511
          %2896 = vmatprep.subr.mxu0 %v1518
          %2897 = vmatpush1.msra.mxu0 %v1517
          %2898 = vmatprep.subr.mxu0 %v1524
          %2899 = vmatpush1.msra.mxu0 %v1523
          %2900 = vmatprep.subr.mxu0 %v1530
          %2901 = vmatpush1.msra.mxu0 %v1529
          %2902 = vmatprep.subr.mxu0 %v1536
          %2903 = vmatpush1.msra.mxu0 %v1535
          %2904 = vmatprep.subr.mxu0 %v1542
          %2905 = vmatpush1.msra.mxu0 %v1541
          %2906 = vmatprep.subr.mxu0 %v1548
          %2907 = vmatpush1.msra.mxu0 %v1547
          %2908 = vmatprep.subr.mxu0 %v1554
          %2909 = vmatpush1.msra.mxu0 %v1553
          %2910 = vmatprep.subr.mxu0 %v1560
          %2911 = vmatpush1.msra.mxu0 %v1559
          %2912 = vmatprep.subr.mxu0 %v1566
          %2913 = vmatpush1.msra.mxu0 %v1565
          %2914 = vmatprep.subr.mxu0 %v1572
          %2915 = vmatpush1.msra.mxu0 %v1571
          %2916 = vmatprep.subr.mxu0 %v1578
          %2917 = vmatpush1.msra.mxu0 %v1577
          %2918 = vmatprep.subr.mxu0 %v1584
          %2919 = vmatpush1.msra.mxu0 %v1583
          %2920 = vmatprep.subr.mxu0 %v1590
          %2921 = vmatpush1.msra.mxu0 %v1589
          %2922 = vmatprep.subr.mxu0 %v1596
          %2923 = vmatpush1.msra.mxu0 %v1595
          %2924 = vmatprep.subr.mxu0 %v1602
          %2925 = vmatpush1.msra.mxu0 %v1601
          %2926 = vmatprep.subr.mxu0 %v1608
          %2927 = vmatpush1.msra.mxu0 %v1607
          %2928 = vmatprep.subr.mxu0 %v1614
          %2929 = vmatpush1.msra.mxu0 %v1613
          %2930 = vmatprep.subr.mxu0 %v1620
          %2931 = vmatpush1.msra.mxu0 %v1619
          %2932 = vmatprep.subr.mxu0 %v1626
          %2933 = vmatpush1.msra.mxu0 %v1625
          %2934 = vmatprep.subr.mxu0 %v1632
          %2935 = vmatpush1.msra.mxu0 %v1631
          %2936 = vmatprep.subr.mxu0 %v1638
          %2937 = vmatpush1.msra.mxu0 %v1637
          %2938 = vmatprep.subr.mxu0 %v1644
          %2939 = vmatpush1.msra.mxu0 %v1643
          %2940 = vmatprep.subr.mxu0 %v1650
          %2941 = vmatpush1.msra.mxu0 %v1649
          %2942 = vmatprep.subr.mxu0 %v1656
          %2943 = vmatpush1.msra.mxu0 %v1655
          %2944 = vmatprep.subr.mxu0 %v1662
          %2945 = vmatpush1.msra.mxu0 %v1661
          %2946 = vmatprep.subr.mxu0 %v1668
          %2947 = vmatpush1.msra.mxu0 %v1667
          %2948 = vmatprep.subr.mxu0 %v1674
          %2949 = vmatpush1.msra.mxu0 %v1673
          %2950 = vmatprep.subr.mxu0 %v1680
          %2951 = vmatpush1.msra.mxu0 %v1679
          %2952 = vmatprep.subr.mxu0 %v1686
          %2953 = vmatpush1.msra.mxu0 %v1685
          %2954 = vmatprep.subr.mxu0 %v1692
          %2955 = vmatpush1.msra.mxu0 %v1691
          %2956 = vmatprep.mubr.f32.mxu0 %v1919
          %2957 = vmatmul.mubr.f32.gmra.mrb[0].mxu0 %v1915
          %v2958 = vpop.f32.mrb[0].mxu0
          %v2959 = vadd.f32 %v2888, %v2958
          %v2960 = vpop.f32.mrb[0].mxu0
          %v2961 = vadd.f32 %v2890, %v2960
          %2962 = vdwg.mxu0
          %2963 = vmatprep.subr.mxu0 %v1698
          %2964 = vmatpush1.msra.mxu0 %v1697
          %2965 = vmatprep.subr.mxu0 %v1704
          %2966 = vmatpush1.msra.mxu0 %v1703
          %2967 = vmatprep.subr.mxu0 %v1710
          %2968 = vmatpush1.msra.mxu0 %v1709
          %2969 = vmatprep.subr.mxu0 %v1716
          %2970 = vmatpush1.msra.mxu0 %v1715
          %2971 = vmatprep.subr.mxu0 %v1722
          %2972 = vmatpush1.msra.mxu0 %v1721
          %2973 = vmatprep.subr.mxu0 %v1728
          %2974 = vmatpush1.msra.mxu0 %v1727
          %2975 = vmatprep.subr.mxu0 %v1734
          %2976 = vmatpush1.msra.mxu0 %v1733
          %2977 = vmatprep.subr.mxu0 %v1740
          %2978 = vmatpush1.msra.mxu0 %v1739
          %2979 = vmatprep.subr.mxu0 %v1746
          %2980 = vmatpush1.msra.mxu0 %v1745
          %2981 = vmatprep.subr.mxu0 %v1752
          %2982 = vmatpush1.msra.mxu0 %v1751
          %2983 = vmatprep.subr.mxu0 %v1758
          %2984 = vmatpush1.msra.mxu0 %v1757
          %2985 = vmatprep.subr.mxu0 %v1764
          %2986 = vmatpush1.msra.mxu0 %v1763
          %2987 = vmatprep.subr.mxu0 %v1770
          %2988 = vmatpush1.msra.mxu0 %v1769
          %2989 = vmatprep.subr.mxu0 %v1776
          %2990 = vmatpush1.msra.mxu0 %v1775
          %2991 = vmatprep.subr.mxu0 %v1782
          %2992 = vmatpush1.msra.mxu0 %v1781
          %2993 = vmatprep.subr.mxu0 %v1788
          %2994 = vmatpush1.msra.mxu0 %v1787
          %2995 = vmatprep.subr.mxu0 %v1794
          %2996 = vmatpush1.msra.mxu0 %v1793
          %2997 = vmatprep.subr.mxu0 %v1800
          %2998 = vmatpush1.msra.mxu0 %v1799
          %2999 = vmatprep.subr.mxu0 %v1806
          %3000 = vmatpush1.msra.mxu0 %v1805
          %3001 = vmatprep.subr.mxu0 %v1812
          %3002 = vmatpush1.msra.mxu0 %v1811
          %3003 = vmatprep.subr.mxu0 %v1818
          %3004 = vmatpush1.msra.mxu0 %v1817
          %3005 = vmatprep.subr.mxu0 %v1824
          %3006 = vmatpush1.msra.mxu0 %v1823
          %3007 = vmatprep.subr.mxu0 %v1830
          %3008 = vmatpush1.msra.mxu0 %v1829
          %3009 = vmatprep.subr.mxu0 %v1836
          %3010 = vmatpush1.msra.mxu0 %v1835
          %3011 = vmatprep.subr.mxu0 %v1842
          %3012 = vmatpush1.msra.mxu0 %v1841
          %3013 = vmatprep.subr.mxu0 %v1848
          %3014 = vmatpush1.msra.mxu0 %v1847
          %3015 = vmatprep.subr.mxu0 %v1854
          %3016 = vmatpush1.msra.mxu0 %v1853
          %3017 = vmatprep.subr.mxu0 %v1860
          %3018 = vmatpush1.msra.mxu0 %v1859
          %3019 = vmatprep.subr.mxu0 %v1866
          %3020 = vmatpush1.msra.mxu0 %v1865
          %3021 = vmatprep.subr.mxu0 %v1872
          %3022 = vmatpush1.msra.mxu0 %v1871
          %3023 = vmatprep.subr.mxu0 %v1878
          %3024 = vmatpush1.msra.mxu0 %v1877
          %3025 = vmatprep.subr.mxu0 %v1884
          %3026 = vmatpush1.msra.mxu0 %v1883
          %3027 = vmatprep.mubr.f32.mxu0 %v1927
          %3028 = vmatmul.mubr.f32.gmra.mrb[0].mxu0 %v1923
          %v3029 = vpop.f32.mrb[0].mxu0
          %v3030 = vadd.f32 %v2959, %v3029
          %v3031 = vpop.f32.mrb[0].mxu0
          %v3032 = vadd.f32 %v2961, %v3031
          %3033 = vdwg.mxu0
          %v3040 = vcombine.low %v2320, %v2322
          %v3041 = vcombine.low %v2675, %v2677
          %v3042 = vcombine.low %v3030, %v3032
          %v3044 = vunpack.c.l.s4 1966171168
          %v3045 = vunpack.c.0.s8 %v3044
          %v3046 = vlaneseq
          %v3047 = vshrl.u32 %v3046, 7
          %v3048 = vsub.s32 %v3045, %v3047
          %v3049 = vrot.slane %v3040, %v3048
          %v3051 = vunpack.c.l.s4 1966171168
          %v3052 = vunpack.c.0.s8 %v3051
          %v3053 = vlaneseq
          %v3054 = vshrl.u32 %v3053, 7
          %v3055 = vsub.s32 %v3052, %v3054
          %v3056 = vrot.slane %v3041, %v3055
          %v3058 = vunpack.c.l.s4 1966171168
          %v3059 = vunpack.c.0.s8 %v3058
          %v3060 = vlaneseq
          %v3061 = vshrl.u32 %v3060, 7
          %v3062 = vsub.s32 %v3059, %v3061
          %v3063 = vrot.slane %v3042, %v3062
          %v3064 = vcombine.low %v3049, %v3056
          %v3066 = vunpack.c.l.s4 1966171168
          %v3067 = vunpack.c.0.s8 %v3066
          %v3068 = vlaneseq
          %v3069 = vshrl.u32 %v3068, 7
          %v3070 = vsub.s32 %v3067, %v3069
          %v3071 = vrot.slane %v3064, %v3070
          %v3073 = vunpack.c.l.s4 1966171168
          %v3074 = vunpack.c.0.s8 %v3073
          %v3075 = vlaneseq
          %v3076 = vshrl.u32 %v3075, 7
          %v3077 = vsub.s32 %v3074, %v3076
          %v3078 = vrot.slane %v3063, %v3077
          %v3079 = vcombine.low %v3071, %v3078
          %v3081 = vlaneseq
          %vm3082 = vcmp.ge.s32.totalorder %v3081, 0
          %vm3083 = vcmp.lt.s32.totalorder %v3081, 768
          %vm3084 = vmand %vm3082, %vm3083
          %3085 = vst.msk [vmem:[%s340] sm:$0x3f] %vm3084, %v3079
        $region106: #{tpu_custom_call.1} parent=69 // pred_fallthru
          _
        %s3086 = sand.u32 %s163, 1
        %s3087 = scalar_lea.sflag [#allocation7], %s3086
        %s3088 = sand.u32 %s163, 1
        %s3089 = smul.addr %s3088, 6
        %s3090 = scalar_lea.vmem [#allocation13], %s3089
        // Predicated region
        $region107: #{tpu_custom_call.1} parent=69 // pred_check
          %p3091 = pneg %p173
        $region108: #{tpu_custom_call.1} parent=69 // pred_check_branch
          %3093 = sbr.rel (%p3091) target = $region110
        $region109: #{tpu_custom_call.1} parent=69 // pred_region
          %s3095 = ssub.s32 96, 96
          %3096 = vsyncadd %s3087, %s3095
          %s3097 = smul.addr %s27, 6
          %s3098 = smul.addr %s3097, 16
          %s3099 = scalar_lea.hbm %s5, %s3098
          %s3101 = sshll.u32 %s3090, 4
          %s3102 = int_to_ptr.vmem [resolvable:$true] %s3101
          %3104 = dma.vmem_to_hbm [thread:$0]  %s3102, 96, %s3099, %s3087
        $region110: #{tpu_custom_call.1} parent=69 // pred_fallthru
          _
      $region70: #{tpu_custom_call.1} parent=5 // pred_fallthru
        _
      %p3105 = scmp.le.s32.totalorder 2, %s17
      // Predicated region
      $region111: #{tpu_custom_call.1} parent=5 // pred_check
        %p3106 = pneg %p3105
      $region112: #{tpu_custom_call.1} parent=5 // pred_check_branch
        %3108 = sbr.rel (%p3106) target = $region114
      $region113: #{tpu_custom_call.1} parent=5 // pred_region
        %s3109 = ssub.s32 %s17, 2
        // Predicated region
        $region115: #{tpu_custom_call.1} parent=113 // pred_check
          %p3110 = pneg %p179
        $region116: #{tpu_custom_call.1} parent=113 // pred_check_branch
          %3112 = sbr.rel (%p3110) target = $region118
        $region117: #{tpu_custom_call.1} parent=113 // pred_region
          %s3113 = sand.u32 %s164, 1
          %s3114 = scalar_lea.sflag [#allocation7], %s3113
          %s3115 = sand.u32 %s164, 1
          %s3116 = smul.addr %s3115, 6
          %s3117 = scalar_lea.vmem [#allocation13], %s3116
          %3118 = dma.done %s3114, 96
        $region118: #{tpu_custom_call.1} parent=113 // pred_fallthru
          _
      $region114: #{tpu_custom_call.1} parent=5 // pred_fallthru
        _
    $region6: #{tpu_custom_call.1} parent=1 // loop_footer
      %s21 = sadd.s32 1, %s17
    $region7: #{tpu_custom_call.1} parent=1 // loop_footer_branch
      %16 = sbr.rel target = $region3
    $region8: #{tpu_custom_call.1} parent=1 // loop_exit
      _
    %3119 = vsyncpa [#allocation6], 1
    %s3120 = scalar_lea.sflag [#allocation6], 1
    %3121 = vsyncpa %s3120, 1
    %3122 = vsyncpa [#allocation9], 1
    %3123 = vsyncpa [#allocation12], 1
    %3124 = vsyncpa [#allocation7], 1
    %s3125 = scalar_lea.sflag [#allocation7], 1
    %3126 = vsyncpa %s3125, 1

</llo_original>
